<compile_context>
chip_gen: v5e
topology: v5e:2x2
jax: 0.10.0
libtpu: 0.0.40
codegen_flags: <defaults>
</compile_context>

<pallas_src>
import functools
import math

import jax
import jax.numpy as jnp
import numpy as np
from jax import lax
from jax.experimental import pallas as pl
from jax.experimental.pallas import tpu as pltpu


def _title_block_kernel(tokens_ref, x_ref, wqkv_ref, w1_ref, b1_ref,
                        w2_ref, b2_ref, o_ref, ctx_ref,
                        *, num_heads, head_size):
    """Encode a block of TB titles.

    tokens_ref : (TB, L)      int32 token ids (0 == padding)
    x_ref      : (TB*L, E)    embedded tokens (compute dtype, e.g. bf16)
    wqkv_ref   : (E, 3*HD)    fused q/k/v projection (compute dtype)
    w1_ref     : (HD, M)      additive-attention fc1 weight (compute dtype)
    b1_ref     : (1, M)       additive-attention fc1 bias (f32)
    w2_ref     : (1, M)       additive-attention fc2 weight as a row (f32)
    b2_ref     : (1, 1)       additive-attention fc2 bias (f32)
    o_ref      : (TB, HD)     pooled title vectors (f32 output)
    ctx_ref    : (TB, L, HD)  VMEM scratch for the multi-head context
    """
    H, D = num_heads, head_size
    HD = H * D
    TB, L = tokens_ref.shape

    tokens = tokens_ref[...]                                              # (TB, L)
    # Additive key mask: 0 for real tokens, -1e9 for padding (token id 0).
    mask = jnp.where(tokens == 0, jnp.float32(-1e9), jnp.float32(0.0))    # (TB, L)

    # ---- fused q/k/v projection: one MXU matmul for all TB*L token rows ----
    qkv = jnp.dot(x_ref[...], wqkv_ref[...],
                  preferred_element_type=jnp.float32)                     # (TB*L, 3HD)

    scale = 1.0 / math.sqrt(float(D))
    mask_b = mask[:, None, :]                                             # (TB, 1, L)

    # ---- per-head attention, batched over the TB titles of the block.
    # Each head's output is written into its lane slice of the ctx scratch
    # (no lane-axis concatenate).
    for h in range(H):
        qh = qkv[:, h * D:(h + 1) * D].reshape(TB, L, D)
        kh = qkv[:, HD + h * D:HD + (h + 1) * D].reshape(TB, L, D)
        vh = qkv[:, 2 * HD + h * D:2 * HD + (h + 1) * D].reshape(TB, L, D)

        logits = lax.dot_general(
            qh, kh, (((2,), (2,)), ((0,), (0,))),
            preferred_element_type=jnp.float32) * scale                   # (TB, L, L)
        logits = logits + mask_b
        m = jnp.max(logits, axis=-1, keepdims=True)
        p = jnp.exp(logits - m)
        attn = p * pl.reciprocal(jnp.sum(p, axis=-1, keepdims=True), approx=True)
        ctx_h = lax.dot_general(
            attn, vh, (((2,), (1,)), ((0,), (0,))),
            preferred_element_type=jnp.float32)                           # (TB, L, D)
        ctx_ref[:, :, h * D:(h + 1) * D] = ctx_h

    ctx = ctx_ref[...]                                                    # (TB, L, HD) f32

    # ---- additive attention pooling over the sequence axis ----
    ctx2 = ctx.reshape(TB * L, HD)
    e = jnp.tanh(
        jnp.dot(ctx2.astype(w1_ref.dtype), w1_ref[...],
                preferred_element_type=jnp.float32) + b1_ref[...])        # (TB*L, M)
    # fc2 has a single output unit: VPU multiply-reduce instead of an N=1 dot.
    alpha = jnp.sum(e * w2_ref[...], axis=-1, keepdims=True) + b2_ref[...]  # (TB*L, 1)
    alpha = alpha.reshape(TB, L) + mask                                   # (TB, L)
    am = jnp.max(alpha, axis=-1, keepdims=True)
    w = jnp.exp(alpha - am)
    w = w * pl.reciprocal(jnp.sum(w, axis=-1, keepdims=True), approx=True)
    pooled = jnp.sum(w[:, :, None] * ctx, axis=1)                         # (TB, HD)
    o_ref[...] = pooled.astype(o_ref.dtype)


def title_layer(tokens, params, *, num_heads, head_size, medialayer,
                block_titles=128, compute_dtype=jnp.bfloat16):
    """Pallas TitleLayer forward. tokens: (B, L) int ids; returns (B, H*D) f32."""
    B, L = tokens.shape
    emb = params["embedding"]                 # (V, E)
    E = emb.shape[1]
    HD = num_heads * head_size
    M = medialayer

    # Title-block size: one block if B is small, otherwise a sublane-aligned
    # tile (pad B up to a multiple of it; padded rows are all-zero titles).
    if B <= block_titles:
        TB = B
    else:
        TB = max(8, (block_titles // 8) * 8)
    Bp = -(-B // TB) * TB
    tokens = tokens.astype(jnp.int32)
    if Bp != B:
        tokens = jnp.concatenate(
            [tokens, jnp.zeros((Bp - B, L), jnp.int32)], axis=0)

    # Embedding gather stays in XLA; the kernel consumes embedded activations.
    # TODO(synk): for very large B, fuse the gather into the kernel via scalar
    # prefetch + row-gather index_map to avoid the (B, L, E) HBM round trip.
    x = jnp.take(emb, tokens, axis=0).astype(compute_dtype)               # (Bp, L, E)
    x = x.reshape(Bp * L, E)                                              # lane-dense rows

    # Fused q/k/v projection weight and additive-attention params.
    wqkv = jnp.concatenate([params["wq"], params["wk"], params["wv"]],
                           axis=1).astype(compute_dtype)                  # (E, 3HD)
    w1 = params["att_w1"].astype(compute_dtype)                           # (HD, M)
    b1 = params["att_b1"].astype(jnp.float32).reshape(1, M)
    w2 = params["att_w2"].astype(jnp.float32).reshape(1, M)               # row form
    b2 = params["att_b2"].astype(jnp.float32).reshape(1, 1)

    kernel = functools.partial(_title_block_kernel,
                               num_heads=num_heads, head_size=head_size)

    out = pl.pallas_call(
        kernel,
        out_shape=jax.ShapeDtypeStruct((Bp, HD), jnp.float32),
        grid_spec=pltpu.PrefetchScalarGridSpec(
            num_scalar_prefetch=0,
            grid=(Bp // TB,),
            in_specs=[
                pl.BlockSpec((TB, L), lambda b: (b, 0)),          # tokens
                pl.BlockSpec((TB * L, E), lambda b: (b, 0)),      # x (flattened)
                pl.BlockSpec((E, 3 * HD), lambda b: (0, 0)),      # fused Wqkv
                pl.BlockSpec((HD, M), lambda b: (0, 0)),          # att_fc1 W
                pl.BlockSpec((1, M), lambda b: (0, 0)),           # att_fc1 b
                pl.BlockSpec((1, M), lambda b: (0, 0)),           # att_fc2 W (row)
                pl.BlockSpec((1, 1), lambda b: (0, 0)),           # att_fc2 b
            ],
            out_specs=pl.BlockSpec((TB, HD), lambda b: (b, 0)),
            scratch_shapes=[pltpu.VMEM((TB, L, HD), jnp.float32)],
        ),
        compiler_params=pltpu.CompilerParams(
            dimension_semantics=("parallel",)),
    )(tokens, x, wqkv, w1, b1, w2, b2)
    return out[:B]


def title_layer_ref(tokens, params, *, num_heads, head_size):
    """Pure-JAX f32 reference mirroring the PyTorch forward."""
    B, L = tokens.shape
    HD = num_heads * head_size
    D = head_size
    x = jnp.take(params["embedding"], tokens, axis=0).astype(jnp.float32)  # (B,L,E)
    mask = jnp.where(tokens == 0, -1.0e9, 0.0).astype(jnp.float32)         # (B,L)

    q = x @ params["wq"]
    k = x @ params["wk"]
    v = x @ params["wv"]

    def split(t):
        return t.reshape(B, L, num_heads, D).transpose(0, 2, 1, 3)         # (B,H,L,D)

    q, k, v = split(q), split(k), split(v)
    logits = jnp.einsum("bhld,bhmd->bhlm", q, k) / math.sqrt(D)
    logits = logits + mask[:, None, None, :]
    attn = jax.nn.softmax(logits, axis=3)
    ctx = jnp.einsum("bhlm,bhmd->bhld", attn, v)
    ctx = ctx.transpose(0, 2, 1, 3).reshape(B, L, HD)

    e = jnp.tanh(ctx @ params["att_w1"] + params["att_b1"])                # (B,L,M)
    alpha = e @ params["att_w2"] + params["att_b2"]                        # (B,L,1)
    alpha = alpha + mask[:, :, None]
    w = jax.nn.softmax(alpha, axis=1)
    return jnp.sum(w * ctx, axis=1)                                        # (B,HD)


if __name__ == "__main__":
    # Small, module-consistent shapes (several title blocks per grid).
    B, L = 32, 8                # batch of news titles, title length
    VOCAB, E = 64, 32           # word_dict size, word_embed_size
    H, D = 4, 8                 # num_heads, head_size  -> output_dim = 32
    M = 16                      # medialayer (additive-attention hidden size)
    HD = H * D

    key = jax.random.PRNGKey(0)
    ks = jax.random.split(key, 10)

    params = {
        "embedding": jax.random.normal(ks[0], (VOCAB, E), jnp.float32) * 0.1,
        "wq": jax.random.normal(ks[1], (E, HD), jnp.float32) * 0.1,
        "wk": jax.random.normal(ks[2], (E, HD), jnp.float32) * 0.1,
        "wv": jax.random.normal(ks[3], (E, HD), jnp.float32) * 0.1,
        "att_w1": jax.random.normal(ks[4], (HD, M), jnp.float32) * 0.1,
        "att_b1": jax.random.normal(ks[5], (1, M), jnp.float32) * 0.1,
        "att_w2": jax.random.normal(ks[6], (M, 1), jnp.float32) * 0.1,
        "att_b2": jax.random.normal(ks[7], (1, 1), jnp.float32) * 0.1,
    }

    tokens = jax.random.randint(ks[8], (B, L), 1, VOCAB, dtype=jnp.int32)
    # Exercise the -1e9 masking path, including a fully-padded title.
    tokens = tokens.at[0, L - 3:].set(0)
    tokens = tokens.at[1, L - 1:].set(0)
    tokens = tokens.at[2, :].set(0)

    out = title_layer(tokens, params, num_heads=H, head_size=D, medialayer=M,
                      block_titles=16, compute_dtype=jnp.bfloat16)
    out = jax.block_until_ready(out)

    ref = title_layer_ref(tokens, params, num_heads=H, head_size=D)
    np.testing.assert_allclose(np.asarray(out), np.asarray(ref),
                               rtol=2e-2, atol=5e-3)

    print("KERNEL_OK")
</pallas_src>

<mosaic_0001>
module attributes {stable_mosaic.version = 11 : i64} {
  func.func @_title_block_kernel(%arg0: i32, %arg1: memref<16x8xi32, #tpu.memory_space<vmem>>, %arg2: memref<128x32xbf16, #tpu.memory_space<vmem>>, %arg3: memref<32x96xbf16, #tpu.memory_space<vmem>>, %arg4: memref<32x16xbf16, #tpu.memory_space<vmem>>, %arg5: memref<1x16xf32, #tpu.memory_space<vmem>>, %arg6: memref<1x16xf32, #tpu.memory_space<vmem>>, %arg7: memref<1x1xf32, #tpu.memory_space<vmem>>, %arg8: memref<16x32xf32, #tpu.memory_space<vmem>>, %arg9: memref<16x8x32xf32, #tpu.memory_space<vmem>>) attributes {dimension_semantics = [#tpu.dimension_semantics<parallel>], iteration_bounds = array<i64: 2>, scalar_prefetch = 0 : i64, scratch_operands = 1 : i64, tpu.core_type = #tpu.core_type<tc>, window_params = [{transform_indices = @transform_0, window_bounds = array<i64: 16, 8>}, {transform_indices = @transform_1, window_bounds = array<i64: 128, 32>}, {pipeline_mode = #tpu.pipeline_mode<synchronous>, transform_indices = @transform_2, window_bounds = array<i64: 32, 96>}, {pipeline_mode = #tpu.pipeline_mode<synchronous>, transform_indices = @transform_3, window_bounds = array<i64: 32, 16>}, {pipeline_mode = #tpu.pipeline_mode<synchronous>, transform_indices = @transform_4, window_bounds = array<i64: 1, 16>}, {pipeline_mode = #tpu.pipeline_mode<synchronous>, transform_indices = @transform_5, window_bounds = array<i64: 1, 16>}, {pipeline_mode = #tpu.pipeline_mode<synchronous>, transform_indices = @transform_6, window_bounds = array<i64: 1, 1>}, {transform_indices = @transform_7, window_bounds = array<i64: 16, 32>}]} {
    %c0 = arith.constant 0 : index
    %c0_0 = arith.constant 0 : index
    %0 = vector.load %arg1[%c0, %c0_0] : memref<16x8xi32, #tpu.memory_space<vmem>>, vector<16x8xi32>
    %c0_i32 = arith.constant 0 : i32
    %1 = vector.broadcast %c0_i32 : i32 to vector<16x8xi32>
    %2 = arith.cmpi eq, %0, %1 : vector<16x8xi32>
    %cst = arith.constant -1.000000e+09 : f32
    %cst_1 = arith.constant 0.000000e+00 : f32
    %3 = vector.broadcast %cst : f32 to vector<16x8xf32>
    %4 = vector.broadcast %cst_1 : f32 to vector<16x8xf32>
    %5 = arith.select %2, %3, %4 : vector<16x8xi1>, vector<16x8xf32>
    %c0_2 = arith.constant 0 : index
    %c0_3 = arith.constant 0 : index
    %6 = vector.load %arg2[%c0_2, %c0_3] : memref<128x32xbf16, #tpu.memory_space<vmem>>, vector<128x32xbf16>
    %c0_4 = arith.constant 0 : index
    %c0_5 = arith.constant 0 : index
    %7 = vector.load %arg3[%c0_4, %c0_5] : memref<32x96xbf16, #tpu.memory_space<vmem>>, vector<32x96xbf16>
    %cst_6 = arith.constant dense<0.000000e+00> : vector<128x96xf32>
    %8 = tpu.matmul %6, %7, %cst_6 {dimension_numbers = #tpu.dot_dimension_numbers<[1], [0], [0], [1], [0, 0, 1, 1], [], []>} : vector<128x32xbf16>, vector<32x96xbf16>, vector<128x96xf32> -> vector<128x96xf32>
    %9 = vector.shape_cast %5 : vector<16x8xf32> to vector<16x1x8xf32>
    %10 = vector.extract_strided_slice %8 {offsets = [0, 0], sizes = [128, 8], strides = [1, 1]} : vector<128x96xf32> to vector<128x8xf32>
    %11 = vector.shape_cast %10 : vector<128x8xf32> to vector<16x8x8xf32>
    %12 = vector.extract_strided_slice %8 {offsets = [0, 32], sizes = [128, 8], strides = [1, 1]} : vector<128x96xf32> to vector<128x8xf32>
    %13 = vector.shape_cast %12 : vector<128x8xf32> to vector<16x8x8xf32>
    %14 = vector.extract_strided_slice %8 {offsets = [0, 64], sizes = [128, 8], strides = [1, 1]} : vector<128x96xf32> to vector<128x8xf32>
    %15 = vector.shape_cast %14 : vector<128x8xf32> to vector<16x8x8xf32>
    %cst_7 = arith.constant dense<0.000000e+00> : vector<16x8x8xf32>
    %16 = tpu.matmul %11, %13, %cst_7 {dimension_numbers = #tpu.dot_dimension_numbers<[2], [2], [1], [1], [0, 0, 0, 1, 1, 1], [0], [0]>} : vector<16x8x8xf32>, vector<16x8x8xf32>, vector<16x8x8xf32> -> vector<16x8x8xf32>
    %cst_8 = arith.constant 0.353553385 : f32
    %17 = vector.broadcast %cst_8 : f32 to vector<16x8x8xf32>
    %18 = arith.mulf %16, %17 : vector<16x8x8xf32>
    %19 = vector.broadcast %9 : vector<16x1x8xf32> to vector<16x8x8xf32>
    %20 = arith.addf %18, %19 : vector<16x8x8xf32>
    %cst_9 = arith.constant dense<0xFF800000> : vector<16x8xf32>
    %21 = vector.multi_reduction <maximumf>, %20, %cst_9 [2] : vector<16x8x8xf32> to vector<16x8xf32>
    %22 = vector.shape_cast %21 : vector<16x8xf32> to vector<16x8x1xf32>
    %23 = vector.broadcast %22 : vector<16x8x1xf32> to vector<16x8x8xf32>
    %24 = arith.subf %20, %23 : vector<16x8x8xf32>
    %25 = math.exp %24 : vector<16x8x8xf32>
    %cst_10 = arith.constant dense<0.000000e+00> : vector<16x8xf32>
    %26 = vector.multi_reduction <add>, %25, %cst_10 [2] : vector<16x8x8xf32> to vector<16x8xf32>
    %27 = vector.shape_cast %26 : vector<16x8xf32> to vector<16x8x1xf32>
    %28 = tpu.reciprocal %27 {approx = true} : vector<16x8x1xf32> -> vector<16x8x1xf32>
    %29 = vector.broadcast %28 : vector<16x8x1xf32> to vector<16x8x8xf32>
    %30 = arith.mulf %25, %29 : vector<16x8x8xf32>
    %cst_11 = arith.constant dense<0.000000e+00> : vector<16x8x8xf32>
    %31 = tpu.matmul %30, %15, %cst_11 {dimension_numbers = #tpu.dot_dimension_numbers<[2], [1], [1], [2], [0, 0, 0, 1, 1, 2], [0], [0]>} : vector<16x8x8xf32>, vector<16x8x8xf32>, vector<16x8x8xf32> -> vector<16x8x8xf32>
    %c0_12 = arith.constant 0 : index
    %c0_13 = arith.constant 0 : index
    %c0_14 = arith.constant 0 : index
    %32 = vector.load %arg9[%c0_12, %c0_13, %c0_14] : memref<16x8x32xf32, #tpu.memory_space<vmem>>, vector<16x8x8xf32>
    tpu.vector_store %arg9[%c0_12, %c0_13, %c0_14], %31 {strides = array<i32>} : memref<16x8x32xf32, #tpu.memory_space<vmem>>, vector<16x8x8xf32>,
    %33 = vector.extract_strided_slice %8 {offsets = [0, 8], sizes = [128, 8], strides = [1, 1]} : vector<128x96xf32> to vector<128x8xf32>
    %34 = vector.shape_cast %33 : vector<128x8xf32> to vector<16x8x8xf32>
    %35 = vector.extract_strided_slice %8 {offsets = [0, 40], sizes = [128, 8], strides = [1, 1]} : vector<128x96xf32> to vector<128x8xf32>
    %36 = vector.shape_cast %35 : vector<128x8xf32> to vector<16x8x8xf32>
    %37 = vector.extract_strided_slice %8 {offsets = [0, 72], sizes = [128, 8], strides = [1, 1]} : vector<128x96xf32> to vector<128x8xf32>
    %38 = vector.shape_cast %37 : vector<128x8xf32> to vector<16x8x8xf32>
    %cst_15 = arith.constant dense<0.000000e+00> : vector<16x8x8xf32>
    %39 = tpu.matmul %34, %36, %cst_15 {dimension_numbers = #tpu.dot_dimension_numbers<[2], [2], [1], [1], [0, 0, 0, 1, 1, 1], [0], [0]>} : vector<16x8x8xf32>, vector<16x8x8xf32>, vector<16x8x8xf32> -> vector<16x8x8xf32>
    %cst_16 = arith.constant 0.353553385 : f32
    %40 = vector.broadcast %cst_16 : f32 to vector<16x8x8xf32>
    %41 = arith.mulf %39, %40 : vector<16x8x8xf32>
    %42 = vector.broadcast %9 : vector<16x1x8xf32> to vector<16x8x8xf32>
    %43 = arith.addf %41, %42 : vector<16x8x8xf32>
    %cst_17 = arith.constant dense<0xFF800000> : vector<16x8xf32>
    %44 = vector.multi_reduction <maximumf>, %43, %cst_17 [2] : vector<16x8x8xf32> to vector<16x8xf32>
    %45 = vector.shape_cast %44 : vector<16x8xf32> to vector<16x8x1xf32>
    %46 = vector.broadcast %45 : vector<16x8x1xf32> to vector<16x8x8xf32>
    %47 = arith.subf %43, %46 : vector<16x8x8xf32>
    %48 = math.exp %47 : vector<16x8x8xf32>
    %cst_18 = arith.constant dense<0.000000e+00> : vector<16x8xf32>
    %49 = vector.multi_reduction <add>, %48, %cst_18 [2] : vector<16x8x8xf32> to vector<16x8xf32>
    %50 = vector.shape_cast %49 : vector<16x8xf32> to vector<16x8x1xf32>
    %51 = tpu.reciprocal %50 {approx = true} : vector<16x8x1xf32> -> vector<16x8x1xf32>
    %52 = vector.broadcast %51 : vector<16x8x1xf32> to vector<16x8x8xf32>
    %53 = arith.mulf %48, %52 : vector<16x8x8xf32>
    %cst_19 = arith.constant dense<0.000000e+00> : vector<16x8x8xf32>
    %54 = tpu.matmul %53, %38, %cst_19 {dimension_numbers = #tpu.dot_dimension_numbers<[2], [1], [1], [2], [0, 0, 0, 1, 1, 2], [0], [0]>} : vector<16x8x8xf32>, vector<16x8x8xf32>, vector<16x8x8xf32> -> vector<16x8x8xf32>
    %c0_20 = arith.constant 0 : index
    %c0_21 = arith.constant 0 : index
    %c8 = arith.constant 8 : index
    %55 = vector.load %arg9[%c0_20, %c0_21, %c8] : memref<16x8x32xf32, #tpu.memory_space<vmem>>, vector<16x8x8xf32>
    tpu.vector_store %arg9[%c0_20, %c0_21, %c8], %54 {strides = array<i32>} : memref<16x8x32xf32, #tpu.memory_space<vmem>>, vector<16x8x8xf32>,
    %56 = vector.extract_strided_slice %8 {offsets = [0, 16], sizes = [128, 8], strides = [1, 1]} : vector<128x96xf32> to vector<128x8xf32>
    %57 = vector.shape_cast %56 : vector<128x8xf32> to vector<16x8x8xf32>
    %58 = vector.extract_strided_slice %8 {offsets = [0, 48], sizes = [128, 8], strides = [1, 1]} : vector<128x96xf32> to vector<128x8xf32>
    %59 = vector.shape_cast %58 : vector<128x8xf32> to vector<16x8x8xf32>
    %60 = vector.extract_strided_slice %8 {offsets = [0, 80], sizes = [128, 8], strides = [1, 1]} : vector<128x96xf32> to vector<128x8xf32>
    %61 = vector.shape_cast %60 : vector<128x8xf32> to vector<16x8x8xf32>
    %cst_22 = arith.constant dense<0.000000e+00> : vector<16x8x8xf32>
    %62 = tpu.matmul %57, %59, %cst_22 {dimension_numbers = #tpu.dot_dimension_numbers<[2], [2], [1], [1], [0, 0, 0, 1, 1, 1], [0], [0]>} : vector<16x8x8xf32>, vector<16x8x8xf32>, vector<16x8x8xf32> -> vector<16x8x8xf32>
    %cst_23 = arith.constant 0.353553385 : f32
    %63 = vector.broadcast %cst_23 : f32 to vector<16x8x8xf32>
    %64 = arith.mulf %62, %63 : vector<16x8x8xf32>
    %65 = vector.broadcast %9 : vector<16x1x8xf32> to vector<16x8x8xf32>
    %66 = arith.addf %64, %65 : vector<16x8x8xf32>
    %cst_24 = arith.constant dense<0xFF800000> : vector<16x8xf32>
    %67 = vector.multi_reduction <maximumf>, %66, %cst_24 [2] : vector<16x8x8xf32> to vector<16x8xf32>
    %68 = vector.shape_cast %67 : vector<16x8xf32> to vector<16x8x1xf32>
    %69 = vector.broadcast %68 : vector<16x8x1xf32> to vector<16x8x8xf32>
    %70 = arith.subf %66, %69 : vector<16x8x8xf32>
    %71 = math.exp %70 : vector<16x8x8xf32>
    %cst_25 = arith.constant dense<0.000000e+00> : vector<16x8xf32>
    %72 = vector.multi_reduction <add>, %71, %cst_25 [2] : vector<16x8x8xf32> to vector<16x8xf32>
    %73 = vector.shape_cast %72 : vector<16x8xf32> to vector<16x8x1xf32>
    %74 = tpu.reciprocal %73 {approx = true} : vector<16x8x1xf32> -> vector<16x8x1xf32>
    %75 = vector.broadcast %74 : vector<16x8x1xf32> to vector<16x8x8xf32>
    %76 = arith.mulf %71, %75 : vector<16x8x8xf32>
    %cst_26 = arith.constant dense<0.000000e+00> : vector<16x8x8xf32>
    %77 = tpu.matmul %76, %61, %cst_26 {dimension_numbers = #tpu.dot_dimension_numbers<[2], [1], [1], [2], [0, 0, 0, 1, 1, 2], [0], [0]>} : vector<16x8x8xf32>, vector<16x8x8xf32>, vector<16x8x8xf32> -> vector<16x8x8xf32>
    %c0_27 = arith.constant 0 : index
    %c0_28 = arith.constant 0 : index
    %c16 = arith.constant 16 : index
    %78 = vector.load %arg9[%c0_27, %c0_28, %c16] : memref<16x8x32xf32, #tpu.memory_space<vmem>>, vector<16x8x8xf32>
    tpu.vector_store %arg9[%c0_27, %c0_28, %c16], %77 {strides = array<i32>} : memref<16x8x32xf32, #tpu.memory_space<vmem>>, vector<16x8x8xf32>,
    %79 = vector.extract_strided_slice %8 {offsets = [0, 24], sizes = [128, 8], strides = [1, 1]} : vector<128x96xf32> to vector<128x8xf32>
    %80 = vector.shape_cast %79 : vector<128x8xf32> to vector<16x8x8xf32>
    %81 = vector.extract_strided_slice %8 {offsets = [0, 56], sizes = [128, 8], strides = [1, 1]} : vector<128x96xf32> to vector<128x8xf32>
    %82 = vector.shape_cast %81 : vector<128x8xf32> to vector<16x8x8xf32>
    %83 = vector.extract_strided_slice %8 {offsets = [0, 88], sizes = [128, 8], strides = [1, 1]} : vector<128x96xf32> to vector<128x8xf32>
    %84 = vector.shape_cast %83 : vector<128x8xf32> to vector<16x8x8xf32>
    %cst_29 = arith.constant dense<0.000000e+00> : vector<16x8x8xf32>
    %85 = tpu.matmul %80, %82, %cst_29 {dimension_numbers = #tpu.dot_dimension_numbers<[2], [2], [1], [1], [0, 0, 0, 1, 1, 1], [0], [0]>} : vector<16x8x8xf32>, vector<16x8x8xf32>, vector<16x8x8xf32> -> vector<16x8x8xf32>
    %cst_30 = arith.constant 0.353553385 : f32
    %86 = vector.broadcast %cst_30 : f32 to vector<16x8x8xf32>
    %87 = arith.mulf %85, %86 : vector<16x8x8xf32>
    %88 = vector.broadcast %9 : vector<16x1x8xf32> to vector<16x8x8xf32>
    %89 = arith.addf %87, %88 : vector<16x8x8xf32>
    %cst_31 = arith.constant dense<0xFF800000> : vector<16x8xf32>
    %90 = vector.multi_reduction <maximumf>, %89, %cst_31 [2] : vector<16x8x8xf32> to vector<16x8xf32>
    %91 = vector.shape_cast %90 : vector<16x8xf32> to vector<16x8x1xf32>
    %92 = vector.broadcast %91 : vector<16x8x1xf32> to vector<16x8x8xf32>
    %93 = arith.subf %89, %92 : vector<16x8x8xf32>
    %94 = math.exp %93 : vector<16x8x8xf32>
    %cst_32 = arith.constant dense<0.000000e+00> : vector<16x8xf32>
    %95 = vector.multi_reduction <add>, %94, %cst_32 [2] : vector<16x8x8xf32> to vector<16x8xf32>
    %96 = vector.shape_cast %95 : vector<16x8xf32> to vector<16x8x1xf32>
    %97 = tpu.reciprocal %96 {approx = true} : vector<16x8x1xf32> -> vector<16x8x1xf32>
    %98 = vector.broadcast %97 : vector<16x8x1xf32> to vector<16x8x8xf32>
    %99 = arith.mulf %94, %98 : vector<16x8x8xf32>
    %cst_33 = arith.constant dense<0.000000e+00> : vector<16x8x8xf32>
    %100 = tpu.matmul %99, %84, %cst_33 {dimension_numbers = #tpu.dot_dimension_numbers<[2], [1], [1], [2], [0, 0, 0, 1, 1, 2], [0], [0]>} : vector<16x8x8xf32>, vector<16x8x8xf32>, vector<16x8x8xf32> -> vector<16x8x8xf32>
    %c0_34 = arith.constant 0 : index
    %c0_35 = arith.constant 0 : index
    %c24 = arith.constant 24 : index
    %101 = vector.load %arg9[%c0_34, %c0_35, %c24] : memref<16x8x32xf32, #tpu.memory_space<vmem>>, vector<16x8x8xf32>
    tpu.vector_store %arg9[%c0_34, %c0_35, %c24], %100 {strides = array<i32>} : memref<16x8x32xf32, #tpu.memory_space<vmem>>, vector<16x8x8xf32>,
    %c0_36 = arith.constant 0 : index
    %c0_37 = arith.constant 0 : index
    %c0_38 = arith.constant 0 : index
    %102 = vector.load %arg9[%c0_36, %c0_37, %c0_38] : memref<16x8x32xf32, #tpu.memory_space<vmem>>, vector<16x8x32xf32>
    %103 = vector.shape_cast %102 : vector<16x8x32xf32> to vector<128x32xf32>
    %104 = arith.truncf %103 : vector<128x32xf32> to vector<128x32xbf16>
    %c0_39 = arith.constant 0 : index
    %c0_40 = arith.constant 0 : index
    %105 = vector.load %arg4[%c0_39, %c0_40] : memref<32x16xbf16, #tpu.memory_space<vmem>>, vector<32x16xbf16>
    %cst_41 = arith.constant dense<0.000000e+00> : vector<128x16xf32>
    %106 = tpu.matmul %104, %105, %cst_41 {dimension_numbers = #tpu.dot_dimension_numbers<[1], [0], [0], [1], [0, 0, 1, 1], [], []>} : vector<128x32xbf16>, vector<32x16xbf16>, vector<128x16xf32> -> vector<128x16xf32>
    %c0_42 = arith.constant 0 : index
    %c0_43 = arith.constant 0 : index
    %107 = vector.load %arg5[%c0_42, %c0_43] : memref<1x16xf32, #tpu.memory_space<vmem>>, vector<1x16xf32>
    %108 = vector.broadcast %107 : vector<1x16xf32> to vector<128x16xf32>
    %109 = arith.addf %106, %108 : vector<128x16xf32>
    %110 = math.tanh %109 : vector<128x16xf32>
    %c0_44 = arith.constant 0 : index
    %c0_45 = arith.constant 0 : index
    %111 = vector.load %arg6[%c0_44, %c0_45] : memref<1x16xf32, #tpu.memory_space<vmem>>, vector<1x16xf32>
    %112 = vector.broadcast %111 : vector<1x16xf32> to vector<128x16xf32>
    %113 = arith.mulf %110, %112 : vector<128x16xf32>
    %cst_46 = arith.constant dense<0.000000e+00> : vector<128xf32>
    %114 = vector.multi_reduction <add>, %113, %cst_46 [1] : vector<128x16xf32> to vector<128xf32>
    %115 = vector.shape_cast %114 : vector<128xf32> to vector<128x1xf32>
    %c0_47 = arith.constant 0 : index
    %c0_48 = arith.constant 0 : index
    %116 = vector.load %arg7[%c0_47, %c0_48] : memref<1x1xf32, #tpu.memory_space<vmem>>, vector<1x1xf32>
    %117 = vector.broadcast %116 : vector<1x1xf32> to vector<128x1xf32>
    %118 = arith.addf %115, %117 : vector<128x1xf32>
    %119 = vector.shape_cast %118 : vector<128x1xf32> to vector<16x8xf32>
    %120 = arith.addf %119, %5 : vector<16x8xf32>
    %cst_49 = arith.constant dense<0xFF800000> : vector<16xf32>
    %121 = vector.multi_reduction <maximumf>, %120, %cst_49 [1] : vector<16x8xf32> to vector<16xf32>
    %122 = vector.shape_cast %121 : vector<16xf32> to vector<16x1xf32>
    %123 = vector.broadcast %122 : vector<16x1xf32> to vector<16x8xf32>
    %124 = arith.subf %120, %123 : vector<16x8xf32>
    %125 = math.exp %124 : vector<16x8xf32>
    %cst_50 = arith.constant dense<0.000000e+00> : vector<16xf32>
    %126 = vector.multi_reduction <add>, %125, %cst_50 [1] : vector<16x8xf32> to vector<16xf32>
    %127 = vector.shape_cast %126 : vector<16xf32> to vector<16x1xf32>
    %128 = tpu.reciprocal %127 {approx = true} : vector<16x1xf32> -> vector<16x1xf32>
    %129 = vector.broadcast %128 : vector<16x1xf32> to vector<16x8xf32>
    %130 = arith.mulf %125, %129 : vector<16x8xf32>
    %131 = vector.shape_cast %130 : vector<16x8xf32> to vector<16x8x1xf32>
    %132 = vector.broadcast %131 : vector<16x8x1xf32> to vector<16x8x32xf32>
    %133 = arith.mulf %132, %102 : vector<16x8x32xf32>
    %cst_51 = arith.constant dense<0.000000e+00> : vector<16x32xf32>
    %134 = vector.multi_reduction <add>, %133, %cst_51 [1] : vector<16x8x32xf32> to vector<16x32xf32>
    %c0_52 = arith.constant 0 : index
    %c0_53 = arith.constant 0 : index
    %135 = vector.load %arg8[%c0_52, %c0_53] : memref<16x32xf32, #tpu.memory_space<vmem>>, vector<16x32xf32>
    tpu.vector_store %arg8[%c0_52, %c0_53], %134 {strides = array<i32>} : memref<16x32xf32, #tpu.memory_space<vmem>>, vector<16x32xf32>,
    return
  }
  func.func @transform_0(%arg0: i32) -> (i32, i32) {
    %c0_i32 = arith.constant 0 : i32
    %c0_i32_0 = arith.constant 0 : i32
    return %arg0, %c0_i32 : i32, i32
  }
  func.func @transform_1(%arg0: i32) -> (i32, i32) {
    %c0_i32 = arith.constant 0 : i32
    %c0_i32_0 = arith.constant 0 : i32
    return %arg0, %c0_i32 : i32, i32
  }
  func.func @transform_2(%arg0: i32) -> (i32, i32) {
    %c0_i32 = arith.constant 0 : i32
    %c0_i32_0 = arith.constant 0 : i32
    %c0_i32_1 = arith.constant 0 : i32
    return %c0_i32, %c0_i32_0 : i32, i32
  }
  func.func @transform_3(%arg0: i32) -> (i32, i32) {
    %c0_i32 = arith.constant 0 : i32
    %c0_i32_0 = arith.constant 0 : i32
    %c0_i32_1 = arith.constant 0 : i32
    return %c0_i32, %c0_i32_0 : i32, i32
  }
  func.func @transform_4(%arg0: i32) -> (i32, i32) {
    %c0_i32 = arith.constant 0 : i32
    %c0_i32_0 = arith.constant 0 : i32
    %c0_i32_1 = arith.constant 0 : i32
    return %c0_i32, %c0_i32_0 : i32, i32
  }
  func.func @transform_5(%arg0: i32) -> (i32, i32) {
    %c0_i32 = arith.constant 0 : i32
    %c0_i32_0 = arith.constant 0 : i32
    %c0_i32_1 = arith.constant 0 : i32
    return %c0_i32, %c0_i32_0 : i32, i32
  }
  func.func @transform_6(%arg0: i32) -> (i32, i32) {
    %c0_i32 = arith.constant 0 : i32
    %c0_i32_0 = arith.constant 0 : i32
    %c0_i32_1 = arith.constant 0 : i32
    return %c0_i32, %c0_i32_0 : i32, i32
  }
  func.func @transform_7(%arg0: i32) -> (i32, i32) {
    %c0_i32 = arith.constant 0 : i32
    %c0_i32_0 = arith.constant 0 : i32
    return %arg0, %c0_i32 : i32, i32
  }
}

</mosaic_0001>

<llo_original>
// kernel: tpu_custom_call.1
$region0: #{tpu_custom_call.1}
  #allocation0 [shape = 'u32[]', space=smem, size = 0x4, offset = 0x4, fixed_abs, tag = 'smem constant byte address 0x4 - core index']
  #allocation1 [shape = 'u32[72,128]{1,0:T(1,128)}', space=vmem, size = 0x9000, scoped, tag = 'internal scratch']
  #allocation2 [shape = 'f32[16,8,32]{2,1,0:T(8,128)}', space=vmem, size = 0x10000, scoped, tag = 'scratch operand']
  #allocation3 [shape = 'f32[1,1]{1,0:T(1,128)S(1)}', space=vmem, size = 0x200, scoped, tag = 'scoped memory for tpu_custom_call.1']
  %s0 = inlined_call_operand.vmem [shape: s32[32,8], index: 0, kind: input, shape index: {}]
  %s1 = inlined_call_operand.vmem [shape: bf16[256,32], index: 1, kind: input, shape index: {}]
  %s2 = inlined_call_operand.vmem [shape: bf16[32,96], index: 2, kind: input, shape index: {}]
  %s3 = inlined_call_operand.vmem [shape: bf16[32,16], index: 3, kind: input, shape index: {}]
  %s4 = inlined_call_operand.vmem [shape: f32[1,16], index: 4, kind: input, shape index: {}]
  %s5 = inlined_call_operand.vmem [shape: f32[1,16], index: 5, kind: input, shape index: {}]
  %s6 = inlined_call_operand.<no memory space> [shape: f32[1,1], index: 6, kind: input, shape index: {}]
  %s7 = inlined_call_operand.hbm [shape: f32[32,32], index: 7, kind: output, shape index: {}]
  %s8 = sld [smem:[#allocation0]]
  $region61: #{tpu_custom_call.1} parent=0
    _
  %s10 = ssub.s32 1, %s8
  %s11 = scalar_select 0, %s10, %s8
  %v12 = vstv %s6
  %13 = vst [vmem:[#allocation3] sm:$0x1] %v12
  $region1: #{tpu_custom_call.1} parent=0
    #allocation4 [shape = 'u8[16384]{0}', space=vmem, size = 0x4000, scoped, tag = 'output window, operand 0']
    #allocation5 [shape = 's32[2]{0}', space=sflag, size = 0x8, scoped, tag = 'scoped memory for tpu_custom_call.1']
    %14 = vsyncpa [#allocation5], 0
    %s15 = scalar_lea.sflag [#allocation5], 1
    %16 = vsyncpa %s15, 0
    loop: start=0, step=1, limit=4
    $region2: #{tpu_custom_call.1} parent=1 // loop_pre_header
      _
    $region3: #{tpu_custom_call.1} parent=1 // loop_header
      %s18 = sphi 0, %s22
      %p19 = scmp.ge.s32.totalorder %s18, 4
      %s28 = sphi 0, %s30
      %s31 = sphi 0, %s28
      %s32 = sphi 0, %s31
      %s48 = sphi 0, %s32
      %s54 = sphi 0, %s56
      %s57 = sphi 0, %s54
      %s58 = sphi 0, %s57
      %s74 = sphi 0, %s58
      %s78 = sphi 0, %s78
      %s80 = sphi 0, %s78
      %s81 = sphi 0, %s80
      %s95 = sphi 0, %s81
      %s99 = sphi 0, %s99
      %s101 = sphi 0, %s99
      %s102 = sphi 0, %s101
      %s116 = sphi 0, %s102
      %s120 = sphi 0, %s120
      %s122 = sphi 0, %s120
      %s123 = sphi 0, %s122
      %s137 = sphi 0, %s123
      %s141 = sphi 0, %s141
      %s143 = sphi 0, %s141
      %s144 = sphi 0, %s143
      %s158 = sphi 0, %s144
      %s162 = sphi 0, %s162
      %s164 = sphi 0, %s162
      %s165 = sphi 0, %s164
      %s179 = sphi 0, %s165
      %s185 = sphi 0, %s187
      %s188 = sphi 0, %s185
      %s189 = sphi 0, %s188
      %s205 = sphi 0, %s189
    $region4: #{tpu_custom_call.1} parent=1 // loop_header_branch
      %21 = sbr.rel (%p19) target = $region8
    $region5: #{tpu_custom_call.1} parent=1 // loop_body
      %s23 = ssub.s32 %s18, 1
      %s24 = ssub.s32 %s18, 2
      %s25 = sadd.s32 %s18, 1
      %s26 = ssub.s32 %s18, %s25
      %p27 = scmp.eq.s32.totalorder %s26, 0
      %s29 = sadd.s32 %s28, 1
      %s30 = scalar_select %p27, %s28, %s29
      %p33 = pneg %p27
      %p34 = scmp.eq.s32.totalorder %s18, 1
      %p35 = por %p33, %p34
      %p36 = scmp.ne.s32.totalorder %s28, %s31
      %p37 = scmp.eq.s32.totalorder %s18, 0
      %p38 = por %p36, %p37
      %p39 = scmp.ne.s32.totalorder %s28, %s31
      %p40 = scmp.eq.s32.totalorder %s23, 1
      %p41 = por %p39, %p40
      %p42 = scmp.ne.s32.totalorder %s31, %s32
      %p43 = scmp.eq.s32.totalorder %s23, 0
      %p44 = por %p42, %p43
      %p45 = scmp.ne.s32.totalorder %s31, %s32
      %p46 = scmp.eq.s32.totalorder %s24, 1
      %p47 = por %p45, %p46
      %p49 = scmp.ne.s32.totalorder %s32, %s48
      %p50 = scmp.eq.s32.totalorder %s24, 0
      %p51 = por %p49, %p50
      %s52 = ssub.s32 %s18, %s25
      %p53 = scmp.eq.s32.totalorder %s52, 0
      %s55 = sadd.s32 %s54, 1
      %s56 = scalar_select %p53, %s54, %s55
      %p59 = pneg %p53
      %p60 = scmp.eq.s32.totalorder %s18, 1
      %p61 = por %p59, %p60
      %p62 = scmp.ne.s32.totalorder %s54, %s57
      %p63 = scmp.eq.s32.totalorder %s18, 0
      %p64 = por %p62, %p63
      %p65 = scmp.ne.s32.totalorder %s54, %s57
      %p66 = scmp.eq.s32.totalorder %s23, 1
      %p67 = por %p65, %p66
      %p68 = scmp.ne.s32.totalorder %s57, %s58
      %p69 = scmp.eq.s32.totalorder %s23, 0
      %p70 = por %p68, %p69
      %p71 = scmp.ne.s32.totalorder %s57, %s58
      %p72 = scmp.eq.s32.totalorder %s24, 1
      %p73 = por %p71, %p72
      %p75 = scmp.ne.s32.totalorder %s58, %s74
      %p76 = scmp.eq.s32.totalorder %s24, 0
      %p77 = por %p75, %p76
      %s79 = sadd.s32 %s78, 1
      %p82 = scmp.eq.s32.totalorder %s18, 1
      %p83 = scmp.ne.s32.totalorder %s78, %s80
      %p84 = scmp.eq.s32.totalorder %s18, 0
      %p85 = por %p83, %p84
      %p86 = scmp.ne.s32.totalorder %s78, %s80
      %p87 = scmp.eq.s32.totalorder %s23, 1
      %p88 = por %p86, %p87
      %p89 = scmp.ne.s32.totalorder %s80, %s81
      %p90 = scmp.eq.s32.totalorder %s23, 0
      %p91 = por %p89, %p90
      %p92 = scmp.ne.s32.totalorder %s80, %s81
      %p93 = scmp.eq.s32.totalorder %s24, 1
      %p94 = por %p92, %p93
      %p96 = scmp.ne.s32.totalorder %s81, %s95
      %p97 = scmp.eq.s32.totalorder %s24, 0
      %p98 = por %p96, %p97
      %s100 = sadd.s32 %s99, 1
      %p103 = scmp.eq.s32.totalorder %s18, 1
      %p104 = scmp.ne.s32.totalorder %s99, %s101
      %p105 = scmp.eq.s32.totalorder %s18, 0
      %p106 = por %p104, %p105
      %p107 = scmp.ne.s32.totalorder %s99, %s101
      %p108 = scmp.eq.s32.totalorder %s23, 1
      %p109 = por %p107, %p108
      %p110 = scmp.ne.s32.totalorder %s101, %s102
      %p111 = scmp.eq.s32.totalorder %s23, 0
      %p112 = por %p110, %p111
      %p113 = scmp.ne.s32.totalorder %s101, %s102
      %p114 = scmp.eq.s32.totalorder %s24, 1
      %p115 = por %p113, %p114
      %p117 = scmp.ne.s32.totalorder %s102, %s116
      %p118 = scmp.eq.s32.totalorder %s24, 0
      %p119 = por %p117, %p118
      %s121 = sadd.s32 %s120, 1
      %p124 = scmp.eq.s32.totalorder %s18, 1
      %p125 = scmp.ne.s32.totalorder %s120, %s122
      %p126 = scmp.eq.s32.totalorder %s18, 0
      %p127 = por %p125, %p126
      %p128 = scmp.ne.s32.totalorder %s120, %s122
      %p129 = scmp.eq.s32.totalorder %s23, 1
      %p130 = por %p128, %p129
      %p131 = scmp.ne.s32.totalorder %s122, %s123
      %p132 = scmp.eq.s32.totalorder %s23, 0
      %p133 = por %p131, %p132
      %p134 = scmp.ne.s32.totalorder %s122, %s123
      %p135 = scmp.eq.s32.totalorder %s24, 1
      %p136 = por %p134, %p135
      %p138 = scmp.ne.s32.totalorder %s123, %s137
      %p139 = scmp.eq.s32.totalorder %s24, 0
      %p140 = por %p138, %p139
      %s142 = sadd.s32 %s141, 1
      %p145 = scmp.eq.s32.totalorder %s18, 1
      %p146 = scmp.ne.s32.totalorder %s141, %s143
      %p147 = scmp.eq.s32.totalorder %s18, 0
      %p148 = por %p146, %p147
      %p149 = scmp.ne.s32.totalorder %s141, %s143
      %p150 = scmp.eq.s32.totalorder %s23, 1
      %p151 = por %p149, %p150
      %p152 = scmp.ne.s32.totalorder %s143, %s144
      %p153 = scmp.eq.s32.totalorder %s23, 0
      %p154 = por %p152, %p153
      %p155 = scmp.ne.s32.totalorder %s143, %s144
      %p156 = scmp.eq.s32.totalorder %s24, 1
      %p157 = por %p155, %p156
      %p159 = scmp.ne.s32.totalorder %s144, %s158
      %p160 = scmp.eq.s32.totalorder %s24, 0
      %p161 = por %p159, %p160
      %s163 = sadd.s32 %s162, 1
      %p166 = scmp.eq.s32.totalorder %s18, 1
      %p167 = scmp.ne.s32.totalorder %s162, %s164
      %p168 = scmp.eq.s32.totalorder %s18, 0
      %p169 = por %p167, %p168
      %p170 = scmp.ne.s32.totalorder %s162, %s164
      %p171 = scmp.eq.s32.totalorder %s23, 1
      %p172 = por %p170, %p171
      %p173 = scmp.ne.s32.totalorder %s164, %s165
      %p174 = scmp.eq.s32.totalorder %s23, 0
      %p175 = por %p173, %p174
      %p176 = scmp.ne.s32.totalorder %s164, %s165
      %p177 = scmp.eq.s32.totalorder %s24, 1
      %p178 = por %p176, %p177
      %p180 = scmp.ne.s32.totalorder %s165, %s179
      %p181 = scmp.eq.s32.totalorder %s24, 0
      %p182 = por %p180, %p181
      %s183 = ssub.s32 %s18, %s25
      %p184 = scmp.eq.s32.totalorder %s183, 0
      %s186 = sadd.s32 %s185, 1
      %s187 = scalar_select %p184, %s185, %s186
      %p190 = pneg %p184
      %p191 = scmp.eq.s32.totalorder %s18, 1
      %p192 = por %p190, %p191
      %p193 = scmp.ne.s32.totalorder %s185, %s188
      %p194 = scmp.eq.s32.totalorder %s18, 0
      %p195 = por %p193, %p194
      %p196 = scmp.ne.s32.totalorder %s185, %s188
      %p197 = scmp.eq.s32.totalorder %s23, 1
      %p198 = por %p196, %p197
      %p199 = scmp.ne.s32.totalorder %s188, %s189
      %p200 = scmp.eq.s32.totalorder %s23, 0
      %p201 = por %p199, %p200
      %p202 = scmp.ne.s32.totalorder %s188, %s189
      %p203 = scmp.eq.s32.totalorder %s24, 1
      %p204 = por %p202, %p203
      %p206 = scmp.ne.s32.totalorder %s189, %s205
      %p207 = scmp.eq.s32.totalorder %s24, 0
      %p208 = por %p206, %p207
      %p209 = scmp.le.s32.totalorder 1, %s18
      %p210 = scmp.lt.s32.totalorder %s18, 3
      %p211 = pnand %p209, %p210
      %p212 = pneg %p211
      // Predicated region
      $region9: #{tpu_custom_call.1} parent=5 // pred_check
        _
      $region10: #{tpu_custom_call.1} parent=5 // pred_check_branch
        %214 = sbr.rel (%p211) target = $region12
      $region11: #{tpu_custom_call.1} parent=5 // pred_region
        %s215 = ssub.s32 %s18, 1
        // Predicated region
        $region13: #{tpu_custom_call.1} parent=11 // pred_check
          %p216 = pneg %p91
        $region14: #{tpu_custom_call.1} parent=11 // pred_check_branch
          %218 = sbr.rel (%p216) target = $region16
        $region15: #{tpu_custom_call.1} parent=11 // pred_region
          _
        $region16: #{tpu_custom_call.1} parent=11 // pred_fallthru
          _
        // Predicated region
        $region17: #{tpu_custom_call.1} parent=11 // pred_check
          %p219 = pneg %p112
        $region18: #{tpu_custom_call.1} parent=11 // pred_check_branch
          %221 = sbr.rel (%p219) target = $region20
        $region19: #{tpu_custom_call.1} parent=11 // pred_region
          _
        $region20: #{tpu_custom_call.1} parent=11 // pred_fallthru
          _
        // Predicated region
        $region21: #{tpu_custom_call.1} parent=11 // pred_check
          %p222 = pneg %p133
        $region22: #{tpu_custom_call.1} parent=11 // pred_check_branch
          %224 = sbr.rel (%p222) target = $region24
        $region23: #{tpu_custom_call.1} parent=11 // pred_region
          _
        $region24: #{tpu_custom_call.1} parent=11 // pred_fallthru
          _
        // Predicated region
        $region25: #{tpu_custom_call.1} parent=11 // pred_check
          %p225 = pneg %p154
        $region26: #{tpu_custom_call.1} parent=11 // pred_check_branch
          %227 = sbr.rel (%p225) target = $region28
        $region27: #{tpu_custom_call.1} parent=11 // pred_region
          _
        $region28: #{tpu_custom_call.1} parent=11 // pred_fallthru
          _
        // Predicated region
        $region29: #{tpu_custom_call.1} parent=11 // pred_check
          %p228 = pneg %p175
        $region30: #{tpu_custom_call.1} parent=11 // pred_check_branch
          %230 = sbr.rel (%p228) target = $region32
        $region31: #{tpu_custom_call.1} parent=11 // pred_region
          _
        $region32: #{tpu_custom_call.1} parent=11 // pred_fallthru
          _
      $region12: #{tpu_custom_call.1} parent=5 // pred_fallthru
        _
      %p231 = scmp.lt.s32.totalorder %s18, 2
      // Predicated region
      $region33: #{tpu_custom_call.1} parent=5 // pred_check
        %p232 = pneg %p231
      $region34: #{tpu_custom_call.1} parent=5 // pred_check_branch
        %234 = sbr.rel (%p232) target = $region36
      $region35: #{tpu_custom_call.1} parent=5 // pred_region
        // Predicated region
        $region37: #{tpu_custom_call.1} parent=35 // pred_check
          %p235 = pneg %p38
        $region38: #{tpu_custom_call.1} parent=35 // pred_check_branch
          %237 = sbr.rel (%p235) target = $region40
        $region39: #{tpu_custom_call.1} parent=35 // pred_region
          %s238 = smul.u32 2, %s18
          %p239 = scmp.lt.s32.totalorder %s238, 3
          %s240 = scalar_select %p239, %s238, 3
          %s241 = smul.addr %s240, 8
          %s242 = scalar_lea.vmem %s0, %s241
          %s243 = smul.u32 2, %s18
        $region40: #{tpu_custom_call.1} parent=35 // pred_fallthru
          _
        // Predicated region
        $region41: #{tpu_custom_call.1} parent=35 // pred_check
          %p244 = pneg %p64
        $region42: #{tpu_custom_call.1} parent=35 // pred_check_branch
          %246 = sbr.rel (%p244) target = $region44
        $region43: #{tpu_custom_call.1} parent=35 // pred_region
          %s247 = smul.u32 16, %s18
          %p248 = scmp.lt.s32.totalorder %s247, 31
          %s249 = scalar_select %p248, %s247, 31
          %s250 = smul.addr %s249, 4
          %s251 = scalar_lea.vmem %s1, %s250
          %s252 = smul.u32 16, %s18
        $region44: #{tpu_custom_call.1} parent=35 // pred_fallthru
          _
      $region36: #{tpu_custom_call.1} parent=5 // pred_fallthru
        _
      %p253 = scmp.le.s32.totalorder 1, %s18
      %p254 = scmp.lt.s32.totalorder %s18, 3
      %p255 = pnand %p253, %p254
      %p256 = pneg %p255
      // Predicated region
      $region45: #{tpu_custom_call.1} parent=5 // pred_check
        _
      $region46: #{tpu_custom_call.1} parent=5 // pred_check_branch
        %258 = sbr.rel (%p255) target = $region48
      $region47: #{tpu_custom_call.1} parent=5 // pred_region
        %s259 = ssub.s32 %s18, 1
        %s260 = smul.u32 2, %s23
        %p261 = scmp.lt.s32.totalorder %s260, 3
        %s262 = scalar_select %p261, %s260, 3
        %s263 = smul.addr %s262, 8
        %s264 = scalar_lea.vmem %s0, %s263
        %p265 = pneg %p44
        %p266 = pneg %p41
        %s267 = smul.u32 16, %s23
        %p268 = scmp.lt.s32.totalorder %s267, 31
        %s269 = scalar_select %p268, %s267, 31
        %s270 = smul.addr %s269, 4
        %s271 = scalar_lea.vmem %s1, %s270
        %p272 = pneg %p70
        %p273 = pneg %p67
        %p274 = pneg %p91
        %p275 = pneg %p88
        %p276 = pneg %p112
        %p277 = pneg %p109
        %p278 = pneg %p133
        %p279 = pneg %p130
        %p280 = pneg %p154
        %p281 = pneg %p151
        %p282 = pneg %p175
        %p283 = pneg %p172
        %p284 = pneg %p201
        %p285 = pneg %p198
        %s286 = sand.u32 %s188, 1
        %s287 = scalar_lea.sflag [#allocation5], %s286
        %s288 = sand.u32 %s188, 1
        %s289 = smul.addr %s288, 16
        %s290 = scalar_lea.vmem [#allocation4], %s289
        %s291 = smul.u32 2, %s23
        %p292 = scmp.lt.s32.totalorder %s291, 3
        %s293 = scalar_select %p292, %s291, 3
        %s294 = smul.addr %s293, 8
        %s295 = scalar_lea.vmem %s0, %s294
        %s296 = smul.u32 2, %s23
        %s297 = smul.u32 16, %s23
        %p298 = scmp.lt.s32.totalorder %s297, 31
        %s299 = scalar_select %p298, %s297, 31
        %s300 = smul.addr %s299, 4
        %s301 = scalar_lea.vmem %s1, %s300
        %s302 = smul.u32 16, %s23
        %s303 = smul.u32 2, %s23
        %v305 = vld [vmem:[%s295] sm:$0xff]
        %v306 = vld [vmem:[%s295 + $0x8] sm:$0xff]
        %vm307 = vcmp.eq.s32.totalorder %v305, 0
        %vm308 = vcmp.eq.s32.totalorder %v306, 0
        %v309 = vsel %vm307, -1e+09, 0.0
        %v310 = vsel %vm308, -1e+09, 0.0
        %v311 = vld [vmem:[%s301] sm:$0xf]
        %v312 = vld [vmem:[%s301 + $0x4] sm:$0xf]
        %v313 = vld [vmem:[%s301 + $0x8] sm:$0xf]
        %v314 = vld [vmem:[%s301 + $0xc] sm:$0xf]
        %v315 = vld [vmem:[%s301 + $0x10] sm:$0xf]
        %v316 = vld [vmem:[%s301 + $0x14] sm:$0xf]
        %v317 = vld [vmem:[%s301 + $0x18] sm:$0xf]
        %v318 = vld [vmem:[%s301 + $0x1c] sm:$0xf]
        %v319 = vld [vmem:[%s301 + $0x20] sm:$0xf]
        %v320 = vld [vmem:[%s301 + $0x24] sm:$0xf]
        %v321 = vld [vmem:[%s301 + $0x28] sm:$0xf]
        %v322 = vld [vmem:[%s301 + $0x2c] sm:$0xf]
        %v323 = vld [vmem:[%s301 + $0x30] sm:$0xf]
        %v324 = vld [vmem:[%s301 + $0x34] sm:$0xf]
        %v325 = vld [vmem:[%s301 + $0x38] sm:$0xf]
        %v326 = vld [vmem:[%s301 + $0x3c] sm:$0xf]
        %v327 = vld [vmem:[%s2] sm:$0xf]
        %v328 = vld [vmem:[%s2 + $0x4] sm:$0xf]
        %v329 = vld [vmem:[%s2 + $0x8] sm:$0xf]
        %v330 = vld [vmem:[%s2 + $0xc] sm:$0xf]
        %v347 = vunpack.c.l.b16 %v311
        %v348 = vunpack.c.l.b16 %v312
        %v349 = vunpack.c.l.b16 %v313
        %v350 = vunpack.c.l.b16 %v314
        %v351 = vunpack.c.l.b16 %v315
        %v352 = vunpack.c.l.b16 %v316
        %v353 = vunpack.c.l.b16 %v317
        %v354 = vunpack.c.l.b16 %v318
        %v355 = vunpack.c.l.b16 %v319
        %v356 = vunpack.c.l.b16 %v320
        %v357 = vunpack.c.l.b16 %v321
        %v358 = vunpack.c.l.b16 %v322
        %v359 = vunpack.c.l.b16 %v323
        %v360 = vunpack.c.l.b16 %v324
        %v361 = vunpack.c.l.b16 %v325
        %v362 = vunpack.c.l.b16 %v326
        %v363 = vpack.c.b16 %v348, %v347
        %v364 = vpack.c.b16 %v350, %v349
        %v365 = vpack.c.b16 %v352, %v351
        %v366 = vpack.c.b16 %v354, %v353
        %v367 = vpack.c.b16 %v356, %v355
        %v368 = vpack.c.b16 %v358, %v357
        %v369 = vpack.c.b16 %v360, %v359
        %v370 = vpack.c.b16 %v362, %v361
        %v375 = vunpack.c.l.b16 %v327
        %v376 = vunpack.c.l.b16 %v328
        %v377 = vunpack.c.l.b16 %v329
        %v378 = vunpack.c.l.b16 %v330
        %v379 = vpack.c.b16 %v376, %v375
        %v380 = vpack.c.b16 %v378, %v377
        %vm383 = vcmask 261120
        %v385 = vsel %vm383, %v363, 0
        %v388 = vsel %vm383, %v364, 0
        %v391 = vsel %vm383, %v365, 0
        %v394 = vsel %vm383, %v366, 0
        %v397 = vsel %vm383, %v367, 0
        %v400 = vsel %vm383, %v368, 0
        %v403 = vsel %vm383, %v369, 0
        %v406 = vsel %vm383, %v370, 0
        %408 = vmatpush.bf16.msra.mxu0 0
        %409 = vmatpush.bf16.msra.mxu0 0
        %410 = vmatpush.bf16.msra.mxu0 0
        %411 = vmatpush.bf16.msra.mxu0 0
        %412 = vmatpush.bf16.msra.mxu0 0
        %413 = vmatpush.bf16.msra.mxu0 0
        %414 = vmatpush.bf16.msra.mxu0 %v380
        %415 = vmatpush.bf16.msra.mxu0 %v379
        %416 = vmatmul.bf16.gmra.mxu0 %v385
        %v417 = vpop.f32.mrf.mxu0
        %v418 = vadd.f32 0.0, %v417
        %v419 = vpop.f32.mrf.mxu0
        %v420 = vadd.f32 0.0, %v419
        %421 = vmatmul.bf16.gmra.mxu0 %v388
        %v422 = vpop.f32.mrf.mxu0
        %v423 = vadd.f32 0.0, %v422
        %v424 = vpop.f32.mrf.mxu0
        %v425 = vadd.f32 0.0, %v424
        %426 = vmatmul.bf16.gmra.mxu0 %v391
        %v427 = vpop.f32.mrf.mxu0
        %v428 = vadd.f32 0.0, %v427
        %v429 = vpop.f32.mrf.mxu0
        %v430 = vadd.f32 0.0, %v429
        %431 = vmatmul.bf16.gmra.mxu0 %v394
        %v432 = vpop.f32.mrf.mxu0
        %v433 = vadd.f32 0.0, %v432
        %v434 = vpop.f32.mrf.mxu0
        %v435 = vadd.f32 0.0, %v434
        %436 = vmatmul.bf16.gmra.mxu0 %v397
        %v437 = vpop.f32.mrf.mxu0
        %v438 = vadd.f32 0.0, %v437
        %v439 = vpop.f32.mrf.mxu0
        %v440 = vadd.f32 0.0, %v439
        %441 = vmatmul.bf16.gmra.mxu0 %v400
        %v442 = vpop.f32.mrf.mxu0
        %v443 = vadd.f32 0.0, %v442
        %v444 = vpop.f32.mrf.mxu0
        %v445 = vadd.f32 0.0, %v444
        %446 = vmatmul.bf16.gmra.mxu0 %v403
        %v447 = vpop.f32.mrf.mxu0
        %v448 = vadd.f32 0.0, %v447
        %v449 = vpop.f32.mrf.mxu0
        %v450 = vadd.f32 0.0, %v449
        %451 = vmatmul.bf16.gmra.mxu0 %v406
        %v452 = vpop.f32.mrf.mxu0
        %v453 = vadd.f32 0.0, %v452
        %v454 = vpop.f32.mrf.mxu0
        %v455 = vadd.f32 0.0, %v454
        %456 = vdwg.mxu0
        %v459 = vrot.slane %v309, 1
        %v460 = vrot.slane %v309, 2
        %v461 = vrot.slane %v309, 3
        %v462 = vrot.slane %v309, 4
        %v463 = vrot.slane %v309, 5
        %v464 = vrot.slane %v309, 6
        %v465 = vrot.slane %v309, 7
        %v466 = vrot.slane %v310, 1
        %v467 = vrot.slane %v310, 2
        %v468 = vrot.slane %v310, 3
        %v469 = vrot.slane %v310, 4
        %v470 = vrot.slane %v310, 5
        %v471 = vrot.slane %v310, 6
        %v472 = vrot.slane %v310, 7
        %474 = vrot.lane.b32.xlu0 %v418, 96
        %v475 = vpop.permute.xlu0 %474
        %vm476 = vcmask 64512
        %v477 = vsel %vm476, %v418, 0
        %v479 = vsel %vm476, %v475, 0
        %481 = vmatpush.xpose.msra.mxu0 0.0
        %482 = vmatpush.xpose.msra.mxu0 0.0
        %483 = vmatpush.xpose.msra.mxu0 0.0
        %484 = vmatpush.xpose.msra.mxu0 0.0
        %485 = vmatpush.xpose.msra.mxu0 0.0
        %486 = vmatpush.xpose.msra.mxu0 0.0
        %487 = vmatpush.xpose.msra.mxu0 0.0
        %488 = vmatpush.xpose.msra.mxu0 0.0
        %489 = vmatpush.xpose.msra.mxu0 0.0
        %490 = vmatpush.xpose.msra.mxu0 0.0
        %491 = vmatpush.xpose.msra.mxu0 0.0
        %492 = vmatpush.xpose.msra.mxu0 0.0
        %493 = vmatpush.xpose.msra.mxu0 0.0
        %494 = vmatpush.xpose.msra.mxu0 0.0
        %495 = vmatpush.xpose.msra.mxu0 0.0
        %496 = vmatpush.xpose.msra.mxu0 %v479
        %497 = vmatmul.f32.gmra.mxu0 %v477
        %v498 = vpop.f32.mrf.mxu0
        %v499 = vadd.f32 0.0, %v498
        %500 = vdwg.mxu0
        %502 = vrot.lane.b32.xlu0 %v420, 96
        %v503 = vpop.permute.xlu0 %502
        %v504 = vsel %vm476, %v420, 0
        %v506 = vsel %vm476, %v503, 0
        %508 = vmatpush.xpose.msra.mxu0 0.0
        %509 = vmatpush.xpose.msra.mxu0 0.0
        %510 = vmatpush.xpose.msra.mxu0 0.0
        %511 = vmatpush.xpose.msra.mxu0 0.0
        %512 = vmatpush.xpose.msra.mxu0 0.0
        %513 = vmatpush.xpose.msra.mxu0 0.0
        %514 = vmatpush.xpose.msra.mxu0 0.0
        %515 = vmatpush.xpose.msra.mxu0 0.0
        %516 = vmatpush.xpose.msra.mxu0 0.0
        %517 = vmatpush.xpose.msra.mxu0 0.0
        %518 = vmatpush.xpose.msra.mxu0 0.0
        %519 = vmatpush.xpose.msra.mxu0 0.0
        %520 = vmatpush.xpose.msra.mxu0 0.0
        %521 = vmatpush.xpose.msra.mxu0 0.0
        %522 = vmatpush.xpose.msra.mxu0 0.0
        %523 = vmatpush.xpose.msra.mxu0 %v506
        %524 = vmatmul.f32.gmra.mxu0 %v504
        %v525 = vpop.f32.mrf.mxu0
        %v526 = vadd.f32 0.0, %v525
        %527 = vdwg.mxu0
        %529 = vrot.lane.b32.xlu0 %v423, 96
        %v530 = vpop.permute.xlu0 %529
        %v531 = vsel %vm476, %v423, 0
        %v533 = vsel %vm476, %v530, 0
        %535 = vmatpush.xpose.msra.mxu0 0.0
        %536 = vmatpush.xpose.msra.mxu0 0.0
        %537 = vmatpush.xpose.msra.mxu0 0.0
        %538 = vmatpush.xpose.msra.mxu0 0.0
        %539 = vmatpush.xpose.msra.mxu0 0.0
        %540 = vmatpush.xpose.msra.mxu0 0.0
        %541 = vmatpush.xpose.msra.mxu0 0.0
        %542 = vmatpush.xpose.msra.mxu0 0.0
        %543 = vmatpush.xpose.msra.mxu0 0.0
        %544 = vmatpush.xpose.msra.mxu0 0.0
        %545 = vmatpush.xpose.msra.mxu0 0.0
        %546 = vmatpush.xpose.msra.mxu0 0.0
        %547 = vmatpush.xpose.msra.mxu0 0.0
        %548 = vmatpush.xpose.msra.mxu0 0.0
        %549 = vmatpush.xpose.msra.mxu0 0.0
        %550 = vmatpush.xpose.msra.mxu0 %v533
        %551 = vmatmul.f32.gmra.mxu0 %v531
        %v552 = vpop.f32.mrf.mxu0
        %v553 = vadd.f32 0.0, %v552
        %554 = vdwg.mxu0
        %556 = vrot.lane.b32.xlu0 %v425, 96
        %v557 = vpop.permute.xlu0 %556
        %v558 = vsel %vm476, %v425, 0
        %v560 = vsel %vm476, %v557, 0
        %562 = vmatpush.xpose.msra.mxu0 0.0
        %563 = vmatpush.xpose.msra.mxu0 0.0
        %564 = vmatpush.xpose.msra.mxu0 0.0
        %565 = vmatpush.xpose.msra.mxu0 0.0
        %566 = vmatpush.xpose.msra.mxu0 0.0
        %567 = vmatpush.xpose.msra.mxu0 0.0
        %568 = vmatpush.xpose.msra.mxu0 0.0
        %569 = vmatpush.xpose.msra.mxu0 0.0
        %570 = vmatpush.xpose.msra.mxu0 0.0
        %571 = vmatpush.xpose.msra.mxu0 0.0
        %572 = vmatpush.xpose.msra.mxu0 0.0
        %573 = vmatpush.xpose.msra.mxu0 0.0
        %574 = vmatpush.xpose.msra.mxu0 0.0
        %575 = vmatpush.xpose.msra.mxu0 0.0
        %576 = vmatpush.xpose.msra.mxu0 0.0
        %577 = vmatpush.xpose.msra.mxu0 %v560
        %578 = vmatmul.f32.gmra.mxu0 %v558
        %v579 = vpop.f32.mrf.mxu0
        %v580 = vadd.f32 0.0, %v579
        %581 = vdwg.mxu0
        %583 = vrot.lane.b32.xlu0 %v428, 96
        %v584 = vpop.permute.xlu0 %583
        %v585 = vsel %vm476, %v428, 0
        %v587 = vsel %vm476, %v584, 0
        %589 = vmatpush.xpose.msra.mxu0 0.0
        %590 = vmatpush.xpose.msra.mxu0 0.0
        %591 = vmatpush.xpose.msra.mxu0 0.0
        %592 = vmatpush.xpose.msra.mxu0 0.0
        %593 = vmatpush.xpose.msra.mxu0 0.0
        %594 = vmatpush.xpose.msra.mxu0 0.0
        %595 = vmatpush.xpose.msra.mxu0 0.0
        %596 = vmatpush.xpose.msra.mxu0 0.0
        %597 = vmatpush.xpose.msra.mxu0 0.0
        %598 = vmatpush.xpose.msra.mxu0 0.0
        %599 = vmatpush.xpose.msra.mxu0 0.0
        %600 = vmatpush.xpose.msra.mxu0 0.0
        %601 = vmatpush.xpose.msra.mxu0 0.0
        %602 = vmatpush.xpose.msra.mxu0 0.0
        %603 = vmatpush.xpose.msra.mxu0 0.0
        %604 = vmatpush.xpose.msra.mxu0 %v587
        %605 = vmatmul.f32.gmra.mxu0 %v585
        %v606 = vpop.f32.mrf.mxu0
        %v607 = vadd.f32 0.0, %v606
        %608 = vdwg.mxu0
        %610 = vrot.lane.b32.xlu0 %v430, 96
        %v611 = vpop.permute.xlu0 %610
        %v612 = vsel %vm476, %v430, 0
        %v614 = vsel %vm476, %v611, 0
        %616 = vmatpush.xpose.msra.mxu0 0.0
        %617 = vmatpush.xpose.msra.mxu0 0.0
        %618 = vmatpush.xpose.msra.mxu0 0.0
        %619 = vmatpush.xpose.msra.mxu0 0.0
        %620 = vmatpush.xpose.msra.mxu0 0.0
        %621 = vmatpush.xpose.msra.mxu0 0.0
        %622 = vmatpush.xpose.msra.mxu0 0.0
        %623 = vmatpush.xpose.msra.mxu0 0.0
        %624 = vmatpush.xpose.msra.mxu0 0.0
        %625 = vmatpush.xpose.msra.mxu0 0.0
        %626 = vmatpush.xpose.msra.mxu0 0.0
        %627 = vmatpush.xpose.msra.mxu0 0.0
        %628 = vmatpush.xpose.msra.mxu0 0.0
        %629 = vmatpush.xpose.msra.mxu0 0.0
        %630 = vmatpush.xpose.msra.mxu0 0.0
        %631 = vmatpush.xpose.msra.mxu0 %v614
        %632 = vmatmul.f32.gmra.mxu0 %v612
        %v633 = vpop.f32.mrf.mxu0
        %v634 = vadd.f32 0.0, %v633
        %635 = vdwg.mxu0
        %637 = vrot.lane.b32.xlu0 %v433, 96
        %v638 = vpop.permute.xlu0 %637
        %v639 = vsel %vm476, %v433, 0
        %v641 = vsel %vm476, %v638, 0
        %643 = vmatpush.xpose.msra.mxu0 0.0
        %644 = vmatpush.xpose.msra.mxu0 0.0
        %645 = vmatpush.xpose.msra.mxu0 0.0
        %646 = vmatpush.xpose.msra.mxu0 0.0
        %647 = vmatpush.xpose.msra.mxu0 0.0
        %648 = vmatpush.xpose.msra.mxu0 0.0
        %649 = vmatpush.xpose.msra.mxu0 0.0
        %650 = vmatpush.xpose.msra.mxu0 0.0
        %651 = vmatpush.xpose.msra.mxu0 0.0
        %652 = vmatpush.xpose.msra.mxu0 0.0
        %653 = vmatpush.xpose.msra.mxu0 0.0
        %654 = vmatpush.xpose.msra.mxu0 0.0
        %655 = vmatpush.xpose.msra.mxu0 0.0
        %656 = vmatpush.xpose.msra.mxu0 0.0
        %657 = vmatpush.xpose.msra.mxu0 0.0
        %658 = vmatpush.xpose.msra.mxu0 %v641
        %659 = vmatmul.f32.gmra.mxu0 %v639
        %v660 = vpop.f32.mrf.mxu0
        %v661 = vadd.f32 0.0, %v660
        %662 = vdwg.mxu0
        %664 = vrot.lane.b32.xlu0 %v435, 96
        %v665 = vpop.permute.xlu0 %664
        %v666 = vsel %vm476, %v435, 0
        %v668 = vsel %vm476, %v665, 0
        %670 = vmatpush.xpose.msra.mxu0 0.0
        %671 = vmatpush.xpose.msra.mxu0 0.0
        %672 = vmatpush.xpose.msra.mxu0 0.0
        %673 = vmatpush.xpose.msra.mxu0 0.0
        %674 = vmatpush.xpose.msra.mxu0 0.0
        %675 = vmatpush.xpose.msra.mxu0 0.0
        %676 = vmatpush.xpose.msra.mxu0 0.0
        %677 = vmatpush.xpose.msra.mxu0 0.0
        %678 = vmatpush.xpose.msra.mxu0 0.0
        %679 = vmatpush.xpose.msra.mxu0 0.0
        %680 = vmatpush.xpose.msra.mxu0 0.0
        %681 = vmatpush.xpose.msra.mxu0 0.0
        %682 = vmatpush.xpose.msra.mxu0 0.0
        %683 = vmatpush.xpose.msra.mxu0 0.0
        %684 = vmatpush.xpose.msra.mxu0 0.0
        %685 = vmatpush.xpose.msra.mxu0 %v668
        %686 = vmatmul.f32.gmra.mxu0 %v666
        %v687 = vpop.f32.mrf.mxu0
        %v688 = vadd.f32 0.0, %v687
        %689 = vdwg.mxu0
        %691 = vrot.lane.b32.xlu0 %v438, 96
        %v692 = vpop.permute.xlu0 %691
        %v693 = vsel %vm476, %v438, 0
        %v695 = vsel %vm476, %v692, 0
        %697 = vmatpush.xpose.msra.mxu0 0.0
        %698 = vmatpush.xpose.msra.mxu0 0.0
        %699 = vmatpush.xpose.msra.mxu0 0.0
        %700 = vmatpush.xpose.msra.mxu0 0.0
        %701 = vmatpush.xpose.msra.mxu0 0.0
        %702 = vmatpush.xpose.msra.mxu0 0.0
        %703 = vmatpush.xpose.msra.mxu0 0.0
        %704 = vmatpush.xpose.msra.mxu0 0.0
        %705 = vmatpush.xpose.msra.mxu0 0.0
        %706 = vmatpush.xpose.msra.mxu0 0.0
        %707 = vmatpush.xpose.msra.mxu0 0.0
        %708 = vmatpush.xpose.msra.mxu0 0.0
        %709 = vmatpush.xpose.msra.mxu0 0.0
        %710 = vmatpush.xpose.msra.mxu0 0.0
        %711 = vmatpush.xpose.msra.mxu0 0.0
        %712 = vmatpush.xpose.msra.mxu0 %v695
        %713 = vmatmul.f32.gmra.mxu0 %v693
        %v714 = vpop.f32.mrf.mxu0
        %v715 = vadd.f32 0.0, %v714
        %716 = vdwg.mxu0
        %718 = vrot.lane.b32.xlu0 %v440, 96
        %v719 = vpop.permute.xlu0 %718
        %v720 = vsel %vm476, %v440, 0
        %v722 = vsel %vm476, %v719, 0
        %724 = vmatpush.xpose.msra.mxu0 0.0
        %725 = vmatpush.xpose.msra.mxu0 0.0
        %726 = vmatpush.xpose.msra.mxu0 0.0
        %727 = vmatpush.xpose.msra.mxu0 0.0
        %728 = vmatpush.xpose.msra.mxu0 0.0
        %729 = vmatpush.xpose.msra.mxu0 0.0
        %730 = vmatpush.xpose.msra.mxu0 0.0
        %731 = vmatpush.xpose.msra.mxu0 0.0
        %732 = vmatpush.xpose.msra.mxu0 0.0
        %733 = vmatpush.xpose.msra.mxu0 0.0
        %734 = vmatpush.xpose.msra.mxu0 0.0
        %735 = vmatpush.xpose.msra.mxu0 0.0
        %736 = vmatpush.xpose.msra.mxu0 0.0
        %737 = vmatpush.xpose.msra.mxu0 0.0
        %738 = vmatpush.xpose.msra.mxu0 0.0
        %739 = vmatpush.xpose.msra.mxu0 %v722
        %740 = vmatmul.f32.gmra.mxu0 %v720
        %v741 = vpop.f32.mrf.mxu0
        %v742 = vadd.f32 0.0, %v741
        %743 = vdwg.mxu0
        %745 = vrot.lane.b32.xlu0 %v443, 96
        %v746 = vpop.permute.xlu0 %745
        %v747 = vsel %vm476, %v443, 0
        %v749 = vsel %vm476, %v746, 0
        %751 = vmatpush.xpose.msra.mxu0 0.0
        %752 = vmatpush.xpose.msra.mxu0 0.0
        %753 = vmatpush.xpose.msra.mxu0 0.0
        %754 = vmatpush.xpose.msra.mxu0 0.0
        %755 = vmatpush.xpose.msra.mxu0 0.0
        %756 = vmatpush.xpose.msra.mxu0 0.0
        %757 = vmatpush.xpose.msra.mxu0 0.0
        %758 = vmatpush.xpose.msra.mxu0 0.0
        %759 = vmatpush.xpose.msra.mxu0 0.0
        %760 = vmatpush.xpose.msra.mxu0 0.0
        %761 = vmatpush.xpose.msra.mxu0 0.0
        %762 = vmatpush.xpose.msra.mxu0 0.0
        %763 = vmatpush.xpose.msra.mxu0 0.0
        %764 = vmatpush.xpose.msra.mxu0 0.0
        %765 = vmatpush.xpose.msra.mxu0 0.0
        %766 = vmatpush.xpose.msra.mxu0 %v749
        %767 = vmatmul.f32.gmra.mxu0 %v747
        %v768 = vpop.f32.mrf.mxu0
        %v769 = vadd.f32 0.0, %v768
        %770 = vdwg.mxu0
        %772 = vrot.lane.b32.xlu0 %v445, 96
        %v773 = vpop.permute.xlu0 %772
        %v774 = vsel %vm476, %v445, 0
        %v776 = vsel %vm476, %v773, 0
        %778 = vmatpush.xpose.msra.mxu0 0.0
        %779 = vmatpush.xpose.msra.mxu0 0.0
        %780 = vmatpush.xpose.msra.mxu0 0.0
        %781 = vmatpush.xpose.msra.mxu0 0.0
        %782 = vmatpush.xpose.msra.mxu0 0.0
        %783 = vmatpush.xpose.msra.mxu0 0.0
        %784 = vmatpush.xpose.msra.mxu0 0.0
        %785 = vmatpush.xpose.msra.mxu0 0.0
        %786 = vmatpush.xpose.msra.mxu0 0.0
        %787 = vmatpush.xpose.msra.mxu0 0.0
        %788 = vmatpush.xpose.msra.mxu0 0.0
        %789 = vmatpush.xpose.msra.mxu0 0.0
        %790 = vmatpush.xpose.msra.mxu0 0.0
        %791 = vmatpush.xpose.msra.mxu0 0.0
        %792 = vmatpush.xpose.msra.mxu0 0.0
        %793 = vmatpush.xpose.msra.mxu0 %v776
        %794 = vmatmul.f32.gmra.mxu0 %v774
        %v795 = vpop.f32.mrf.mxu0
        %v796 = vadd.f32 0.0, %v795
        %797 = vdwg.mxu0
        %799 = vrot.lane.b32.xlu0 %v448, 96
        %v800 = vpop.permute.xlu0 %799
        %v801 = vsel %vm476, %v448, 0
        %v803 = vsel %vm476, %v800, 0
        %805 = vmatpush.xpose.msra.mxu0 0.0
        %806 = vmatpush.xpose.msra.mxu0 0.0
        %807 = vmatpush.xpose.msra.mxu0 0.0
        %808 = vmatpush.xpose.msra.mxu0 0.0
        %809 = vmatpush.xpose.msra.mxu0 0.0
        %810 = vmatpush.xpose.msra.mxu0 0.0
        %811 = vmatpush.xpose.msra.mxu0 0.0
        %812 = vmatpush.xpose.msra.mxu0 0.0
        %813 = vmatpush.xpose.msra.mxu0 0.0
        %814 = vmatpush.xpose.msra.mxu0 0.0
        %815 = vmatpush.xpose.msra.mxu0 0.0
        %816 = vmatpush.xpose.msra.mxu0 0.0
        %817 = vmatpush.xpose.msra.mxu0 0.0
        %818 = vmatpush.xpose.msra.mxu0 0.0
        %819 = vmatpush.xpose.msra.mxu0 0.0
        %820 = vmatpush.xpose.msra.mxu0 %v803
        %821 = vmatmul.f32.gmra.mxu0 %v801
        %v822 = vpop.f32.mrf.mxu0
        %v823 = vadd.f32 0.0, %v822
        %824 = vdwg.mxu0
        %826 = vrot.lane.b32.xlu0 %v450, 96
        %v827 = vpop.permute.xlu0 %826
        %v828 = vsel %vm476, %v450, 0
        %v830 = vsel %vm476, %v827, 0
        %832 = vmatpush.xpose.msra.mxu0 0.0
        %833 = vmatpush.xpose.msra.mxu0 0.0
        %834 = vmatpush.xpose.msra.mxu0 0.0
        %835 = vmatpush.xpose.msra.mxu0 0.0
        %836 = vmatpush.xpose.msra.mxu0 0.0
        %837 = vmatpush.xpose.msra.mxu0 0.0
        %838 = vmatpush.xpose.msra.mxu0 0.0
        %839 = vmatpush.xpose.msra.mxu0 0.0
        %840 = vmatpush.xpose.msra.mxu0 0.0
        %841 = vmatpush.xpose.msra.mxu0 0.0
        %842 = vmatpush.xpose.msra.mxu0 0.0
        %843 = vmatpush.xpose.msra.mxu0 0.0
        %844 = vmatpush.xpose.msra.mxu0 0.0
        %845 = vmatpush.xpose.msra.mxu0 0.0
        %846 = vmatpush.xpose.msra.mxu0 0.0
        %847 = vmatpush.xpose.msra.mxu0 %v830
        %848 = vmatmul.f32.gmra.mxu0 %v828
        %v849 = vpop.f32.mrf.mxu0
        %v850 = vadd.f32 0.0, %v849
        %851 = vdwg.mxu0
        %853 = vrot.lane.b32.xlu0 %v453, 96
        %v854 = vpop.permute.xlu0 %853
        %v855 = vsel %vm476, %v453, 0
        %v857 = vsel %vm476, %v854, 0
        %859 = vmatpush.xpose.msra.mxu0 0.0
        %860 = vmatpush.xpose.msra.mxu0 0.0
        %861 = vmatpush.xpose.msra.mxu0 0.0
        %862 = vmatpush.xpose.msra.mxu0 0.0
        %863 = vmatpush.xpose.msra.mxu0 0.0
        %864 = vmatpush.xpose.msra.mxu0 0.0
        %865 = vmatpush.xpose.msra.mxu0 0.0
        %866 = vmatpush.xpose.msra.mxu0 0.0
        %867 = vmatpush.xpose.msra.mxu0 0.0
        %868 = vmatpush.xpose.msra.mxu0 0.0
        %869 = vmatpush.xpose.msra.mxu0 0.0
        %870 = vmatpush.xpose.msra.mxu0 0.0
        %871 = vmatpush.xpose.msra.mxu0 0.0
        %872 = vmatpush.xpose.msra.mxu0 0.0
        %873 = vmatpush.xpose.msra.mxu0 0.0
        %874 = vmatpush.xpose.msra.mxu0 %v857
        %875 = vmatmul.f32.gmra.mxu0 %v855
        %v876 = vpop.f32.mrf.mxu0
        %v877 = vadd.f32 0.0, %v876
        %878 = vdwg.mxu0
        %880 = vrot.lane.b32.xlu0 %v455, 96
        %v881 = vpop.permute.xlu0 %880
        %v882 = vsel %vm476, %v455, 0
        %v884 = vsel %vm476, %v881, 0
        %886 = vmatpush.xpose.msra.mxu0 0.0
        %887 = vmatpush.xpose.msra.mxu0 0.0
        %888 = vmatpush.xpose.msra.mxu0 0.0
        %889 = vmatpush.xpose.msra.mxu0 0.0
        %890 = vmatpush.xpose.msra.mxu0 0.0
        %891 = vmatpush.xpose.msra.mxu0 0.0
        %892 = vmatpush.xpose.msra.mxu0 0.0
        %893 = vmatpush.xpose.msra.mxu0 0.0
        %894 = vmatpush.xpose.msra.mxu0 0.0
        %895 = vmatpush.xpose.msra.mxu0 0.0
        %896 = vmatpush.xpose.msra.mxu0 0.0
        %897 = vmatpush.xpose.msra.mxu0 0.0
        %898 = vmatpush.xpose.msra.mxu0 0.0
        %899 = vmatpush.xpose.msra.mxu0 0.0
        %900 = vmatpush.xpose.msra.mxu0 0.0
        %901 = vmatpush.xpose.msra.mxu0 %v884
        %902 = vmatmul.f32.gmra.mxu0 %v882
        %v903 = vpop.f32.mrf.mxu0
        %v904 = vadd.f32 0.0, %v903
        %905 = vdwg.mxu0
        %v906 = vmul.f32 %v499, 0.35355338
        %v907 = vmul.f32 %v526, 0.35355338
        %v908 = vmul.f32 %v553, 0.35355338
        %v909 = vmul.f32 %v580, 0.35355338
        %v910 = vmul.f32 %v607, 0.35355338
        %v911 = vmul.f32 %v634, 0.35355338
        %v912 = vmul.f32 %v661, 0.35355338
        %v913 = vmul.f32 %v688, 0.35355338
        %v914 = vmul.f32 %v715, 0.35355338
        %v915 = vmul.f32 %v742, 0.35355338
        %v916 = vmul.f32 %v769, 0.35355338
        %v917 = vmul.f32 %v796, 0.35355338
        %v918 = vmul.f32 %v823, 0.35355338
        %v919 = vmul.f32 %v850, 0.35355338
        %v920 = vmul.f32 %v877, 0.35355338
        %v921 = vmul.f32 %v904, 0.35355338
        %v922 = vperm.slane %v309, 0
        %v923 = vperm.slane %v459, 0
        %v924 = vperm.slane %v460, 0
        %v925 = vperm.slane %v461, 0
        %v926 = vperm.slane %v462, 0
        %v927 = vperm.slane %v463, 0
        %v928 = vperm.slane %v464, 0
        %v929 = vperm.slane %v465, 0
        %v930 = vperm.slane %v310, 0
        %v931 = vperm.slane %v466, 0
        %v932 = vperm.slane %v467, 0
        %v933 = vperm.slane %v468, 0
        %v934 = vperm.slane %v469, 0
        %v935 = vperm.slane %v470, 0
        %v936 = vperm.slane %v471, 0
        %v937 = vperm.slane %v472, 0
        %v954 = vadd.f32 %v906, %v922
        %v955 = vadd.f32 %v907, %v923
        %v956 = vadd.f32 %v908, %v924
        %v957 = vadd.f32 %v909, %v925
        %v958 = vadd.f32 %v910, %v926
        %v959 = vadd.f32 %v911, %v927
        %v960 = vadd.f32 %v912, %v928
        %v961 = vadd.f32 %v913, %v929
        %v962 = vadd.f32 %v914, %v930
        %v963 = vadd.f32 %v915, %v931
        %v964 = vadd.f32 %v916, %v932
        %v965 = vadd.f32 %v917, %v933
        %v966 = vadd.f32 %v918, %v934
        %v967 = vadd.f32 %v919, %v935
        %v968 = vadd.f32 %v920, %v936
        %v969 = vadd.f32 %v921, %v937
        %v970 = vsel %vm476, %v954, -inf
        %971 = vmax.xlane.f32.xlu0 %v970
        %v972 = vpop.xlane.xlu0 %971
        %v973 = vsel %vm476, %v955, -inf
        %974 = vmax.xlane.f32.xlu0 %v973
        %v975 = vpop.xlane.xlu0 %974
        %v976 = vsel %vm476, %v956, -inf
        %977 = vmax.xlane.f32.xlu0 %v976
        %v978 = vpop.xlane.xlu0 %977
        %v979 = vsel %vm476, %v957, -inf
        %980 = vmax.xlane.f32.xlu0 %v979
        %v981 = vpop.xlane.xlu0 %980
        %v982 = vsel %vm476, %v958, -inf
        %983 = vmax.xlane.f32.xlu0 %v982
        %v984 = vpop.xlane.xlu0 %983
        %v985 = vsel %vm476, %v959, -inf
        %986 = vmax.xlane.f32.xlu0 %v985
        %v987 = vpop.xlane.xlu0 %986
        %v988 = vsel %vm476, %v960, -inf
        %989 = vmax.xlane.f32.xlu0 %v988
        %v990 = vpop.xlane.xlu0 %989
        %v991 = vsel %vm476, %v961, -inf
        %992 = vmax.xlane.f32.xlu0 %v991
        %v993 = vpop.xlane.xlu0 %992
        %v994 = vsel %vm476, %v962, -inf
        %995 = vmax.xlane.f32.xlu0 %v994
        %v996 = vpop.xlane.xlu0 %995
        %v997 = vsel %vm476, %v963, -inf
        %998 = vmax.xlane.f32.xlu0 %v997
        %v999 = vpop.xlane.xlu0 %998
        %v1000 = vsel %vm476, %v964, -inf
        %1001 = vmax.xlane.f32.xlu0 %v1000
        %v1002 = vpop.xlane.xlu0 %1001
        %v1003 = vsel %vm476, %v965, -inf
        %1004 = vmax.xlane.f32.xlu0 %v1003
        %v1005 = vpop.xlane.xlu0 %1004
        %v1006 = vsel %vm476, %v966, -inf
        %1007 = vmax.xlane.f32.xlu0 %v1006
        %v1008 = vpop.xlane.xlu0 %1007
        %v1009 = vsel %vm476, %v967, -inf
        %1010 = vmax.xlane.f32.xlu0 %v1009
        %v1011 = vpop.xlane.xlu0 %1010
        %v1012 = vsel %vm476, %v968, -inf
        %1013 = vmax.xlane.f32.xlu0 %v1012
        %v1014 = vpop.xlane.xlu0 %1013
        %v1015 = vsel %vm476, %v969, -inf
        %1016 = vmax.xlane.f32.xlu0 %v1015
        %v1017 = vpop.xlane.xlu0 %1016
        %v1018 = vsub.f32 %v954, %v972
        %v1019 = vsub.f32 %v955, %v975
        %v1020 = vsub.f32 %v956, %v978
        %v1021 = vsub.f32 %v957, %v981
        %v1022 = vsub.f32 %v958, %v984
        %v1023 = vsub.f32 %v959, %v987
        %v1024 = vsub.f32 %v960, %v990
        %v1025 = vsub.f32 %v961, %v993
        %v1026 = vsub.f32 %v962, %v996
        %v1027 = vsub.f32 %v963, %v999
        %v1028 = vsub.f32 %v964, %v1002
        %v1029 = vsub.f32 %v965, %v1005
        %v1030 = vsub.f32 %v966, %v1008
        %v1031 = vsub.f32 %v967, %v1011
        %v1032 = vsub.f32 %v968, %v1014
        %v1033 = vsub.f32 %v969, %v1017
        %v1034 = vmul.f32 %v1018, 1.442695
        %v1035 = vpow.pop %v1034
        %v1036 = vmul.f32 %v1019, 1.442695
        %v1037 = vpow.pop %v1036
        %v1038 = vmul.f32 %v1020, 1.442695
        %v1039 = vpow.pop %v1038
        %v1040 = vmul.f32 %v1021, 1.442695
        %v1041 = vpow.pop %v1040
        %v1042 = vmul.f32 %v1022, 1.442695
        %v1043 = vpow.pop %v1042
        %v1044 = vmul.f32 %v1023, 1.442695
        %v1045 = vpow.pop %v1044
        %v1046 = vmul.f32 %v1024, 1.442695
        %v1047 = vpow.pop %v1046
        %v1048 = vmul.f32 %v1025, 1.442695
        %v1049 = vpow.pop %v1048
        %v1050 = vmul.f32 %v1026, 1.442695
        %v1051 = vpow.pop %v1050
        %v1052 = vmul.f32 %v1027, 1.442695
        %v1053 = vpow.pop %v1052
        %v1054 = vmul.f32 %v1028, 1.442695
        %v1055 = vpow.pop %v1054
        %v1056 = vmul.f32 %v1029, 1.442695
        %v1057 = vpow.pop %v1056
        %v1058 = vmul.f32 %v1030, 1.442695
        %v1059 = vpow.pop %v1058
        %v1060 = vmul.f32 %v1031, 1.442695
        %v1061 = vpow.pop %v1060
        %v1062 = vmul.f32 %v1032, 1.442695
        %v1063 = vpow.pop %v1062
        %v1064 = vmul.f32 %v1033, 1.442695
        %v1065 = vpow.pop %v1064
        %v1066 = vsel %vm476, %v1035, 0.0
        %1067 = vadd.xlane.f32.xlu0 %v1066
        %v1068 = vpop.xlane.xlu0 %1067
        %v1069 = vsel %vm476, %v1037, 0.0
        %1070 = vadd.xlane.f32.xlu0 %v1069
        %v1071 = vpop.xlane.xlu0 %1070
        %v1072 = vsel %vm476, %v1039, 0.0
        %1073 = vadd.xlane.f32.xlu0 %v1072
        %v1074 = vpop.xlane.xlu0 %1073
        %v1075 = vsel %vm476, %v1041, 0.0
        %1076 = vadd.xlane.f32.xlu0 %v1075
        %v1077 = vpop.xlane.xlu0 %1076
        %v1078 = vsel %vm476, %v1043, 0.0
        %1079 = vadd.xlane.f32.xlu0 %v1078
        %v1080 = vpop.xlane.xlu0 %1079
        %v1081 = vsel %vm476, %v1045, 0.0
        %1082 = vadd.xlane.f32.xlu0 %v1081
        %v1083 = vpop.xlane.xlu0 %1082
        %v1084 = vsel %vm476, %v1047, 0.0
        %1085 = vadd.xlane.f32.xlu0 %v1084
        %v1086 = vpop.xlane.xlu0 %1085
        %v1087 = vsel %vm476, %v1049, 0.0
        %1088 = vadd.xlane.f32.xlu0 %v1087
        %v1089 = vpop.xlane.xlu0 %1088
        %v1090 = vsel %vm476, %v1051, 0.0
        %1091 = vadd.xlane.f32.xlu0 %v1090
        %v1092 = vpop.xlane.xlu0 %1091
        %v1093 = vsel %vm476, %v1053, 0.0
        %1094 = vadd.xlane.f32.xlu0 %v1093
        %v1095 = vpop.xlane.xlu0 %1094
        %v1096 = vsel %vm476, %v1055, 0.0
        %1097 = vadd.xlane.f32.xlu0 %v1096
        %v1098 = vpop.xlane.xlu0 %1097
        %v1099 = vsel %vm476, %v1057, 0.0
        %1100 = vadd.xlane.f32.xlu0 %v1099
        %v1101 = vpop.xlane.xlu0 %1100
        %v1102 = vsel %vm476, %v1059, 0.0
        %1103 = vadd.xlane.f32.xlu0 %v1102
        %v1104 = vpop.xlane.xlu0 %1103
        %v1105 = vsel %vm476, %v1061, 0.0
        %1106 = vadd.xlane.f32.xlu0 %v1105
        %v1107 = vpop.xlane.xlu0 %1106
        %v1108 = vsel %vm476, %v1063, 0.0
        %1109 = vadd.xlane.f32.xlu0 %v1108
        %v1110 = vpop.xlane.xlu0 %1109
        %v1111 = vsel %vm476, %v1065, 0.0
        %1112 = vadd.xlane.f32.xlu0 %v1111
        %v1113 = vpop.xlane.xlu0 %1112
        %v1114 = vrcp.pop %v1068
        %v1115 = vrcp.pop %v1071
        %v1116 = vrcp.pop %v1074
        %v1117 = vrcp.pop %v1077
        %v1118 = vrcp.pop %v1080
        %v1119 = vrcp.pop %v1083
        %v1120 = vrcp.pop %v1086
        %v1121 = vrcp.pop %v1089
        %v1122 = vrcp.pop %v1092
        %v1123 = vrcp.pop %v1095
        %v1124 = vrcp.pop %v1098
        %v1125 = vrcp.pop %v1101
        %v1126 = vrcp.pop %v1104
        %v1127 = vrcp.pop %v1107
        %v1128 = vrcp.pop %v1110
        %v1129 = vrcp.pop %v1113
        %v1130 = vmul.f32 %v1035, %v1114
        %v1131 = vmul.f32 %v1037, %v1115
        %v1132 = vmul.f32 %v1039, %v1116
        %v1133 = vmul.f32 %v1041, %v1117
        %v1134 = vmul.f32 %v1043, %v1118
        %v1135 = vmul.f32 %v1045, %v1119
        %v1136 = vmul.f32 %v1047, %v1120
        %v1137 = vmul.f32 %v1049, %v1121
        %v1138 = vmul.f32 %v1051, %v1122
        %v1139 = vmul.f32 %v1053, %v1123
        %v1140 = vmul.f32 %v1055, %v1124
        %v1141 = vmul.f32 %v1057, %v1125
        %v1142 = vmul.f32 %v1059, %v1126
        %v1143 = vmul.f32 %v1061, %v1127
        %v1144 = vmul.f32 %v1063, %v1128
        %v1145 = vmul.f32 %v1065, %v1129
        %1146 = vrot.lane.b32.xlu0 %v418, 64
        %v1147 = vpop.permute.xlu0 %1146
        %v1150 = vsel %vm476, %v1130, 0
        %1152 = vmatpush.msra.mxu0 0.0
        %1153 = vmatpush.msra.mxu0 0.0
        %1154 = vmatpush.msra.mxu0 0.0
        %1155 = vmatpush.msra.mxu0 0.0
        %1156 = vmatpush.msra.mxu0 0.0
        %1157 = vmatpush.msra.mxu0 0.0
        %1158 = vmatpush.msra.mxu0 0.0
        %1159 = vmatpush.msra.mxu0 0.0
        %1160 = vmatpush.msra.mxu0 0.0
        %1161 = vmatpush.msra.mxu0 0.0
        %1162 = vmatpush.msra.mxu0 0.0
        %1163 = vmatpush.msra.mxu0 0.0
        %1164 = vmatpush.msra.mxu0 0.0
        %1165 = vmatpush.msra.mxu0 0.0
        %1166 = vmatpush.msra.mxu0 0.0
        %1167 = vmatpush.msra.mxu0 %v1147
        %1168 = vmatmul.f32.gmra.mxu0 %v1150
        %v1169 = vpop.f32.mrf.mxu0
        %v1170 = vadd.f32 0.0, %v1169
        %1171 = vdwg.mxu0
        %1172 = vrot.lane.b32.xlu0 %v420, 64
        %v1173 = vpop.permute.xlu0 %1172
        %v1176 = vsel %vm476, %v1131, 0
        %1178 = vmatpush.msra.mxu0 0.0
        %1179 = vmatpush.msra.mxu0 0.0
        %1180 = vmatpush.msra.mxu0 0.0
        %1181 = vmatpush.msra.mxu0 0.0
        %1182 = vmatpush.msra.mxu0 0.0
        %1183 = vmatpush.msra.mxu0 0.0
        %1184 = vmatpush.msra.mxu0 0.0
        %1185 = vmatpush.msra.mxu0 0.0
        %1186 = vmatpush.msra.mxu0 0.0
        %1187 = vmatpush.msra.mxu0 0.0
        %1188 = vmatpush.msra.mxu0 0.0
        %1189 = vmatpush.msra.mxu0 0.0
        %1190 = vmatpush.msra.mxu0 0.0
        %1191 = vmatpush.msra.mxu0 0.0
        %1192 = vmatpush.msra.mxu0 0.0
        %1193 = vmatpush.msra.mxu0 %v1173
        %1194 = vmatmul.f32.gmra.mxu0 %v1176
        %v1195 = vpop.f32.mrf.mxu0
        %v1196 = vadd.f32 0.0, %v1195
        %1197 = vdwg.mxu0
        %1198 = vrot.lane.b32.xlu0 %v423, 64
        %v1199 = vpop.permute.xlu0 %1198
        %v1202 = vsel %vm476, %v1132, 0
        %1204 = vmatpush.msra.mxu0 0.0
        %1205 = vmatpush.msra.mxu0 0.0
        %1206 = vmatpush.msra.mxu0 0.0
        %1207 = vmatpush.msra.mxu0 0.0
        %1208 = vmatpush.msra.mxu0 0.0
        %1209 = vmatpush.msra.mxu0 0.0
        %1210 = vmatpush.msra.mxu0 0.0
        %1211 = vmatpush.msra.mxu0 0.0
        %1212 = vmatpush.msra.mxu0 0.0
        %1213 = vmatpush.msra.mxu0 0.0
        %1214 = vmatpush.msra.mxu0 0.0
        %1215 = vmatpush.msra.mxu0 0.0
        %1216 = vmatpush.msra.mxu0 0.0
        %1217 = vmatpush.msra.mxu0 0.0
        %1218 = vmatpush.msra.mxu0 0.0
        %1219 = vmatpush.msra.mxu0 %v1199
        %1220 = vmatmul.f32.gmra.mxu0 %v1202
        %v1221 = vpop.f32.mrf.mxu0
        %v1222 = vadd.f32 0.0, %v1221
        %1223 = vdwg.mxu0
        %1224 = vrot.lane.b32.xlu0 %v425, 64
        %v1225 = vpop.permute.xlu0 %1224
        %v1228 = vsel %vm476, %v1133, 0
        %1230 = vmatpush.msra.mxu0 0.0
        %1231 = vmatpush.msra.mxu0 0.0
        %1232 = vmatpush.msra.mxu0 0.0
        %1233 = vmatpush.msra.mxu0 0.0
        %1234 = vmatpush.msra.mxu0 0.0
        %1235 = vmatpush.msra.mxu0 0.0
        %1236 = vmatpush.msra.mxu0 0.0
        %1237 = vmatpush.msra.mxu0 0.0
        %1238 = vmatpush.msra.mxu0 0.0
        %1239 = vmatpush.msra.mxu0 0.0
        %1240 = vmatpush.msra.mxu0 0.0
        %1241 = vmatpush.msra.mxu0 0.0
        %1242 = vmatpush.msra.mxu0 0.0
        %1243 = vmatpush.msra.mxu0 0.0
        %1244 = vmatpush.msra.mxu0 0.0
        %1245 = vmatpush.msra.mxu0 %v1225
        %1246 = vmatmul.f32.gmra.mxu0 %v1228
        %v1247 = vpop.f32.mrf.mxu0
        %v1248 = vadd.f32 0.0, %v1247
        %1249 = vdwg.mxu0
        %1250 = vrot.lane.b32.xlu0 %v428, 64
        %v1251 = vpop.permute.xlu0 %1250
        %v1254 = vsel %vm476, %v1134, 0
        %1256 = vmatpush.msra.mxu0 0.0
        %1257 = vmatpush.msra.mxu0 0.0
        %1258 = vmatpush.msra.mxu0 0.0
        %1259 = vmatpush.msra.mxu0 0.0
        %1260 = vmatpush.msra.mxu0 0.0
        %1261 = vmatpush.msra.mxu0 0.0
        %1262 = vmatpush.msra.mxu0 0.0
        %1263 = vmatpush.msra.mxu0 0.0
        %1264 = vmatpush.msra.mxu0 0.0
        %1265 = vmatpush.msra.mxu0 0.0
        %1266 = vmatpush.msra.mxu0 0.0
        %1267 = vmatpush.msra.mxu0 0.0
        %1268 = vmatpush.msra.mxu0 0.0
        %1269 = vmatpush.msra.mxu0 0.0
        %1270 = vmatpush.msra.mxu0 0.0
        %1271 = vmatpush.msra.mxu0 %v1251
        %1272 = vmatmul.f32.gmra.mxu0 %v1254
        %v1273 = vpop.f32.mrf.mxu0
        %v1274 = vadd.f32 0.0, %v1273
        %1275 = vdwg.mxu0
        %1276 = vrot.lane.b32.xlu0 %v430, 64
        %v1277 = vpop.permute.xlu0 %1276
        %v1280 = vsel %vm476, %v1135, 0
        %1282 = vmatpush.msra.mxu0 0.0
        %1283 = vmatpush.msra.mxu0 0.0
        %1284 = vmatpush.msra.mxu0 0.0
        %1285 = vmatpush.msra.mxu0 0.0
        %1286 = vmatpush.msra.mxu0 0.0
        %1287 = vmatpush.msra.mxu0 0.0
        %1288 = vmatpush.msra.mxu0 0.0
        %1289 = vmatpush.msra.mxu0 0.0
        %1290 = vmatpush.msra.mxu0 0.0
        %1291 = vmatpush.msra.mxu0 0.0
        %1292 = vmatpush.msra.mxu0 0.0
        %1293 = vmatpush.msra.mxu0 0.0
        %1294 = vmatpush.msra.mxu0 0.0
        %1295 = vmatpush.msra.mxu0 0.0
        %1296 = vmatpush.msra.mxu0 0.0
        %1297 = vmatpush.msra.mxu0 %v1277
        %1298 = vmatmul.f32.gmra.mxu0 %v1280
        %v1299 = vpop.f32.mrf.mxu0
        %v1300 = vadd.f32 0.0, %v1299
        %1301 = vdwg.mxu0
        %1302 = vrot.lane.b32.xlu0 %v433, 64
        %v1303 = vpop.permute.xlu0 %1302
        %v1306 = vsel %vm476, %v1136, 0
        %1308 = vmatpush.msra.mxu0 0.0
        %1309 = vmatpush.msra.mxu0 0.0
        %1310 = vmatpush.msra.mxu0 0.0
        %1311 = vmatpush.msra.mxu0 0.0
        %1312 = vmatpush.msra.mxu0 0.0
        %1313 = vmatpush.msra.mxu0 0.0
        %1314 = vmatpush.msra.mxu0 0.0
        %1315 = vmatpush.msra.mxu0 0.0
        %1316 = vmatpush.msra.mxu0 0.0
        %1317 = vmatpush.msra.mxu0 0.0
        %1318 = vmatpush.msra.mxu0 0.0
        %1319 = vmatpush.msra.mxu0 0.0
        %1320 = vmatpush.msra.mxu0 0.0
        %1321 = vmatpush.msra.mxu0 0.0
        %1322 = vmatpush.msra.mxu0 0.0
        %1323 = vmatpush.msra.mxu0 %v1303
        %1324 = vmatmul.f32.gmra.mxu0 %v1306
        %v1325 = vpop.f32.mrf.mxu0
        %v1326 = vadd.f32 0.0, %v1325
        %1327 = vdwg.mxu0
        %1328 = vrot.lane.b32.xlu0 %v435, 64
        %v1329 = vpop.permute.xlu0 %1328
        %v1332 = vsel %vm476, %v1137, 0
        %1334 = vmatpush.msra.mxu0 0.0
        %1335 = vmatpush.msra.mxu0 0.0
        %1336 = vmatpush.msra.mxu0 0.0
        %1337 = vmatpush.msra.mxu0 0.0
        %1338 = vmatpush.msra.mxu0 0.0
        %1339 = vmatpush.msra.mxu0 0.0
        %1340 = vmatpush.msra.mxu0 0.0
        %1341 = vmatpush.msra.mxu0 0.0
        %1342 = vmatpush.msra.mxu0 0.0
        %1343 = vmatpush.msra.mxu0 0.0
        %1344 = vmatpush.msra.mxu0 0.0
        %1345 = vmatpush.msra.mxu0 0.0
        %1346 = vmatpush.msra.mxu0 0.0
        %1347 = vmatpush.msra.mxu0 0.0
        %1348 = vmatpush.msra.mxu0 0.0
        %1349 = vmatpush.msra.mxu0 %v1329
        %1350 = vmatmul.f32.gmra.mxu0 %v1332
        %v1351 = vpop.f32.mrf.mxu0
        %v1352 = vadd.f32 0.0, %v1351
        %1353 = vdwg.mxu0
        %1354 = vrot.lane.b32.xlu0 %v438, 64
        %v1355 = vpop.permute.xlu0 %1354
        %v1358 = vsel %vm476, %v1138, 0
        %1360 = vmatpush.msra.mxu0 0.0
        %1361 = vmatpush.msra.mxu0 0.0
        %1362 = vmatpush.msra.mxu0 0.0
        %1363 = vmatpush.msra.mxu0 0.0
        %1364 = vmatpush.msra.mxu0 0.0
        %1365 = vmatpush.msra.mxu0 0.0
        %1366 = vmatpush.msra.mxu0 0.0
        %1367 = vmatpush.msra.mxu0 0.0
        %1368 = vmatpush.msra.mxu0 0.0
        %1369 = vmatpush.msra.mxu0 0.0
        %1370 = vmatpush.msra.mxu0 0.0
        %1371 = vmatpush.msra.mxu0 0.0
        %1372 = vmatpush.msra.mxu0 0.0
        %1373 = vmatpush.msra.mxu0 0.0
        %1374 = vmatpush.msra.mxu0 0.0
        %1375 = vmatpush.msra.mxu0 %v1355
        %1376 = vmatmul.f32.gmra.mxu0 %v1358
        %v1377 = vpop.f32.mrf.mxu0
        %v1378 = vadd.f32 0.0, %v1377
        %1379 = vdwg.mxu0
        %1380 = vrot.lane.b32.xlu0 %v440, 64
        %v1381 = vpop.permute.xlu0 %1380
        %v1384 = vsel %vm476, %v1139, 0
        %1386 = vmatpush.msra.mxu0 0.0
        %1387 = vmatpush.msra.mxu0 0.0
        %1388 = vmatpush.msra.mxu0 0.0
        %1389 = vmatpush.msra.mxu0 0.0
        %1390 = vmatpush.msra.mxu0 0.0
        %1391 = vmatpush.msra.mxu0 0.0
        %1392 = vmatpush.msra.mxu0 0.0
        %1393 = vmatpush.msra.mxu0 0.0
        %1394 = vmatpush.msra.mxu0 0.0
        %1395 = vmatpush.msra.mxu0 0.0
        %1396 = vmatpush.msra.mxu0 0.0
        %1397 = vmatpush.msra.mxu0 0.0
        %1398 = vmatpush.msra.mxu0 0.0
        %1399 = vmatpush.msra.mxu0 0.0
        %1400 = vmatpush.msra.mxu0 0.0
        %1401 = vmatpush.msra.mxu0 %v1381
        %1402 = vmatmul.f32.gmra.mxu0 %v1384
        %v1403 = vpop.f32.mrf.mxu0
        %v1404 = vadd.f32 0.0, %v1403
        %1405 = vdwg.mxu0
        %1406 = vrot.lane.b32.xlu0 %v443, 64
        %v1407 = vpop.permute.xlu0 %1406
        %v1410 = vsel %vm476, %v1140, 0
        %1412 = vmatpush.msra.mxu0 0.0
        %1413 = vmatpush.msra.mxu0 0.0
        %1414 = vmatpush.msra.mxu0 0.0
        %1415 = vmatpush.msra.mxu0 0.0
        %1416 = vmatpush.msra.mxu0 0.0
        %1417 = vmatpush.msra.mxu0 0.0
        %1418 = vmatpush.msra.mxu0 0.0
        %1419 = vmatpush.msra.mxu0 0.0
        %1420 = vmatpush.msra.mxu0 0.0
        %1421 = vmatpush.msra.mxu0 0.0
        %1422 = vmatpush.msra.mxu0 0.0
        %1423 = vmatpush.msra.mxu0 0.0
        %1424 = vmatpush.msra.mxu0 0.0
        %1425 = vmatpush.msra.mxu0 0.0
        %1426 = vmatpush.msra.mxu0 0.0
        %1427 = vmatpush.msra.mxu0 %v1407
        %1428 = vmatmul.f32.gmra.mxu0 %v1410
        %v1429 = vpop.f32.mrf.mxu0
        %v1430 = vadd.f32 0.0, %v1429
        %1431 = vdwg.mxu0
        %1432 = vrot.lane.b32.xlu0 %v445, 64
        %v1433 = vpop.permute.xlu0 %1432
        %v1436 = vsel %vm476, %v1141, 0
        %1438 = vmatpush.msra.mxu0 0.0
        %1439 = vmatpush.msra.mxu0 0.0
        %1440 = vmatpush.msra.mxu0 0.0
        %1441 = vmatpush.msra.mxu0 0.0
        %1442 = vmatpush.msra.mxu0 0.0
        %1443 = vmatpush.msra.mxu0 0.0
        %1444 = vmatpush.msra.mxu0 0.0
        %1445 = vmatpush.msra.mxu0 0.0
        %1446 = vmatpush.msra.mxu0 0.0
        %1447 = vmatpush.msra.mxu0 0.0
        %1448 = vmatpush.msra.mxu0 0.0
        %1449 = vmatpush.msra.mxu0 0.0
        %1450 = vmatpush.msra.mxu0 0.0
        %1451 = vmatpush.msra.mxu0 0.0
        %1452 = vmatpush.msra.mxu0 0.0
        %1453 = vmatpush.msra.mxu0 %v1433
        %1454 = vmatmul.f32.gmra.mxu0 %v1436
        %v1455 = vpop.f32.mrf.mxu0
        %v1456 = vadd.f32 0.0, %v1455
        %1457 = vdwg.mxu0
        %1458 = vrot.lane.b32.xlu0 %v448, 64
        %v1459 = vpop.permute.xlu0 %1458
        %v1462 = vsel %vm476, %v1142, 0
        %1464 = vmatpush.msra.mxu0 0.0
        %1465 = vmatpush.msra.mxu0 0.0
        %1466 = vmatpush.msra.mxu0 0.0
        %1467 = vmatpush.msra.mxu0 0.0
        %1468 = vmatpush.msra.mxu0 0.0
        %1469 = vmatpush.msra.mxu0 0.0
        %1470 = vmatpush.msra.mxu0 0.0
        %1471 = vmatpush.msra.mxu0 0.0
        %1472 = vmatpush.msra.mxu0 0.0
        %1473 = vmatpush.msra.mxu0 0.0
        %1474 = vmatpush.msra.mxu0 0.0
        %1475 = vmatpush.msra.mxu0 0.0
        %1476 = vmatpush.msra.mxu0 0.0
        %1477 = vmatpush.msra.mxu0 0.0
        %1478 = vmatpush.msra.mxu0 0.0
        %1479 = vmatpush.msra.mxu0 %v1459
        %1480 = vmatmul.f32.gmra.mxu0 %v1462
        %v1481 = vpop.f32.mrf.mxu0
        %v1482 = vadd.f32 0.0, %v1481
        %1483 = vdwg.mxu0
        %1484 = vrot.lane.b32.xlu0 %v450, 64
        %v1485 = vpop.permute.xlu0 %1484
        %v1488 = vsel %vm476, %v1143, 0
        %1490 = vmatpush.msra.mxu0 0.0
        %1491 = vmatpush.msra.mxu0 0.0
        %1492 = vmatpush.msra.mxu0 0.0
        %1493 = vmatpush.msra.mxu0 0.0
        %1494 = vmatpush.msra.mxu0 0.0
        %1495 = vmatpush.msra.mxu0 0.0
        %1496 = vmatpush.msra.mxu0 0.0
        %1497 = vmatpush.msra.mxu0 0.0
        %1498 = vmatpush.msra.mxu0 0.0
        %1499 = vmatpush.msra.mxu0 0.0
        %1500 = vmatpush.msra.mxu0 0.0
        %1501 = vmatpush.msra.mxu0 0.0
        %1502 = vmatpush.msra.mxu0 0.0
        %1503 = vmatpush.msra.mxu0 0.0
        %1504 = vmatpush.msra.mxu0 0.0
        %1505 = vmatpush.msra.mxu0 %v1485
        %1506 = vmatmul.f32.gmra.mxu0 %v1488
        %v1507 = vpop.f32.mrf.mxu0
        %v1508 = vadd.f32 0.0, %v1507
        %1509 = vdwg.mxu0
        %1510 = vrot.lane.b32.xlu0 %v453, 64
        %v1511 = vpop.permute.xlu0 %1510
        %v1514 = vsel %vm476, %v1144, 0
        %1516 = vmatpush.msra.mxu0 0.0
        %1517 = vmatpush.msra.mxu0 0.0
        %1518 = vmatpush.msra.mxu0 0.0
        %1519 = vmatpush.msra.mxu0 0.0
        %1520 = vmatpush.msra.mxu0 0.0
        %1521 = vmatpush.msra.mxu0 0.0
        %1522 = vmatpush.msra.mxu0 0.0
        %1523 = vmatpush.msra.mxu0 0.0
        %1524 = vmatpush.msra.mxu0 0.0
        %1525 = vmatpush.msra.mxu0 0.0
        %1526 = vmatpush.msra.mxu0 0.0
        %1527 = vmatpush.msra.mxu0 0.0
        %1528 = vmatpush.msra.mxu0 0.0
        %1529 = vmatpush.msra.mxu0 0.0
        %1530 = vmatpush.msra.mxu0 0.0
        %1531 = vmatpush.msra.mxu0 %v1511
        %1532 = vmatmul.f32.gmra.mxu0 %v1514
        %v1533 = vpop.f32.mrf.mxu0
        %v1534 = vadd.f32 0.0, %v1533
        %1535 = vdwg.mxu0
        %1536 = vrot.lane.b32.xlu0 %v455, 64
        %v1537 = vpop.permute.xlu0 %1536
        %v1540 = vsel %vm476, %v1145, 0
        %1542 = vmatpush.msra.mxu0 0.0
        %1543 = vmatpush.msra.mxu0 0.0
        %1544 = vmatpush.msra.mxu0 0.0
        %1545 = vmatpush.msra.mxu0 0.0
        %1546 = vmatpush.msra.mxu0 0.0
        %1547 = vmatpush.msra.mxu0 0.0
        %1548 = vmatpush.msra.mxu0 0.0
        %1549 = vmatpush.msra.mxu0 0.0
        %1550 = vmatpush.msra.mxu0 0.0
        %1551 = vmatpush.msra.mxu0 0.0
        %1552 = vmatpush.msra.mxu0 0.0
        %1553 = vmatpush.msra.mxu0 0.0
        %1554 = vmatpush.msra.mxu0 0.0
        %1555 = vmatpush.msra.mxu0 0.0
        %1556 = vmatpush.msra.mxu0 0.0
        %1557 = vmatpush.msra.mxu0 %v1537
        %1558 = vmatmul.f32.gmra.mxu0 %v1540
        %v1559 = vpop.f32.mrf.mxu0
        %v1560 = vadd.f32 0.0, %v1559
        %1561 = vdwg.mxu0
        %1562 = vst.msk [vmem:[#allocation2] sm:$0xff] %vm476, %v1170
        %1563 = vst.msk [vmem:[#allocation2 + $0x8] sm:$0xff] %vm476, %v1196
        %1564 = vst.msk [vmem:[#allocation2 + $0x10] sm:$0xff] %vm476, %v1222
        %1565 = vst.msk [vmem:[#allocation2 + $0x18] sm:$0xff] %vm476, %v1248
        %1566 = vst.msk [vmem:[#allocation2 + $0x20] sm:$0xff] %vm476, %v1274
        %1567 = vst.msk [vmem:[#allocation2 + $0x28] sm:$0xff] %vm476, %v1300
        %1568 = vst.msk [vmem:[#allocation2 + $0x30] sm:$0xff] %vm476, %v1326
        %1569 = vst.msk [vmem:[#allocation2 + $0x38] sm:$0xff] %vm476, %v1352
        %1570 = vst.msk [vmem:[#allocation2 + $0x40] sm:$0xff] %vm476, %v1378
        %1571 = vst.msk [vmem:[#allocation2 + $0x48] sm:$0xff] %vm476, %v1404
        %1572 = vst.msk [vmem:[#allocation2 + $0x50] sm:$0xff] %vm476, %v1430
        %1573 = vst.msk [vmem:[#allocation2 + $0x58] sm:$0xff] %vm476, %v1456
        %1574 = vst.msk [vmem:[#allocation2 + $0x60] sm:$0xff] %vm476, %v1482
        %1575 = vst.msk [vmem:[#allocation2 + $0x68] sm:$0xff] %vm476, %v1508
        %1576 = vst.msk [vmem:[#allocation2 + $0x70] sm:$0xff] %vm476, %v1534
        %1577 = vst.msk [vmem:[#allocation2 + $0x78] sm:$0xff] %vm476, %v1560
        %1578 = vrot.lane.b32.xlu0 %v418, 120
        %v1579 = vpop.permute.xlu0 %1578
        %1580 = vrot.lane.b32.xlu0 %v418, 88
        %v1581 = vpop.permute.xlu0 %1580
        %v1582 = vsel %vm476, %v1579, 0
        %v1584 = vsel %vm476, %v1581, 0
        %1586 = vmatpush.xpose.msra.mxu0 0.0
        %1587 = vmatpush.xpose.msra.mxu0 0.0
        %1588 = vmatpush.xpose.msra.mxu0 0.0
        %1589 = vmatpush.xpose.msra.mxu0 0.0
        %1590 = vmatpush.xpose.msra.mxu0 0.0
        %1591 = vmatpush.xpose.msra.mxu0 0.0
        %1592 = vmatpush.xpose.msra.mxu0 0.0
        %1593 = vmatpush.xpose.msra.mxu0 0.0
        %1594 = vmatpush.xpose.msra.mxu0 0.0
        %1595 = vmatpush.xpose.msra.mxu0 0.0
        %1596 = vmatpush.xpose.msra.mxu0 0.0
        %1597 = vmatpush.xpose.msra.mxu0 0.0
        %1598 = vmatpush.xpose.msra.mxu0 0.0
        %1599 = vmatpush.xpose.msra.mxu0 0.0
        %1600 = vmatpush.xpose.msra.mxu0 0.0
        %1601 = vmatpush.xpose.msra.mxu0 %v1584
        %1602 = vmatmul.f32.gmra.mxu0 %v1582
        %v1603 = vpop.f32.mrf.mxu0
        %v1604 = vadd.f32 0.0, %v1603
        %1605 = vdwg.mxu0
        %1606 = vrot.lane.b32.xlu0 %v420, 120
        %v1607 = vpop.permute.xlu0 %1606
        %1608 = vrot.lane.b32.xlu0 %v420, 88
        %v1609 = vpop.permute.xlu0 %1608
        %v1610 = vsel %vm476, %v1607, 0
        %v1612 = vsel %vm476, %v1609, 0
        %1614 = vmatpush.xpose.msra.mxu0 0.0
        %1615 = vmatpush.xpose.msra.mxu0 0.0
        %1616 = vmatpush.xpose.msra.mxu0 0.0
        %1617 = vmatpush.xpose.msra.mxu0 0.0
        %1618 = vmatpush.xpose.msra.mxu0 0.0
        %1619 = vmatpush.xpose.msra.mxu0 0.0
        %1620 = vmatpush.xpose.msra.mxu0 0.0
        %1621 = vmatpush.xpose.msra.mxu0 0.0
        %1622 = vmatpush.xpose.msra.mxu0 0.0
        %1623 = vmatpush.xpose.msra.mxu0 0.0
        %1624 = vmatpush.xpose.msra.mxu0 0.0
        %1625 = vmatpush.xpose.msra.mxu0 0.0
        %1626 = vmatpush.xpose.msra.mxu0 0.0
        %1627 = vmatpush.xpose.msra.mxu0 0.0
        %1628 = vmatpush.xpose.msra.mxu0 0.0
        %1629 = vmatpush.xpose.msra.mxu0 %v1612
        %1630 = vmatmul.f32.gmra.mxu0 %v1610
        %v1631 = vpop.f32.mrf.mxu0
        %v1632 = vadd.f32 0.0, %v1631
        %1633 = vdwg.mxu0
        %1634 = vrot.lane.b32.xlu0 %v423, 120
        %v1635 = vpop.permute.xlu0 %1634
        %1636 = vrot.lane.b32.xlu0 %v423, 88
        %v1637 = vpop.permute.xlu0 %1636
        %v1638 = vsel %vm476, %v1635, 0
        %v1640 = vsel %vm476, %v1637, 0
        %1642 = vmatpush.xpose.msra.mxu0 0.0
        %1643 = vmatpush.xpose.msra.mxu0 0.0
        %1644 = vmatpush.xpose.msra.mxu0 0.0
        %1645 = vmatpush.xpose.msra.mxu0 0.0
        %1646 = vmatpush.xpose.msra.mxu0 0.0
        %1647 = vmatpush.xpose.msra.mxu0 0.0
        %1648 = vmatpush.xpose.msra.mxu0 0.0
        %1649 = vmatpush.xpose.msra.mxu0 0.0
        %1650 = vmatpush.xpose.msra.mxu0 0.0
        %1651 = vmatpush.xpose.msra.mxu0 0.0
        %1652 = vmatpush.xpose.msra.mxu0 0.0
        %1653 = vmatpush.xpose.msra.mxu0 0.0
        %1654 = vmatpush.xpose.msra.mxu0 0.0
        %1655 = vmatpush.xpose.msra.mxu0 0.0
        %1656 = vmatpush.xpose.msra.mxu0 0.0
        %1657 = vmatpush.xpose.msra.mxu0 %v1640
        %1658 = vmatmul.f32.gmra.mxu0 %v1638
        %v1659 = vpop.f32.mrf.mxu0
        %v1660 = vadd.f32 0.0, %v1659
        %1661 = vdwg.mxu0
        %1662 = vrot.lane.b32.xlu0 %v425, 120
        %v1663 = vpop.permute.xlu0 %1662
        %1664 = vrot.lane.b32.xlu0 %v425, 88
        %v1665 = vpop.permute.xlu0 %1664
        %v1666 = vsel %vm476, %v1663, 0
        %v1668 = vsel %vm476, %v1665, 0
        %1670 = vmatpush.xpose.msra.mxu0 0.0
        %1671 = vmatpush.xpose.msra.mxu0 0.0
        %1672 = vmatpush.xpose.msra.mxu0 0.0
        %1673 = vmatpush.xpose.msra.mxu0 0.0
        %1674 = vmatpush.xpose.msra.mxu0 0.0
        %1675 = vmatpush.xpose.msra.mxu0 0.0
        %1676 = vmatpush.xpose.msra.mxu0 0.0
        %1677 = vmatpush.xpose.msra.mxu0 0.0
        %1678 = vmatpush.xpose.msra.mxu0 0.0
        %1679 = vmatpush.xpose.msra.mxu0 0.0
        %1680 = vmatpush.xpose.msra.mxu0 0.0
        %1681 = vmatpush.xpose.msra.mxu0 0.0
        %1682 = vmatpush.xpose.msra.mxu0 0.0
        %1683 = vmatpush.xpose.msra.mxu0 0.0
        %1684 = vmatpush.xpose.msra.mxu0 0.0
        %1685 = vmatpush.xpose.msra.mxu0 %v1668
        %1686 = vmatmul.f32.gmra.mxu0 %v1666
        %v1687 = vpop.f32.mrf.mxu0
        %v1688 = vadd.f32 0.0, %v1687
        %1689 = vdwg.mxu0
        %1690 = vrot.lane.b32.xlu0 %v428, 120
        %v1691 = vpop.permute.xlu0 %1690
        %1692 = vrot.lane.b32.xlu0 %v428, 88
        %v1693 = vpop.permute.xlu0 %1692
        %v1694 = vsel %vm476, %v1691, 0
        %v1696 = vsel %vm476, %v1693, 0
        %1698 = vmatpush.xpose.msra.mxu0 0.0
        %1699 = vmatpush.xpose.msra.mxu0 0.0
        %1700 = vmatpush.xpose.msra.mxu0 0.0
        %1701 = vmatpush.xpose.msra.mxu0 0.0
        %1702 = vmatpush.xpose.msra.mxu0 0.0
        %1703 = vmatpush.xpose.msra.mxu0 0.0
        %1704 = vmatpush.xpose.msra.mxu0 0.0
        %1705 = vmatpush.xpose.msra.mxu0 0.0
        %1706 = vmatpush.xpose.msra.mxu0 0.0
        %1707 = vmatpush.xpose.msra.mxu0 0.0
        %1708 = vmatpush.xpose.msra.mxu0 0.0
        %1709 = vmatpush.xpose.msra.mxu0 0.0
        %1710 = vmatpush.xpose.msra.mxu0 0.0
        %1711 = vmatpush.xpose.msra.mxu0 0.0
        %1712 = vmatpush.xpose.msra.mxu0 0.0
        %1713 = vmatpush.xpose.msra.mxu0 %v1696
        %1714 = vmatmul.f32.gmra.mxu0 %v1694
        %v1715 = vpop.f32.mrf.mxu0
        %v1716 = vadd.f32 0.0, %v1715
        %1717 = vdwg.mxu0
        %1718 = vrot.lane.b32.xlu0 %v430, 120
        %v1719 = vpop.permute.xlu0 %1718
        %1720 = vrot.lane.b32.xlu0 %v430, 88
        %v1721 = vpop.permute.xlu0 %1720
        %v1722 = vsel %vm476, %v1719, 0
        %v1724 = vsel %vm476, %v1721, 0
        %1726 = vmatpush.xpose.msra.mxu0 0.0
        %1727 = vmatpush.xpose.msra.mxu0 0.0
        %1728 = vmatpush.xpose.msra.mxu0 0.0
        %1729 = vmatpush.xpose.msra.mxu0 0.0
        %1730 = vmatpush.xpose.msra.mxu0 0.0
        %1731 = vmatpush.xpose.msra.mxu0 0.0
        %1732 = vmatpush.xpose.msra.mxu0 0.0
        %1733 = vmatpush.xpose.msra.mxu0 0.0
        %1734 = vmatpush.xpose.msra.mxu0 0.0
        %1735 = vmatpush.xpose.msra.mxu0 0.0
        %1736 = vmatpush.xpose.msra.mxu0 0.0
        %1737 = vmatpush.xpose.msra.mxu0 0.0
        %1738 = vmatpush.xpose.msra.mxu0 0.0
        %1739 = vmatpush.xpose.msra.mxu0 0.0
        %1740 = vmatpush.xpose.msra.mxu0 0.0
        %1741 = vmatpush.xpose.msra.mxu0 %v1724
        %1742 = vmatmul.f32.gmra.mxu0 %v1722
        %v1743 = vpop.f32.mrf.mxu0
        %v1744 = vadd.f32 0.0, %v1743
        %1745 = vdwg.mxu0
        %1746 = vrot.lane.b32.xlu0 %v433, 120
        %v1747 = vpop.permute.xlu0 %1746
        %1748 = vrot.lane.b32.xlu0 %v433, 88
        %v1749 = vpop.permute.xlu0 %1748
        %v1750 = vsel %vm476, %v1747, 0
        %v1752 = vsel %vm476, %v1749, 0
        %1754 = vmatpush.xpose.msra.mxu0 0.0
        %1755 = vmatpush.xpose.msra.mxu0 0.0
        %1756 = vmatpush.xpose.msra.mxu0 0.0
        %1757 = vmatpush.xpose.msra.mxu0 0.0
        %1758 = vmatpush.xpose.msra.mxu0 0.0
        %1759 = vmatpush.xpose.msra.mxu0 0.0
        %1760 = vmatpush.xpose.msra.mxu0 0.0
        %1761 = vmatpush.xpose.msra.mxu0 0.0
        %1762 = vmatpush.xpose.msra.mxu0 0.0
        %1763 = vmatpush.xpose.msra.mxu0 0.0
        %1764 = vmatpush.xpose.msra.mxu0 0.0
        %1765 = vmatpush.xpose.msra.mxu0 0.0
        %1766 = vmatpush.xpose.msra.mxu0 0.0
        %1767 = vmatpush.xpose.msra.mxu0 0.0
        %1768 = vmatpush.xpose.msra.mxu0 0.0
        %1769 = vmatpush.xpose.msra.mxu0 %v1752
        %1770 = vmatmul.f32.gmra.mxu0 %v1750
        %v1771 = vpop.f32.mrf.mxu0
        %v1772 = vadd.f32 0.0, %v1771
        %1773 = vdwg.mxu0
        %1774 = vrot.lane.b32.xlu0 %v435, 120
        %v1775 = vpop.permute.xlu0 %1774
        %1776 = vrot.lane.b32.xlu0 %v435, 88
        %v1777 = vpop.permute.xlu0 %1776
        %v1778 = vsel %vm476, %v1775, 0
        %v1780 = vsel %vm476, %v1777, 0
        %1782 = vmatpush.xpose.msra.mxu0 0.0
        %1783 = vmatpush.xpose.msra.mxu0 0.0
        %1784 = vmatpush.xpose.msra.mxu0 0.0
        %1785 = vmatpush.xpose.msra.mxu0 0.0
        %1786 = vmatpush.xpose.msra.mxu0 0.0
        %1787 = vmatpush.xpose.msra.mxu0 0.0
        %1788 = vmatpush.xpose.msra.mxu0 0.0
        %1789 = vmatpush.xpose.msra.mxu0 0.0
        %1790 = vmatpush.xpose.msra.mxu0 0.0
        %1791 = vmatpush.xpose.msra.mxu0 0.0
        %1792 = vmatpush.xpose.msra.mxu0 0.0
        %1793 = vmatpush.xpose.msra.mxu0 0.0
        %1794 = vmatpush.xpose.msra.mxu0 0.0
        %1795 = vmatpush.xpose.msra.mxu0 0.0
        %1796 = vmatpush.xpose.msra.mxu0 0.0
        %1797 = vmatpush.xpose.msra.mxu0 %v1780
        %1798 = vmatmul.f32.gmra.mxu0 %v1778
        %v1799 = vpop.f32.mrf.mxu0
        %v1800 = vadd.f32 0.0, %v1799
        %1801 = vdwg.mxu0
        %1802 = vrot.lane.b32.xlu0 %v438, 120
        %v1803 = vpop.permute.xlu0 %1802
        %1804 = vrot.lane.b32.xlu0 %v438, 88
        %v1805 = vpop.permute.xlu0 %1804
        %v1806 = vsel %vm476, %v1803, 0
        %v1808 = vsel %vm476, %v1805, 0
        %1810 = vmatpush.xpose.msra.mxu0 0.0
        %1811 = vmatpush.xpose.msra.mxu0 0.0
        %1812 = vmatpush.xpose.msra.mxu0 0.0
        %1813 = vmatpush.xpose.msra.mxu0 0.0
        %1814 = vmatpush.xpose.msra.mxu0 0.0
        %1815 = vmatpush.xpose.msra.mxu0 0.0
        %1816 = vmatpush.xpose.msra.mxu0 0.0
        %1817 = vmatpush.xpose.msra.mxu0 0.0
        %1818 = vmatpush.xpose.msra.mxu0 0.0
        %1819 = vmatpush.xpose.msra.mxu0 0.0
        %1820 = vmatpush.xpose.msra.mxu0 0.0
        %1821 = vmatpush.xpose.msra.mxu0 0.0
        %1822 = vmatpush.xpose.msra.mxu0 0.0
        %1823 = vmatpush.xpose.msra.mxu0 0.0
        %1824 = vmatpush.xpose.msra.mxu0 0.0
        %1825 = vmatpush.xpose.msra.mxu0 %v1808
        %1826 = vmatmul.f32.gmra.mxu0 %v1806
        %v1827 = vpop.f32.mrf.mxu0
        %v1828 = vadd.f32 0.0, %v1827
        %1829 = vdwg.mxu0
        %1830 = vrot.lane.b32.xlu0 %v440, 120
        %v1831 = vpop.permute.xlu0 %1830
        %1832 = vrot.lane.b32.xlu0 %v440, 88
        %v1833 = vpop.permute.xlu0 %1832
        %v1834 = vsel %vm476, %v1831, 0
        %v1836 = vsel %vm476, %v1833, 0
        %1838 = vmatpush.xpose.msra.mxu0 0.0
        %1839 = vmatpush.xpose.msra.mxu0 0.0
        %1840 = vmatpush.xpose.msra.mxu0 0.0
        %1841 = vmatpush.xpose.msra.mxu0 0.0
        %1842 = vmatpush.xpose.msra.mxu0 0.0
        %1843 = vmatpush.xpose.msra.mxu0 0.0
        %1844 = vmatpush.xpose.msra.mxu0 0.0
        %1845 = vmatpush.xpose.msra.mxu0 0.0
        %1846 = vmatpush.xpose.msra.mxu0 0.0
        %1847 = vmatpush.xpose.msra.mxu0 0.0
        %1848 = vmatpush.xpose.msra.mxu0 0.0
        %1849 = vmatpush.xpose.msra.mxu0 0.0
        %1850 = vmatpush.xpose.msra.mxu0 0.0
        %1851 = vmatpush.xpose.msra.mxu0 0.0
        %1852 = vmatpush.xpose.msra.mxu0 0.0
        %1853 = vmatpush.xpose.msra.mxu0 %v1836
        %1854 = vmatmul.f32.gmra.mxu0 %v1834
        %v1855 = vpop.f32.mrf.mxu0
        %v1856 = vadd.f32 0.0, %v1855
        %1857 = vdwg.mxu0
        %1858 = vrot.lane.b32.xlu0 %v443, 120
        %v1859 = vpop.permute.xlu0 %1858
        %1860 = vrot.lane.b32.xlu0 %v443, 88
        %v1861 = vpop.permute.xlu0 %1860
        %v1862 = vsel %vm476, %v1859, 0
        %v1864 = vsel %vm476, %v1861, 0
        %1866 = vmatpush.xpose.msra.mxu0 0.0
        %1867 = vmatpush.xpose.msra.mxu0 0.0
        %1868 = vmatpush.xpose.msra.mxu0 0.0
        %1869 = vmatpush.xpose.msra.mxu0 0.0
        %1870 = vmatpush.xpose.msra.mxu0 0.0
        %1871 = vmatpush.xpose.msra.mxu0 0.0
        %1872 = vmatpush.xpose.msra.mxu0 0.0
        %1873 = vmatpush.xpose.msra.mxu0 0.0
        %1874 = vmatpush.xpose.msra.mxu0 0.0
        %1875 = vmatpush.xpose.msra.mxu0 0.0
        %1876 = vmatpush.xpose.msra.mxu0 0.0
        %1877 = vmatpush.xpose.msra.mxu0 0.0
        %1878 = vmatpush.xpose.msra.mxu0 0.0
        %1879 = vmatpush.xpose.msra.mxu0 0.0
        %1880 = vmatpush.xpose.msra.mxu0 0.0
        %1881 = vmatpush.xpose.msra.mxu0 %v1864
        %1882 = vmatmul.f32.gmra.mxu0 %v1862
        %v1883 = vpop.f32.mrf.mxu0
        %v1884 = vadd.f32 0.0, %v1883
        %1885 = vdwg.mxu0
        %1886 = vrot.lane.b32.xlu0 %v445, 120
        %v1887 = vpop.permute.xlu0 %1886
        %1888 = vrot.lane.b32.xlu0 %v445, 88
        %v1889 = vpop.permute.xlu0 %1888
        %v1890 = vsel %vm476, %v1887, 0
        %v1892 = vsel %vm476, %v1889, 0
        %1894 = vmatpush.xpose.msra.mxu0 0.0
        %1895 = vmatpush.xpose.msra.mxu0 0.0
        %1896 = vmatpush.xpose.msra.mxu0 0.0
        %1897 = vmatpush.xpose.msra.mxu0 0.0
        %1898 = vmatpush.xpose.msra.mxu0 0.0
        %1899 = vmatpush.xpose.msra.mxu0 0.0
        %1900 = vmatpush.xpose.msra.mxu0 0.0
        %1901 = vmatpush.xpose.msra.mxu0 0.0
        %1902 = vmatpush.xpose.msra.mxu0 0.0
        %1903 = vmatpush.xpose.msra.mxu0 0.0
        %1904 = vmatpush.xpose.msra.mxu0 0.0
        %1905 = vmatpush.xpose.msra.mxu0 0.0
        %1906 = vmatpush.xpose.msra.mxu0 0.0
        %1907 = vmatpush.xpose.msra.mxu0 0.0
        %1908 = vmatpush.xpose.msra.mxu0 0.0
        %1909 = vmatpush.xpose.msra.mxu0 %v1892
        %1910 = vmatmul.f32.gmra.mxu0 %v1890
        %v1911 = vpop.f32.mrf.mxu0
        %v1912 = vadd.f32 0.0, %v1911
        %1913 = vdwg.mxu0
        %1914 = vrot.lane.b32.xlu0 %v448, 120
        %v1915 = vpop.permute.xlu0 %1914
        %1916 = vrot.lane.b32.xlu0 %v448, 88
        %v1917 = vpop.permute.xlu0 %1916
        %v1918 = vsel %vm476, %v1915, 0
        %v1920 = vsel %vm476, %v1917, 0
        %1922 = vmatpush.xpose.msra.mxu0 0.0
        %1923 = vmatpush.xpose.msra.mxu0 0.0
        %1924 = vmatpush.xpose.msra.mxu0 0.0
        %1925 = vmatpush.xpose.msra.mxu0 0.0
        %1926 = vmatpush.xpose.msra.mxu0 0.0
        %1927 = vmatpush.xpose.msra.mxu0 0.0
        %1928 = vmatpush.xpose.msra.mxu0 0.0
        %1929 = vmatpush.xpose.msra.mxu0 0.0
        %1930 = vmatpush.xpose.msra.mxu0 0.0
        %1931 = vmatpush.xpose.msra.mxu0 0.0
        %1932 = vmatpush.xpose.msra.mxu0 0.0
        %1933 = vmatpush.xpose.msra.mxu0 0.0
        %1934 = vmatpush.xpose.msra.mxu0 0.0
        %1935 = vmatpush.xpose.msra.mxu0 0.0
        %1936 = vmatpush.xpose.msra.mxu0 0.0
        %1937 = vmatpush.xpose.msra.mxu0 %v1920
        %1938 = vmatmul.f32.gmra.mxu0 %v1918
        %v1939 = vpop.f32.mrf.mxu0
        %v1940 = vadd.f32 0.0, %v1939
        %1941 = vdwg.mxu0
        %1942 = vrot.lane.b32.xlu0 %v450, 120
        %v1943 = vpop.permute.xlu0 %1942
        %1944 = vrot.lane.b32.xlu0 %v450, 88
        %v1945 = vpop.permute.xlu0 %1944
        %v1946 = vsel %vm476, %v1943, 0
        %v1948 = vsel %vm476, %v1945, 0
        %1950 = vmatpush.xpose.msra.mxu0 0.0
        %1951 = vmatpush.xpose.msra.mxu0 0.0
        %1952 = vmatpush.xpose.msra.mxu0 0.0
        %1953 = vmatpush.xpose.msra.mxu0 0.0
        %1954 = vmatpush.xpose.msra.mxu0 0.0
        %1955 = vmatpush.xpose.msra.mxu0 0.0
        %1956 = vmatpush.xpose.msra.mxu0 0.0
        %1957 = vmatpush.xpose.msra.mxu0 0.0
        %1958 = vmatpush.xpose.msra.mxu0 0.0
        %1959 = vmatpush.xpose.msra.mxu0 0.0
        %1960 = vmatpush.xpose.msra.mxu0 0.0
        %1961 = vmatpush.xpose.msra.mxu0 0.0
        %1962 = vmatpush.xpose.msra.mxu0 0.0
        %1963 = vmatpush.xpose.msra.mxu0 0.0
        %1964 = vmatpush.xpose.msra.mxu0 0.0
        %1965 = vmatpush.xpose.msra.mxu0 %v1948
        %1966 = vmatmul.f32.gmra.mxu0 %v1946
        %v1967 = vpop.f32.mrf.mxu0
        %v1968 = vadd.f32 0.0, %v1967
        %1969 = vdwg.mxu0
        %1970 = vrot.lane.b32.xlu0 %v453, 120
        %v1971 = vpop.permute.xlu0 %1970
        %1972 = vrot.lane.b32.xlu0 %v453, 88
        %v1973 = vpop.permute.xlu0 %1972
        %v1974 = vsel %vm476, %v1971, 0
        %v1976 = vsel %vm476, %v1973, 0
        %1978 = vmatpush.xpose.msra.mxu0 0.0
        %1979 = vmatpush.xpose.msra.mxu0 0.0
        %1980 = vmatpush.xpose.msra.mxu0 0.0
        %1981 = vmatpush.xpose.msra.mxu0 0.0
        %1982 = vmatpush.xpose.msra.mxu0 0.0
        %1983 = vmatpush.xpose.msra.mxu0 0.0
        %1984 = vmatpush.xpose.msra.mxu0 0.0
        %1985 = vmatpush.xpose.msra.mxu0 0.0
        %1986 = vmatpush.xpose.msra.mxu0 0.0
        %1987 = vmatpush.xpose.msra.mxu0 0.0
        %1988 = vmatpush.xpose.msra.mxu0 0.0
        %1989 = vmatpush.xpose.msra.mxu0 0.0
        %1990 = vmatpush.xpose.msra.mxu0 0.0
        %1991 = vmatpush.xpose.msra.mxu0 0.0
        %1992 = vmatpush.xpose.msra.mxu0 0.0
        %1993 = vmatpush.xpose.msra.mxu0 %v1976
        %1994 = vmatmul.f32.gmra.mxu0 %v1974
        %v1995 = vpop.f32.mrf.mxu0
        %v1996 = vadd.f32 0.0, %v1995
        %1997 = vdwg.mxu0
        %1998 = vrot.lane.b32.xlu0 %v455, 120
        %v1999 = vpop.permute.xlu0 %1998
        %2000 = vrot.lane.b32.xlu0 %v455, 88
        %v2001 = vpop.permute.xlu0 %2000
        %v2002 = vsel %vm476, %v1999, 0
        %v2004 = vsel %vm476, %v2001, 0
        %2006 = vmatpush.xpose.msra.mxu0 0.0
        %2007 = vmatpush.xpose.msra.mxu0 0.0
        %2008 = vmatpush.xpose.msra.mxu0 0.0
        %2009 = vmatpush.xpose.msra.mxu0 0.0
        %2010 = vmatpush.xpose.msra.mxu0 0.0
        %2011 = vmatpush.xpose.msra.mxu0 0.0
        %2012 = vmatpush.xpose.msra.mxu0 0.0
        %2013 = vmatpush.xpose.msra.mxu0 0.0
        %2014 = vmatpush.xpose.msra.mxu0 0.0
        %2015 = vmatpush.xpose.msra.mxu0 0.0
        %2016 = vmatpush.xpose.msra.mxu0 0.0
        %2017 = vmatpush.xpose.msra.mxu0 0.0
        %2018 = vmatpush.xpose.msra.mxu0 0.0
        %2019 = vmatpush.xpose.msra.mxu0 0.0
        %2020 = vmatpush.xpose.msra.mxu0 0.0
        %2021 = vmatpush.xpose.msra.mxu0 %v2004
        %2022 = vmatmul.f32.gmra.mxu0 %v2002
        %v2023 = vpop.f32.mrf.mxu0
        %v2024 = vadd.f32 0.0, %v2023
        %2025 = vdwg.mxu0
        %v2026 = vmul.f32 %v1604, 0.35355338
        %v2027 = vmul.f32 %v1632, 0.35355338
        %v2028 = vmul.f32 %v1660, 0.35355338
        %v2029 = vmul.f32 %v1688, 0.35355338
        %v2030 = vmul.f32 %v1716, 0.35355338
        %v2031 = vmul.f32 %v1744, 0.35355338
        %v2032 = vmul.f32 %v1772, 0.35355338
        %v2033 = vmul.f32 %v1800, 0.35355338
        %v2034 = vmul.f32 %v1828, 0.35355338
        %v2035 = vmul.f32 %v1856, 0.35355338
        %v2036 = vmul.f32 %v1884, 0.35355338
        %v2037 = vmul.f32 %v1912, 0.35355338
        %v2038 = vmul.f32 %v1940, 0.35355338
        %v2039 = vmul.f32 %v1968, 0.35355338
        %v2040 = vmul.f32 %v1996, 0.35355338
        %v2041 = vmul.f32 %v2024, 0.35355338
        %v2042 = vadd.f32 %v2026, %v922
        %v2043 = vadd.f32 %v2027, %v923
        %v2044 = vadd.f32 %v2028, %v924
        %v2045 = vadd.f32 %v2029, %v925
        %v2046 = vadd.f32 %v2030, %v926
        %v2047 = vadd.f32 %v2031, %v927
        %v2048 = vadd.f32 %v2032, %v928
        %v2049 = vadd.f32 %v2033, %v929
        %v2050 = vadd.f32 %v2034, %v930
        %v2051 = vadd.f32 %v2035, %v931
        %v2052 = vadd.f32 %v2036, %v932
        %v2053 = vadd.f32 %v2037, %v933
        %v2054 = vadd.f32 %v2038, %v934
        %v2055 = vadd.f32 %v2039, %v935
        %v2056 = vadd.f32 %v2040, %v936
        %v2057 = vadd.f32 %v2041, %v937
        %v2058 = vsel %vm476, %v2042, -inf
        %2059 = vmax.xlane.f32.xlu0 %v2058
        %v2060 = vpop.xlane.xlu0 %2059
        %v2061 = vsel %vm476, %v2043, -inf
        %2062 = vmax.xlane.f32.xlu0 %v2061
        %v2063 = vpop.xlane.xlu0 %2062
        %v2064 = vsel %vm476, %v2044, -inf
        %2065 = vmax.xlane.f32.xlu0 %v2064
        %v2066 = vpop.xlane.xlu0 %2065
        %v2067 = vsel %vm476, %v2045, -inf
        %2068 = vmax.xlane.f32.xlu0 %v2067
        %v2069 = vpop.xlane.xlu0 %2068
        %v2070 = vsel %vm476, %v2046, -inf
        %2071 = vmax.xlane.f32.xlu0 %v2070
        %v2072 = vpop.xlane.xlu0 %2071
        %v2073 = vsel %vm476, %v2047, -inf
        %2074 = vmax.xlane.f32.xlu0 %v2073
        %v2075 = vpop.xlane.xlu0 %2074
        %v2076 = vsel %vm476, %v2048, -inf
        %2077 = vmax.xlane.f32.xlu0 %v2076
        %v2078 = vpop.xlane.xlu0 %2077
        %v2079 = vsel %vm476, %v2049, -inf
        %2080 = vmax.xlane.f32.xlu0 %v2079
        %v2081 = vpop.xlane.xlu0 %2080
        %v2082 = vsel %vm476, %v2050, -inf
        %2083 = vmax.xlane.f32.xlu0 %v2082
        %v2084 = vpop.xlane.xlu0 %2083
        %v2085 = vsel %vm476, %v2051, -inf
        %2086 = vmax.xlane.f32.xlu0 %v2085
        %v2087 = vpop.xlane.xlu0 %2086
        %v2088 = vsel %vm476, %v2052, -inf
        %2089 = vmax.xlane.f32.xlu0 %v2088
        %v2090 = vpop.xlane.xlu0 %2089
        %v2091 = vsel %vm476, %v2053, -inf
        %2092 = vmax.xlane.f32.xlu0 %v2091
        %v2093 = vpop.xlane.xlu0 %2092
        %v2094 = vsel %vm476, %v2054, -inf
        %2095 = vmax.xlane.f32.xlu0 %v2094
        %v2096 = vpop.xlane.xlu0 %2095
        %v2097 = vsel %vm476, %v2055, -inf
        %2098 = vmax.xlane.f32.xlu0 %v2097
        %v2099 = vpop.xlane.xlu0 %2098
        %v2100 = vsel %vm476, %v2056, -inf
        %2101 = vmax.xlane.f32.xlu0 %v2100
        %v2102 = vpop.xlane.xlu0 %2101
        %v2103 = vsel %vm476, %v2057, -inf
        %2104 = vmax.xlane.f32.xlu0 %v2103
        %v2105 = vpop.xlane.xlu0 %2104
        %v2106 = vsub.f32 %v2042, %v2060
        %v2107 = vsub.f32 %v2043, %v2063
        %v2108 = vsub.f32 %v2044, %v2066
        %v2109 = vsub.f32 %v2045, %v2069
        %v2110 = vsub.f32 %v2046, %v2072
        %v2111 = vsub.f32 %v2047, %v2075
        %v2112 = vsub.f32 %v2048, %v2078
        %v2113 = vsub.f32 %v2049, %v2081
        %v2114 = vsub.f32 %v2050, %v2084
        %v2115 = vsub.f32 %v2051, %v2087
        %v2116 = vsub.f32 %v2052, %v2090
        %v2117 = vsub.f32 %v2053, %v2093
        %v2118 = vsub.f32 %v2054, %v2096
        %v2119 = vsub.f32 %v2055, %v2099
        %v2120 = vsub.f32 %v2056, %v2102
        %v2121 = vsub.f32 %v2057, %v2105
        %v2122 = vmul.f32 %v2106, 1.442695
        %v2123 = vpow.pop %v2122
        %v2124 = vmul.f32 %v2107, 1.442695
        %v2125 = vpow.pop %v2124
        %v2126 = vmul.f32 %v2108, 1.442695
        %v2127 = vpow.pop %v2126
        %v2128 = vmul.f32 %v2109, 1.442695
        %v2129 = vpow.pop %v2128
        %v2130 = vmul.f32 %v2110, 1.442695
        %v2131 = vpow.pop %v2130
        %v2132 = vmul.f32 %v2111, 1.442695
        %v2133 = vpow.pop %v2132
        %v2134 = vmul.f32 %v2112, 1.442695
        %v2135 = vpow.pop %v2134
        %v2136 = vmul.f32 %v2113, 1.442695
        %v2137 = vpow.pop %v2136
        %v2138 = vmul.f32 %v2114, 1.442695
        %v2139 = vpow.pop %v2138
        %v2140 = vmul.f32 %v2115, 1.442695
        %v2141 = vpow.pop %v2140
        %v2142 = vmul.f32 %v2116, 1.442695
        %v2143 = vpow.pop %v2142
        %v2144 = vmul.f32 %v2117, 1.442695
        %v2145 = vpow.pop %v2144
        %v2146 = vmul.f32 %v2118, 1.442695
        %v2147 = vpow.pop %v2146
        %v2148 = vmul.f32 %v2119, 1.442695
        %v2149 = vpow.pop %v2148
        %v2150 = vmul.f32 %v2120, 1.442695
        %v2151 = vpow.pop %v2150
        %v2152 = vmul.f32 %v2121, 1.442695
        %v2153 = vpow.pop %v2152
        %v2154 = vsel %vm476, %v2123, 0.0
        %2155 = vadd.xlane.f32.xlu0 %v2154
        %v2156 = vpop.xlane.xlu0 %2155
        %v2157 = vsel %vm476, %v2125, 0.0
        %2158 = vadd.xlane.f32.xlu0 %v2157
        %v2159 = vpop.xlane.xlu0 %2158
        %v2160 = vsel %vm476, %v2127, 0.0
        %2161 = vadd.xlane.f32.xlu0 %v2160
        %v2162 = vpop.xlane.xlu0 %2161
        %v2163 = vsel %vm476, %v2129, 0.0
        %2164 = vadd.xlane.f32.xlu0 %v2163
        %v2165 = vpop.xlane.xlu0 %2164
        %v2166 = vsel %vm476, %v2131, 0.0
        %2167 = vadd.xlane.f32.xlu0 %v2166
        %v2168 = vpop.xlane.xlu0 %2167
        %v2169 = vsel %vm476, %v2133, 0.0
        %2170 = vadd.xlane.f32.xlu0 %v2169
        %v2171 = vpop.xlane.xlu0 %2170
        %v2172 = vsel %vm476, %v2135, 0.0
        %2173 = vadd.xlane.f32.xlu0 %v2172
        %v2174 = vpop.xlane.xlu0 %2173
        %v2175 = vsel %vm476, %v2137, 0.0
        %2176 = vadd.xlane.f32.xlu0 %v2175
        %v2177 = vpop.xlane.xlu0 %2176
        %v2178 = vsel %vm476, %v2139, 0.0
        %2179 = vadd.xlane.f32.xlu0 %v2178
        %v2180 = vpop.xlane.xlu0 %2179
        %v2181 = vsel %vm476, %v2141, 0.0
        %2182 = vadd.xlane.f32.xlu0 %v2181
        %v2183 = vpop.xlane.xlu0 %2182
        %v2184 = vsel %vm476, %v2143, 0.0
        %2185 = vadd.xlane.f32.xlu0 %v2184
        %v2186 = vpop.xlane.xlu0 %2185
        %v2187 = vsel %vm476, %v2145, 0.0
        %2188 = vadd.xlane.f32.xlu0 %v2187
        %v2189 = vpop.xlane.xlu0 %2188
        %v2190 = vsel %vm476, %v2147, 0.0
        %2191 = vadd.xlane.f32.xlu0 %v2190
        %v2192 = vpop.xlane.xlu0 %2191
        %v2193 = vsel %vm476, %v2149, 0.0
        %2194 = vadd.xlane.f32.xlu0 %v2193
        %v2195 = vpop.xlane.xlu0 %2194
        %v2196 = vsel %vm476, %v2151, 0.0
        %2197 = vadd.xlane.f32.xlu0 %v2196
        %v2198 = vpop.xlane.xlu0 %2197
        %v2199 = vsel %vm476, %v2153, 0.0
        %2200 = vadd.xlane.f32.xlu0 %v2199
        %v2201 = vpop.xlane.xlu0 %2200
        %v2202 = vrcp.pop %v2156
        %v2203 = vrcp.pop %v2159
        %v2204 = vrcp.pop %v2162
        %v2205 = vrcp.pop %v2165
        %v2206 = vrcp.pop %v2168
        %v2207 = vrcp.pop %v2171
        %v2208 = vrcp.pop %v2174
        %v2209 = vrcp.pop %v2177
        %v2210 = vrcp.pop %v2180
        %v2211 = vrcp.pop %v2183
        %v2212 = vrcp.pop %v2186
        %v2213 = vrcp.pop %v2189
        %v2214 = vrcp.pop %v2192
        %v2215 = vrcp.pop %v2195
        %v2216 = vrcp.pop %v2198
        %v2217 = vrcp.pop %v2201
        %v2218 = vmul.f32 %v2123, %v2202
        %v2219 = vmul.f32 %v2125, %v2203
        %v2220 = vmul.f32 %v2127, %v2204
        %v2221 = vmul.f32 %v2129, %v2205
        %v2222 = vmul.f32 %v2131, %v2206
        %v2223 = vmul.f32 %v2133, %v2207
        %v2224 = vmul.f32 %v2135, %v2208
        %v2225 = vmul.f32 %v2137, %v2209
        %v2226 = vmul.f32 %v2139, %v2210
        %v2227 = vmul.f32 %v2141, %v2211
        %v2228 = vmul.f32 %v2143, %v2212
        %v2229 = vmul.f32 %v2145, %v2213
        %v2230 = vmul.f32 %v2147, %v2214
        %v2231 = vmul.f32 %v2149, %v2215
        %v2232 = vmul.f32 %v2151, %v2216
        %v2233 = vmul.f32 %v2153, %v2217
        %2234 = vrot.lane.b32.xlu0 %v418, 56
        %v2235 = vpop.permute.xlu0 %2234
        %v2238 = vsel %vm476, %v2218, 0
        %2240 = vmatpush.msra.mxu0 0.0
        %2241 = vmatpush.msra.mxu0 0.0
        %2242 = vmatpush.msra.mxu0 0.0
        %2243 = vmatpush.msra.mxu0 0.0
        %2244 = vmatpush.msra.mxu0 0.0
        %2245 = vmatpush.msra.mxu0 0.0
        %2246 = vmatpush.msra.mxu0 0.0
        %2247 = vmatpush.msra.mxu0 0.0
        %2248 = vmatpush.msra.mxu0 0.0
        %2249 = vmatpush.msra.mxu0 0.0
        %2250 = vmatpush.msra.mxu0 0.0
        %2251 = vmatpush.msra.mxu0 0.0
        %2252 = vmatpush.msra.mxu0 0.0
        %2253 = vmatpush.msra.mxu0 0.0
        %2254 = vmatpush.msra.mxu0 0.0
        %2255 = vmatpush.msra.mxu0 %v2235
        %2256 = vmatmul.f32.gmra.mxu0 %v2238
        %v2257 = vpop.f32.mrf.mxu0
        %v2258 = vadd.f32 0.0, %v2257
        %2259 = vdwg.mxu0
        %2260 = vrot.lane.b32.xlu0 %v420, 56
        %v2261 = vpop.permute.xlu0 %2260
        %v2264 = vsel %vm476, %v2219, 0
        %2266 = vmatpush.msra.mxu0 0.0
        %2267 = vmatpush.msra.mxu0 0.0
        %2268 = vmatpush.msra.mxu0 0.0
        %2269 = vmatpush.msra.mxu0 0.0
        %2270 = vmatpush.msra.mxu0 0.0
        %2271 = vmatpush.msra.mxu0 0.0
        %2272 = vmatpush.msra.mxu0 0.0
        %2273 = vmatpush.msra.mxu0 0.0
        %2274 = vmatpush.msra.mxu0 0.0
        %2275 = vmatpush.msra.mxu0 0.0
        %2276 = vmatpush.msra.mxu0 0.0
        %2277 = vmatpush.msra.mxu0 0.0
        %2278 = vmatpush.msra.mxu0 0.0
        %2279 = vmatpush.msra.mxu0 0.0
        %2280 = vmatpush.msra.mxu0 0.0
        %2281 = vmatpush.msra.mxu0 %v2261
        %2282 = vmatmul.f32.gmra.mxu0 %v2264
        %v2283 = vpop.f32.mrf.mxu0
        %v2284 = vadd.f32 0.0, %v2283
        %2285 = vdwg.mxu0
        %2286 = vrot.lane.b32.xlu0 %v423, 56
        %v2287 = vpop.permute.xlu0 %2286
        %v2290 = vsel %vm476, %v2220, 0
        %2292 = vmatpush.msra.mxu0 0.0
        %2293 = vmatpush.msra.mxu0 0.0
        %2294 = vmatpush.msra.mxu0 0.0
        %2295 = vmatpush.msra.mxu0 0.0
        %2296 = vmatpush.msra.mxu0 0.0
        %2297 = vmatpush.msra.mxu0 0.0
        %2298 = vmatpush.msra.mxu0 0.0
        %2299 = vmatpush.msra.mxu0 0.0
        %2300 = vmatpush.msra.mxu0 0.0
        %2301 = vmatpush.msra.mxu0 0.0
        %2302 = vmatpush.msra.mxu0 0.0
        %2303 = vmatpush.msra.mxu0 0.0
        %2304 = vmatpush.msra.mxu0 0.0
        %2305 = vmatpush.msra.mxu0 0.0
        %2306 = vmatpush.msra.mxu0 0.0
        %2307 = vmatpush.msra.mxu0 %v2287
        %2308 = vmatmul.f32.gmra.mxu0 %v2290
        %v2309 = vpop.f32.mrf.mxu0
        %v2310 = vadd.f32 0.0, %v2309
        %2311 = vdwg.mxu0
        %2312 = vrot.lane.b32.xlu0 %v425, 56
        %v2313 = vpop.permute.xlu0 %2312
        %v2316 = vsel %vm476, %v2221, 0
        %2318 = vmatpush.msra.mxu0 0.0
        %2319 = vmatpush.msra.mxu0 0.0
        %2320 = vmatpush.msra.mxu0 0.0
        %2321 = vmatpush.msra.mxu0 0.0
        %2322 = vmatpush.msra.mxu0 0.0
        %2323 = vmatpush.msra.mxu0 0.0
        %2324 = vmatpush.msra.mxu0 0.0
        %2325 = vmatpush.msra.mxu0 0.0
        %2326 = vmatpush.msra.mxu0 0.0
        %2327 = vmatpush.msra.mxu0 0.0
        %2328 = vmatpush.msra.mxu0 0.0
        %2329 = vmatpush.msra.mxu0 0.0
        %2330 = vmatpush.msra.mxu0 0.0
        %2331 = vmatpush.msra.mxu0 0.0
        %2332 = vmatpush.msra.mxu0 0.0
        %2333 = vmatpush.msra.mxu0 %v2313
        %2334 = vmatmul.f32.gmra.mxu0 %v2316
        %v2335 = vpop.f32.mrf.mxu0
        %v2336 = vadd.f32 0.0, %v2335
        %2337 = vdwg.mxu0
        %2338 = vrot.lane.b32.xlu0 %v428, 56
        %v2339 = vpop.permute.xlu0 %2338
        %v2342 = vsel %vm476, %v2222, 0
        %2344 = vmatpush.msra.mxu0 0.0
        %2345 = vmatpush.msra.mxu0 0.0
        %2346 = vmatpush.msra.mxu0 0.0
        %2347 = vmatpush.msra.mxu0 0.0
        %2348 = vmatpush.msra.mxu0 0.0
        %2349 = vmatpush.msra.mxu0 0.0
        %2350 = vmatpush.msra.mxu0 0.0
        %2351 = vmatpush.msra.mxu0 0.0
        %2352 = vmatpush.msra.mxu0 0.0
        %2353 = vmatpush.msra.mxu0 0.0
        %2354 = vmatpush.msra.mxu0 0.0
        %2355 = vmatpush.msra.mxu0 0.0
        %2356 = vmatpush.msra.mxu0 0.0
        %2357 = vmatpush.msra.mxu0 0.0
        %2358 = vmatpush.msra.mxu0 0.0
        %2359 = vmatpush.msra.mxu0 %v2339
        %2360 = vmatmul.f32.gmra.mxu0 %v2342
        %v2361 = vpop.f32.mrf.mxu0
        %v2362 = vadd.f32 0.0, %v2361
        %2363 = vdwg.mxu0
        %2364 = vrot.lane.b32.xlu0 %v430, 56
        %v2365 = vpop.permute.xlu0 %2364
        %v2368 = vsel %vm476, %v2223, 0
        %2370 = vmatpush.msra.mxu0 0.0
        %2371 = vmatpush.msra.mxu0 0.0
        %2372 = vmatpush.msra.mxu0 0.0
        %2373 = vmatpush.msra.mxu0 0.0
        %2374 = vmatpush.msra.mxu0 0.0
        %2375 = vmatpush.msra.mxu0 0.0
        %2376 = vmatpush.msra.mxu0 0.0
        %2377 = vmatpush.msra.mxu0 0.0
        %2378 = vmatpush.msra.mxu0 0.0
        %2379 = vmatpush.msra.mxu0 0.0
        %2380 = vmatpush.msra.mxu0 0.0
        %2381 = vmatpush.msra.mxu0 0.0
        %2382 = vmatpush.msra.mxu0 0.0
        %2383 = vmatpush.msra.mxu0 0.0
        %2384 = vmatpush.msra.mxu0 0.0
        %2385 = vmatpush.msra.mxu0 %v2365
        %2386 = vmatmul.f32.gmra.mxu0 %v2368
        %v2387 = vpop.f32.mrf.mxu0
        %v2388 = vadd.f32 0.0, %v2387
        %2389 = vdwg.mxu0
        %2390 = vrot.lane.b32.xlu0 %v433, 56
        %v2391 = vpop.permute.xlu0 %2390
        %v2394 = vsel %vm476, %v2224, 0
        %2396 = vmatpush.msra.mxu0 0.0
        %2397 = vmatpush.msra.mxu0 0.0
        %2398 = vmatpush.msra.mxu0 0.0
        %2399 = vmatpush.msra.mxu0 0.0
        %2400 = vmatpush.msra.mxu0 0.0
        %2401 = vmatpush.msra.mxu0 0.0
        %2402 = vmatpush.msra.mxu0 0.0
        %2403 = vmatpush.msra.mxu0 0.0
        %2404 = vmatpush.msra.mxu0 0.0
        %2405 = vmatpush.msra.mxu0 0.0
        %2406 = vmatpush.msra.mxu0 0.0
        %2407 = vmatpush.msra.mxu0 0.0
        %2408 = vmatpush.msra.mxu0 0.0
        %2409 = vmatpush.msra.mxu0 0.0
        %2410 = vmatpush.msra.mxu0 0.0
        %2411 = vmatpush.msra.mxu0 %v2391
        %2412 = vmatmul.f32.gmra.mxu0 %v2394
        %v2413 = vpop.f32.mrf.mxu0
        %v2414 = vadd.f32 0.0, %v2413
        %2415 = vdwg.mxu0
        %2416 = vrot.lane.b32.xlu0 %v435, 56
        %v2417 = vpop.permute.xlu0 %2416
        %v2420 = vsel %vm476, %v2225, 0
        %2422 = vmatpush.msra.mxu0 0.0
        %2423 = vmatpush.msra.mxu0 0.0
        %2424 = vmatpush.msra.mxu0 0.0
        %2425 = vmatpush.msra.mxu0 0.0
        %2426 = vmatpush.msra.mxu0 0.0
        %2427 = vmatpush.msra.mxu0 0.0
        %2428 = vmatpush.msra.mxu0 0.0
        %2429 = vmatpush.msra.mxu0 0.0
        %2430 = vmatpush.msra.mxu0 0.0
        %2431 = vmatpush.msra.mxu0 0.0
        %2432 = vmatpush.msra.mxu0 0.0
        %2433 = vmatpush.msra.mxu0 0.0
        %2434 = vmatpush.msra.mxu0 0.0
        %2435 = vmatpush.msra.mxu0 0.0
        %2436 = vmatpush.msra.mxu0 0.0
        %2437 = vmatpush.msra.mxu0 %v2417
        %2438 = vmatmul.f32.gmra.mxu0 %v2420
        %v2439 = vpop.f32.mrf.mxu0
        %v2440 = vadd.f32 0.0, %v2439
        %2441 = vdwg.mxu0
        %2442 = vrot.lane.b32.xlu0 %v438, 56
        %v2443 = vpop.permute.xlu0 %2442
        %v2446 = vsel %vm476, %v2226, 0
        %2448 = vmatpush.msra.mxu0 0.0
        %2449 = vmatpush.msra.mxu0 0.0
        %2450 = vmatpush.msra.mxu0 0.0
        %2451 = vmatpush.msra.mxu0 0.0
        %2452 = vmatpush.msra.mxu0 0.0
        %2453 = vmatpush.msra.mxu0 0.0
        %2454 = vmatpush.msra.mxu0 0.0
        %2455 = vmatpush.msra.mxu0 0.0
        %2456 = vmatpush.msra.mxu0 0.0
        %2457 = vmatpush.msra.mxu0 0.0
        %2458 = vmatpush.msra.mxu0 0.0
        %2459 = vmatpush.msra.mxu0 0.0
        %2460 = vmatpush.msra.mxu0 0.0
        %2461 = vmatpush.msra.mxu0 0.0
        %2462 = vmatpush.msra.mxu0 0.0
        %2463 = vmatpush.msra.mxu0 %v2443
        %2464 = vmatmul.f32.gmra.mxu0 %v2446
        %v2465 = vpop.f32.mrf.mxu0
        %v2466 = vadd.f32 0.0, %v2465
        %2467 = vdwg.mxu0
        %2468 = vrot.lane.b32.xlu0 %v440, 56
        %v2469 = vpop.permute.xlu0 %2468
        %v2472 = vsel %vm476, %v2227, 0
        %2474 = vmatpush.msra.mxu0 0.0
        %2475 = vmatpush.msra.mxu0 0.0
        %2476 = vmatpush.msra.mxu0 0.0
        %2477 = vmatpush.msra.mxu0 0.0
        %2478 = vmatpush.msra.mxu0 0.0
        %2479 = vmatpush.msra.mxu0 0.0
        %2480 = vmatpush.msra.mxu0 0.0
        %2481 = vmatpush.msra.mxu0 0.0
        %2482 = vmatpush.msra.mxu0 0.0
        %2483 = vmatpush.msra.mxu0 0.0
        %2484 = vmatpush.msra.mxu0 0.0
        %2485 = vmatpush.msra.mxu0 0.0
        %2486 = vmatpush.msra.mxu0 0.0
        %2487 = vmatpush.msra.mxu0 0.0
        %2488 = vmatpush.msra.mxu0 0.0
        %2489 = vmatpush.msra.mxu0 %v2469
        %2490 = vmatmul.f32.gmra.mxu0 %v2472
        %v2491 = vpop.f32.mrf.mxu0
        %v2492 = vadd.f32 0.0, %v2491
        %2493 = vdwg.mxu0
        %2494 = vrot.lane.b32.xlu0 %v443, 56
        %v2495 = vpop.permute.xlu0 %2494
        %v2498 = vsel %vm476, %v2228, 0
        %2500 = vmatpush.msra.mxu0 0.0
        %2501 = vmatpush.msra.mxu0 0.0
        %2502 = vmatpush.msra.mxu0 0.0
        %2503 = vmatpush.msra.mxu0 0.0
        %2504 = vmatpush.msra.mxu0 0.0
        %2505 = vmatpush.msra.mxu0 0.0
        %2506 = vmatpush.msra.mxu0 0.0
        %2507 = vmatpush.msra.mxu0 0.0
        %2508 = vmatpush.msra.mxu0 0.0
        %2509 = vmatpush.msra.mxu0 0.0
        %2510 = vmatpush.msra.mxu0 0.0
        %2511 = vmatpush.msra.mxu0 0.0
        %2512 = vmatpush.msra.mxu0 0.0
        %2513 = vmatpush.msra.mxu0 0.0
        %2514 = vmatpush.msra.mxu0 0.0
        %2515 = vmatpush.msra.mxu0 %v2495
        %2516 = vmatmul.f32.gmra.mxu0 %v2498
        %v2517 = vpop.f32.mrf.mxu0
        %v2518 = vadd.f32 0.0, %v2517
        %2519 = vdwg.mxu0
        %2520 = vrot.lane.b32.xlu0 %v445, 56
        %v2521 = vpop.permute.xlu0 %2520
        %v2524 = vsel %vm476, %v2229, 0
        %2526 = vmatpush.msra.mxu0 0.0
        %2527 = vmatpush.msra.mxu0 0.0
        %2528 = vmatpush.msra.mxu0 0.0
        %2529 = vmatpush.msra.mxu0 0.0
        %2530 = vmatpush.msra.mxu0 0.0
        %2531 = vmatpush.msra.mxu0 0.0
        %2532 = vmatpush.msra.mxu0 0.0
        %2533 = vmatpush.msra.mxu0 0.0
        %2534 = vmatpush.msra.mxu0 0.0
        %2535 = vmatpush.msra.mxu0 0.0
        %2536 = vmatpush.msra.mxu0 0.0
        %2537 = vmatpush.msra.mxu0 0.0
        %2538 = vmatpush.msra.mxu0 0.0
        %2539 = vmatpush.msra.mxu0 0.0
        %2540 = vmatpush.msra.mxu0 0.0
        %2541 = vmatpush.msra.mxu0 %v2521
        %2542 = vmatmul.f32.gmra.mxu0 %v2524
        %v2543 = vpop.f32.mrf.mxu0
        %v2544 = vadd.f32 0.0, %v2543
        %2545 = vdwg.mxu0
        %2546 = vrot.lane.b32.xlu0 %v448, 56
        %v2547 = vpop.permute.xlu0 %2546
        %v2550 = vsel %vm476, %v2230, 0
        %2552 = vmatpush.msra.mxu0 0.0
        %2553 = vmatpush.msra.mxu0 0.0
        %2554 = vmatpush.msra.mxu0 0.0
        %2555 = vmatpush.msra.mxu0 0.0
        %2556 = vmatpush.msra.mxu0 0.0
        %2557 = vmatpush.msra.mxu0 0.0
        %2558 = vmatpush.msra.mxu0 0.0
        %2559 = vmatpush.msra.mxu0 0.0
        %2560 = vmatpush.msra.mxu0 0.0
        %2561 = vmatpush.msra.mxu0 0.0
        %2562 = vmatpush.msra.mxu0 0.0
        %2563 = vmatpush.msra.mxu0 0.0
        %2564 = vmatpush.msra.mxu0 0.0
        %2565 = vmatpush.msra.mxu0 0.0
        %2566 = vmatpush.msra.mxu0 0.0
        %2567 = vmatpush.msra.mxu0 %v2547
        %2568 = vmatmul.f32.gmra.mxu0 %v2550
        %v2569 = vpop.f32.mrf.mxu0
        %v2570 = vadd.f32 0.0, %v2569
        %2571 = vdwg.mxu0
        %2572 = vrot.lane.b32.xlu0 %v450, 56
        %v2573 = vpop.permute.xlu0 %2572
        %v2576 = vsel %vm476, %v2231, 0
        %2578 = vmatpush.msra.mxu0 0.0
        %2579 = vmatpush.msra.mxu0 0.0
        %2580 = vmatpush.msra.mxu0 0.0
        %2581 = vmatpush.msra.mxu0 0.0
        %2582 = vmatpush.msra.mxu0 0.0
        %2583 = vmatpush.msra.mxu0 0.0
        %2584 = vmatpush.msra.mxu0 0.0
        %2585 = vmatpush.msra.mxu0 0.0
        %2586 = vmatpush.msra.mxu0 0.0
        %2587 = vmatpush.msra.mxu0 0.0
        %2588 = vmatpush.msra.mxu0 0.0
        %2589 = vmatpush.msra.mxu0 0.0
        %2590 = vmatpush.msra.mxu0 0.0
        %2591 = vmatpush.msra.mxu0 0.0
        %2592 = vmatpush.msra.mxu0 0.0
        %2593 = vmatpush.msra.mxu0 %v2573
        %2594 = vmatmul.f32.gmra.mxu0 %v2576
        %v2595 = vpop.f32.mrf.mxu0
        %v2596 = vadd.f32 0.0, %v2595
        %2597 = vdwg.mxu0
        %2598 = vrot.lane.b32.xlu0 %v453, 56
        %v2599 = vpop.permute.xlu0 %2598
        %v2602 = vsel %vm476, %v2232, 0
        %2604 = vmatpush.msra.mxu0 0.0
        %2605 = vmatpush.msra.mxu0 0.0
        %2606 = vmatpush.msra.mxu0 0.0
        %2607 = vmatpush.msra.mxu0 0.0
        %2608 = vmatpush.msra.mxu0 0.0
        %2609 = vmatpush.msra.mxu0 0.0
        %2610 = vmatpush.msra.mxu0 0.0
        %2611 = vmatpush.msra.mxu0 0.0
        %2612 = vmatpush.msra.mxu0 0.0
        %2613 = vmatpush.msra.mxu0 0.0
        %2614 = vmatpush.msra.mxu0 0.0
        %2615 = vmatpush.msra.mxu0 0.0
        %2616 = vmatpush.msra.mxu0 0.0
        %2617 = vmatpush.msra.mxu0 0.0
        %2618 = vmatpush.msra.mxu0 0.0
        %2619 = vmatpush.msra.mxu0 %v2599
        %2620 = vmatmul.f32.gmra.mxu0 %v2602
        %v2621 = vpop.f32.mrf.mxu0
        %v2622 = vadd.f32 0.0, %v2621
        %2623 = vdwg.mxu0
        %2624 = vrot.lane.b32.xlu0 %v455, 56
        %v2625 = vpop.permute.xlu0 %2624
        %v2628 = vsel %vm476, %v2233, 0
        %2630 = vmatpush.msra.mxu0 0.0
        %2631 = vmatpush.msra.mxu0 0.0
        %2632 = vmatpush.msra.mxu0 0.0
        %2633 = vmatpush.msra.mxu0 0.0
        %2634 = vmatpush.msra.mxu0 0.0
        %2635 = vmatpush.msra.mxu0 0.0
        %2636 = vmatpush.msra.mxu0 0.0
        %2637 = vmatpush.msra.mxu0 0.0
        %2638 = vmatpush.msra.mxu0 0.0
        %2639 = vmatpush.msra.mxu0 0.0
        %2640 = vmatpush.msra.mxu0 0.0
        %2641 = vmatpush.msra.mxu0 0.0
        %2642 = vmatpush.msra.mxu0 0.0
        %2643 = vmatpush.msra.mxu0 0.0
        %2644 = vmatpush.msra.mxu0 0.0
        %2645 = vmatpush.msra.mxu0 %v2625
        %2646 = vmatmul.f32.gmra.mxu0 %v2628
        %v2647 = vpop.f32.mrf.mxu0
        %v2648 = vadd.f32 0.0, %v2647
        %2649 = vdwg.mxu0
        %2666 = vrot.lane.b32.xlu0 %v2258, 8
        %v2667 = vpop.permute.xlu0 %2666
        %2668 = vrot.lane.b32.xlu0 %v2284, 8
        %v2669 = vpop.permute.xlu0 %2668
        %2670 = vrot.lane.b32.xlu0 %v2310, 8
        %v2671 = vpop.permute.xlu0 %2670
        %2672 = vrot.lane.b32.xlu0 %v2336, 8
        %v2673 = vpop.permute.xlu0 %2672
        %2674 = vrot.lane.b32.xlu0 %v2362, 8
        %v2675 = vpop.permute.xlu0 %2674
        %2676 = vrot.lane.b32.xlu0 %v2388, 8
        %v2677 = vpop.permute.xlu0 %2676
        %2678 = vrot.lane.b32.xlu0 %v2414, 8
        %v2679 = vpop.permute.xlu0 %2678
        %2680 = vrot.lane.b32.xlu0 %v2440, 8
        %v2681 = vpop.permute.xlu0 %2680
        %2682 = vrot.lane.b32.xlu0 %v2466, 8
        %v2683 = vpop.permute.xlu0 %2682
        %2684 = vrot.lane.b32.xlu0 %v2492, 8
        %v2685 = vpop.permute.xlu0 %2684
        %2686 = vrot.lane.b32.xlu0 %v2518, 8
        %v2687 = vpop.permute.xlu0 %2686
        %2688 = vrot.lane.b32.xlu0 %v2544, 8
        %v2689 = vpop.permute.xlu0 %2688
        %2690 = vrot.lane.b32.xlu0 %v2570, 8
        %v2691 = vpop.permute.xlu0 %2690
        %2692 = vrot.lane.b32.xlu0 %v2596, 8
        %v2693 = vpop.permute.xlu0 %2692
        %2694 = vrot.lane.b32.xlu0 %v2622, 8
        %v2695 = vpop.permute.xlu0 %2694
        %2696 = vrot.lane.b32.xlu0 %v2648, 8
        %v2697 = vpop.permute.xlu0 %2696
        %vm2714 = vcmask 130112
        %2715 = vst.msk [vmem:[#allocation2] sm:$0xff] %vm2714, %v2667
        %2716 = vst.msk [vmem:[#allocation2 + $0x8] sm:$0xff] %vm2714, %v2669
        %2717 = vst.msk [vmem:[#allocation2 + $0x10] sm:$0xff] %vm2714, %v2671
        %2718 = vst.msk [vmem:[#allocation2 + $0x18] sm:$0xff] %vm2714, %v2673
        %2719 = vst.msk [vmem:[#allocation2 + $0x20] sm:$0xff] %vm2714, %v2675
        %2720 = vst.msk [vmem:[#allocation2 + $0x28] sm:$0xff] %vm2714, %v2677
        %2721 = vst.msk [vmem:[#allocation2 + $0x30] sm:$0xff] %vm2714, %v2679
        %2722 = vst.msk [vmem:[#allocation2 + $0x38] sm:$0xff] %vm2714, %v2681
        %2723 = vst.msk [vmem:[#allocation2 + $0x40] sm:$0xff] %vm2714, %v2683
        %2724 = vst.msk [vmem:[#allocation2 + $0x48] sm:$0xff] %vm2714, %v2685
        %2725 = vst.msk [vmem:[#allocation2 + $0x50] sm:$0xff] %vm2714, %v2687
        %2726 = vst.msk [vmem:[#allocation2 + $0x58] sm:$0xff] %vm2714, %v2689
        %2727 = vst.msk [vmem:[#allocation2 + $0x60] sm:$0xff] %vm2714, %v2691
        %2728 = vst.msk [vmem:[#allocation2 + $0x68] sm:$0xff] %vm2714, %v2693
        %2729 = vst.msk [vmem:[#allocation2 + $0x70] sm:$0xff] %vm2714, %v2695
        %2730 = vst.msk [vmem:[#allocation2 + $0x78] sm:$0xff] %vm2714, %v2697
        %2731 = vrot.lane.b32.xlu0 %v418, 112
        %v2732 = vpop.permute.xlu0 %2731
        %2733 = vrot.lane.b32.xlu0 %v418, 80
        %v2734 = vpop.permute.xlu0 %2733
        %v2735 = vsel %vm476, %v2732, 0
        %v2737 = vsel %vm476, %v2734, 0
        %2739 = vmatpush.xpose.msra.mxu0 0.0
        %2740 = vmatpush.xpose.msra.mxu0 0.0
        %2741 = vmatpush.xpose.msra.mxu0 0.0
        %2742 = vmatpush.xpose.msra.mxu0 0.0
        %2743 = vmatpush.xpose.msra.mxu0 0.0
        %2744 = vmatpush.xpose.msra.mxu0 0.0
        %2745 = vmatpush.xpose.msra.mxu0 0.0
        %2746 = vmatpush.xpose.msra.mxu0 0.0
        %2747 = vmatpush.xpose.msra.mxu0 0.0
        %2748 = vmatpush.xpose.msra.mxu0 0.0
        %2749 = vmatpush.xpose.msra.mxu0 0.0
        %2750 = vmatpush.xpose.msra.mxu0 0.0
        %2751 = vmatpush.xpose.msra.mxu0 0.0
        %2752 = vmatpush.xpose.msra.mxu0 0.0
        %2753 = vmatpush.xpose.msra.mxu0 0.0
        %2754 = vmatpush.xpose.msra.mxu0 %v2737
        %2755 = vmatmul.f32.gmra.mxu0 %v2735
        %v2756 = vpop.f32.mrf.mxu0
        %v2757 = vadd.f32 0.0, %v2756
        %2758 = vdwg.mxu0
        %2759 = vrot.lane.b32.xlu0 %v420, 112
        %v2760 = vpop.permute.xlu0 %2759
        %2761 = vrot.lane.b32.xlu0 %v420, 80
        %v2762 = vpop.permute.xlu0 %2761
        %v2763 = vsel %vm476, %v2760, 0
        %v2765 = vsel %vm476, %v2762, 0
        %2767 = vmatpush.xpose.msra.mxu0 0.0
        %2768 = vmatpush.xpose.msra.mxu0 0.0
        %2769 = vmatpush.xpose.msra.mxu0 0.0
        %2770 = vmatpush.xpose.msra.mxu0 0.0
        %2771 = vmatpush.xpose.msra.mxu0 0.0
        %2772 = vmatpush.xpose.msra.mxu0 0.0
        %2773 = vmatpush.xpose.msra.mxu0 0.0
        %2774 = vmatpush.xpose.msra.mxu0 0.0
        %2775 = vmatpush.xpose.msra.mxu0 0.0
        %2776 = vmatpush.xpose.msra.mxu0 0.0
        %2777 = vmatpush.xpose.msra.mxu0 0.0
        %2778 = vmatpush.xpose.msra.mxu0 0.0
        %2779 = vmatpush.xpose.msra.mxu0 0.0
        %2780 = vmatpush.xpose.msra.mxu0 0.0
        %2781 = vmatpush.xpose.msra.mxu0 0.0
        %2782 = vmatpush.xpose.msra.mxu0 %v2765
        %2783 = vmatmul.f32.gmra.mxu0 %v2763
        %v2784 = vpop.f32.mrf.mxu0
        %v2785 = vadd.f32 0.0, %v2784
        %2786 = vdwg.mxu0
        %2787 = vrot.lane.b32.xlu0 %v423, 112
        %v2788 = vpop.permute.xlu0 %2787
        %2789 = vrot.lane.b32.xlu0 %v423, 80
        %v2790 = vpop.permute.xlu0 %2789
        %v2791 = vsel %vm476, %v2788, 0
        %v2793 = vsel %vm476, %v2790, 0
        %2795 = vmatpush.xpose.msra.mxu0 0.0
        %2796 = vmatpush.xpose.msra.mxu0 0.0
        %2797 = vmatpush.xpose.msra.mxu0 0.0
        %2798 = vmatpush.xpose.msra.mxu0 0.0
        %2799 = vmatpush.xpose.msra.mxu0 0.0
        %2800 = vmatpush.xpose.msra.mxu0 0.0
        %2801 = vmatpush.xpose.msra.mxu0 0.0
        %2802 = vmatpush.xpose.msra.mxu0 0.0
        %2803 = vmatpush.xpose.msra.mxu0 0.0
        %2804 = vmatpush.xpose.msra.mxu0 0.0
        %2805 = vmatpush.xpose.msra.mxu0 0.0
        %2806 = vmatpush.xpose.msra.mxu0 0.0
        %2807 = vmatpush.xpose.msra.mxu0 0.0
        %2808 = vmatpush.xpose.msra.mxu0 0.0
        %2809 = vmatpush.xpose.msra.mxu0 0.0
        %2810 = vmatpush.xpose.msra.mxu0 %v2793
        %2811 = vmatmul.f32.gmra.mxu0 %v2791
        %v2812 = vpop.f32.mrf.mxu0
        %v2813 = vadd.f32 0.0, %v2812
        %2814 = vdwg.mxu0
        %2815 = vrot.lane.b32.xlu0 %v425, 112
        %v2816 = vpop.permute.xlu0 %2815
        %2817 = vrot.lane.b32.xlu0 %v425, 80
        %v2818 = vpop.permute.xlu0 %2817
        %v2819 = vsel %vm476, %v2816, 0
        %v2821 = vsel %vm476, %v2818, 0
        %2823 = vmatpush.xpose.msra.mxu0 0.0
        %2824 = vmatpush.xpose.msra.mxu0 0.0
        %2825 = vmatpush.xpose.msra.mxu0 0.0
        %2826 = vmatpush.xpose.msra.mxu0 0.0
        %2827 = vmatpush.xpose.msra.mxu0 0.0
        %2828 = vmatpush.xpose.msra.mxu0 0.0
        %2829 = vmatpush.xpose.msra.mxu0 0.0
        %2830 = vmatpush.xpose.msra.mxu0 0.0
        %2831 = vmatpush.xpose.msra.mxu0 0.0
        %2832 = vmatpush.xpose.msra.mxu0 0.0
        %2833 = vmatpush.xpose.msra.mxu0 0.0
        %2834 = vmatpush.xpose.msra.mxu0 0.0
        %2835 = vmatpush.xpose.msra.mxu0 0.0
        %2836 = vmatpush.xpose.msra.mxu0 0.0
        %2837 = vmatpush.xpose.msra.mxu0 0.0
        %2838 = vmatpush.xpose.msra.mxu0 %v2821
        %2839 = vmatmul.f32.gmra.mxu0 %v2819
        %v2840 = vpop.f32.mrf.mxu0
        %v2841 = vadd.f32 0.0, %v2840
        %2842 = vdwg.mxu0
        %2843 = vrot.lane.b32.xlu0 %v428, 112
        %v2844 = vpop.permute.xlu0 %2843
        %2845 = vrot.lane.b32.xlu0 %v428, 80
        %v2846 = vpop.permute.xlu0 %2845
        %v2847 = vsel %vm476, %v2844, 0
        %v2849 = vsel %vm476, %v2846, 0
        %2851 = vmatpush.xpose.msra.mxu0 0.0
        %2852 = vmatpush.xpose.msra.mxu0 0.0
        %2853 = vmatpush.xpose.msra.mxu0 0.0
        %2854 = vmatpush.xpose.msra.mxu0 0.0
        %2855 = vmatpush.xpose.msra.mxu0 0.0
        %2856 = vmatpush.xpose.msra.mxu0 0.0
        %2857 = vmatpush.xpose.msra.mxu0 0.0
        %2858 = vmatpush.xpose.msra.mxu0 0.0
        %2859 = vmatpush.xpose.msra.mxu0 0.0
        %2860 = vmatpush.xpose.msra.mxu0 0.0
        %2861 = vmatpush.xpose.msra.mxu0 0.0
        %2862 = vmatpush.xpose.msra.mxu0 0.0
        %2863 = vmatpush.xpose.msra.mxu0 0.0
        %2864 = vmatpush.xpose.msra.mxu0 0.0
        %2865 = vmatpush.xpose.msra.mxu0 0.0
        %2866 = vmatpush.xpose.msra.mxu0 %v2849
        %2867 = vmatmul.f32.gmra.mxu0 %v2847
        %v2868 = vpop.f32.mrf.mxu0
        %v2869 = vadd.f32 0.0, %v2868
        %2870 = vdwg.mxu0
        %2871 = vrot.lane.b32.xlu0 %v430, 112
        %v2872 = vpop.permute.xlu0 %2871
        %2873 = vrot.lane.b32.xlu0 %v430, 80
        %v2874 = vpop.permute.xlu0 %2873
        %v2875 = vsel %vm476, %v2872, 0
        %v2877 = vsel %vm476, %v2874, 0
        %2879 = vmatpush.xpose.msra.mxu0 0.0
        %2880 = vmatpush.xpose.msra.mxu0 0.0
        %2881 = vmatpush.xpose.msra.mxu0 0.0
        %2882 = vmatpush.xpose.msra.mxu0 0.0
        %2883 = vmatpush.xpose.msra.mxu0 0.0
        %2884 = vmatpush.xpose.msra.mxu0 0.0
        %2885 = vmatpush.xpose.msra.mxu0 0.0
        %2886 = vmatpush.xpose.msra.mxu0 0.0
        %2887 = vmatpush.xpose.msra.mxu0 0.0
        %2888 = vmatpush.xpose.msra.mxu0 0.0
        %2889 = vmatpush.xpose.msra.mxu0 0.0
        %2890 = vmatpush.xpose.msra.mxu0 0.0
        %2891 = vmatpush.xpose.msra.mxu0 0.0
        %2892 = vmatpush.xpose.msra.mxu0 0.0
        %2893 = vmatpush.xpose.msra.mxu0 0.0
        %2894 = vmatpush.xpose.msra.mxu0 %v2877
        %2895 = vmatmul.f32.gmra.mxu0 %v2875
        %v2896 = vpop.f32.mrf.mxu0
        %v2897 = vadd.f32 0.0, %v2896
        %2898 = vdwg.mxu0
        %2899 = vrot.lane.b32.xlu0 %v433, 112
        %v2900 = vpop.permute.xlu0 %2899
        %2901 = vrot.lane.b32.xlu0 %v433, 80
        %v2902 = vpop.permute.xlu0 %2901
        %v2903 = vsel %vm476, %v2900, 0
        %v2905 = vsel %vm476, %v2902, 0
        %2907 = vmatpush.xpose.msra.mxu0 0.0
        %2908 = vmatpush.xpose.msra.mxu0 0.0
        %2909 = vmatpush.xpose.msra.mxu0 0.0
        %2910 = vmatpush.xpose.msra.mxu0 0.0
        %2911 = vmatpush.xpose.msra.mxu0 0.0
        %2912 = vmatpush.xpose.msra.mxu0 0.0
        %2913 = vmatpush.xpose.msra.mxu0 0.0
        %2914 = vmatpush.xpose.msra.mxu0 0.0
        %2915 = vmatpush.xpose.msra.mxu0 0.0
        %2916 = vmatpush.xpose.msra.mxu0 0.0
        %2917 = vmatpush.xpose.msra.mxu0 0.0
        %2918 = vmatpush.xpose.msra.mxu0 0.0
        %2919 = vmatpush.xpose.msra.mxu0 0.0
        %2920 = vmatpush.xpose.msra.mxu0 0.0
        %2921 = vmatpush.xpose.msra.mxu0 0.0
        %2922 = vmatpush.xpose.msra.mxu0 %v2905
        %2923 = vmatmul.f32.gmra.mxu0 %v2903
        %v2924 = vpop.f32.mrf.mxu0
        %v2925 = vadd.f32 0.0, %v2924
        %2926 = vdwg.mxu0
        %2927 = vrot.lane.b32.xlu0 %v435, 112
        %v2928 = vpop.permute.xlu0 %2927
        %2929 = vrot.lane.b32.xlu0 %v435, 80
        %v2930 = vpop.permute.xlu0 %2929
        %v2931 = vsel %vm476, %v2928, 0
        %v2933 = vsel %vm476, %v2930, 0
        %2935 = vmatpush.xpose.msra.mxu0 0.0
        %2936 = vmatpush.xpose.msra.mxu0 0.0
        %2937 = vmatpush.xpose.msra.mxu0 0.0
        %2938 = vmatpush.xpose.msra.mxu0 0.0
        %2939 = vmatpush.xpose.msra.mxu0 0.0
        %2940 = vmatpush.xpose.msra.mxu0 0.0
        %2941 = vmatpush.xpose.msra.mxu0 0.0
        %2942 = vmatpush.xpose.msra.mxu0 0.0
        %2943 = vmatpush.xpose.msra.mxu0 0.0
        %2944 = vmatpush.xpose.msra.mxu0 0.0
        %2945 = vmatpush.xpose.msra.mxu0 0.0
        %2946 = vmatpush.xpose.msra.mxu0 0.0
        %2947 = vmatpush.xpose.msra.mxu0 0.0
        %2948 = vmatpush.xpose.msra.mxu0 0.0
        %2949 = vmatpush.xpose.msra.mxu0 0.0
        %2950 = vmatpush.xpose.msra.mxu0 %v2933
        %2951 = vmatmul.f32.gmra.mxu0 %v2931
        %v2952 = vpop.f32.mrf.mxu0
        %v2953 = vadd.f32 0.0, %v2952
        %2954 = vdwg.mxu0
        %2955 = vrot.lane.b32.xlu0 %v438, 112
        %v2956 = vpop.permute.xlu0 %2955
        %2957 = vrot.lane.b32.xlu0 %v438, 80
        %v2958 = vpop.permute.xlu0 %2957
        %v2959 = vsel %vm476, %v2956, 0
        %v2961 = vsel %vm476, %v2958, 0
        %2963 = vmatpush.xpose.msra.mxu0 0.0
        %2964 = vmatpush.xpose.msra.mxu0 0.0
        %2965 = vmatpush.xpose.msra.mxu0 0.0
        %2966 = vmatpush.xpose.msra.mxu0 0.0
        %2967 = vmatpush.xpose.msra.mxu0 0.0
        %2968 = vmatpush.xpose.msra.mxu0 0.0
        %2969 = vmatpush.xpose.msra.mxu0 0.0
        %2970 = vmatpush.xpose.msra.mxu0 0.0
        %2971 = vmatpush.xpose.msra.mxu0 0.0
        %2972 = vmatpush.xpose.msra.mxu0 0.0
        %2973 = vmatpush.xpose.msra.mxu0 0.0
        %2974 = vmatpush.xpose.msra.mxu0 0.0
        %2975 = vmatpush.xpose.msra.mxu0 0.0
        %2976 = vmatpush.xpose.msra.mxu0 0.0
        %2977 = vmatpush.xpose.msra.mxu0 0.0
        %2978 = vmatpush.xpose.msra.mxu0 %v2961
        %2979 = vmatmul.f32.gmra.mxu0 %v2959
        %v2980 = vpop.f32.mrf.mxu0
        %v2981 = vadd.f32 0.0, %v2980
        %2982 = vdwg.mxu0
        %2983 = vrot.lane.b32.xlu0 %v440, 112
        %v2984 = vpop.permute.xlu0 %2983
        %2985 = vrot.lane.b32.xlu0 %v440, 80
        %v2986 = vpop.permute.xlu0 %2985
        %v2987 = vsel %vm476, %v2984, 0
        %v2989 = vsel %vm476, %v2986, 0
        %2991 = vmatpush.xpose.msra.mxu0 0.0
        %2992 = vmatpush.xpose.msra.mxu0 0.0
        %2993 = vmatpush.xpose.msra.mxu0 0.0
        %2994 = vmatpush.xpose.msra.mxu0 0.0
        %2995 = vmatpush.xpose.msra.mxu0 0.0
        %2996 = vmatpush.xpose.msra.mxu0 0.0
        %2997 = vmatpush.xpose.msra.mxu0 0.0
        %2998 = vmatpush.xpose.msra.mxu0 0.0
        %2999 = vmatpush.xpose.msra.mxu0 0.0
        %3000 = vmatpush.xpose.msra.mxu0 0.0
        %3001 = vmatpush.xpose.msra.mxu0 0.0
        %3002 = vmatpush.xpose.msra.mxu0 0.0
        %3003 = vmatpush.xpose.msra.mxu0 0.0
        %3004 = vmatpush.xpose.msra.mxu0 0.0
        %3005 = vmatpush.xpose.msra.mxu0 0.0
        %3006 = vmatpush.xpose.msra.mxu0 %v2989
        %3007 = vmatmul.f32.gmra.mxu0 %v2987
        %v3008 = vpop.f32.mrf.mxu0
        %v3009 = vadd.f32 0.0, %v3008
        %3010 = vdwg.mxu0
        %3011 = vrot.lane.b32.xlu0 %v443, 112
        %v3012 = vpop.permute.xlu0 %3011
        %3013 = vrot.lane.b32.xlu0 %v443, 80
        %v3014 = vpop.permute.xlu0 %3013
        %v3015 = vsel %vm476, %v3012, 0
        %v3017 = vsel %vm476, %v3014, 0
        %3019 = vmatpush.xpose.msra.mxu0 0.0
        %3020 = vmatpush.xpose.msra.mxu0 0.0
        %3021 = vmatpush.xpose.msra.mxu0 0.0
        %3022 = vmatpush.xpose.msra.mxu0 0.0
        %3023 = vmatpush.xpose.msra.mxu0 0.0
        %3024 = vmatpush.xpose.msra.mxu0 0.0
        %3025 = vmatpush.xpose.msra.mxu0 0.0
        %3026 = vmatpush.xpose.msra.mxu0 0.0
        %3027 = vmatpush.xpose.msra.mxu0 0.0
        %3028 = vmatpush.xpose.msra.mxu0 0.0
        %3029 = vmatpush.xpose.msra.mxu0 0.0
        %3030 = vmatpush.xpose.msra.mxu0 0.0
        %3031 = vmatpush.xpose.msra.mxu0 0.0
        %3032 = vmatpush.xpose.msra.mxu0 0.0
        %3033 = vmatpush.xpose.msra.mxu0 0.0
        %3034 = vmatpush.xpose.msra.mxu0 %v3017
        %3035 = vmatmul.f32.gmra.mxu0 %v3015
        %v3036 = vpop.f32.mrf.mxu0
        %v3037 = vadd.f32 0.0, %v3036
        %3038 = vdwg.mxu0
        %3039 = vrot.lane.b32.xlu0 %v445, 112
        %v3040 = vpop.permute.xlu0 %3039
        %3041 = vrot.lane.b32.xlu0 %v445, 80
        %v3042 = vpop.permute.xlu0 %3041
        %v3043 = vsel %vm476, %v3040, 0
        %v3045 = vsel %vm476, %v3042, 0
        %3047 = vmatpush.xpose.msra.mxu0 0.0
        %3048 = vmatpush.xpose.msra.mxu0 0.0
        %3049 = vmatpush.xpose.msra.mxu0 0.0
        %3050 = vmatpush.xpose.msra.mxu0 0.0
        %3051 = vmatpush.xpose.msra.mxu0 0.0
        %3052 = vmatpush.xpose.msra.mxu0 0.0
        %3053 = vmatpush.xpose.msra.mxu0 0.0
        %3054 = vmatpush.xpose.msra.mxu0 0.0
        %3055 = vmatpush.xpose.msra.mxu0 0.0
        %3056 = vmatpush.xpose.msra.mxu0 0.0
        %3057 = vmatpush.xpose.msra.mxu0 0.0
        %3058 = vmatpush.xpose.msra.mxu0 0.0
        %3059 = vmatpush.xpose.msra.mxu0 0.0
        %3060 = vmatpush.xpose.msra.mxu0 0.0
        %3061 = vmatpush.xpose.msra.mxu0 0.0
        %3062 = vmatpush.xpose.msra.mxu0 %v3045
        %3063 = vmatmul.f32.gmra.mxu0 %v3043
        %v3064 = vpop.f32.mrf.mxu0
        %v3065 = vadd.f32 0.0, %v3064
        %3066 = vdwg.mxu0
        %3067 = vrot.lane.b32.xlu0 %v448, 112
        %v3068 = vpop.permute.xlu0 %3067
        %3069 = vrot.lane.b32.xlu0 %v448, 80
        %v3070 = vpop.permute.xlu0 %3069
        %v3071 = vsel %vm476, %v3068, 0
        %v3073 = vsel %vm476, %v3070, 0
        %3075 = vmatpush.xpose.msra.mxu0 0.0
        %3076 = vmatpush.xpose.msra.mxu0 0.0
        %3077 = vmatpush.xpose.msra.mxu0 0.0
        %3078 = vmatpush.xpose.msra.mxu0 0.0
        %3079 = vmatpush.xpose.msra.mxu0 0.0
        %3080 = vmatpush.xpose.msra.mxu0 0.0
        %3081 = vmatpush.xpose.msra.mxu0 0.0
        %3082 = vmatpush.xpose.msra.mxu0 0.0
        %3083 = vmatpush.xpose.msra.mxu0 0.0
        %3084 = vmatpush.xpose.msra.mxu0 0.0
        %3085 = vmatpush.xpose.msra.mxu0 0.0
        %3086 = vmatpush.xpose.msra.mxu0 0.0
        %3087 = vmatpush.xpose.msra.mxu0 0.0
        %3088 = vmatpush.xpose.msra.mxu0 0.0
        %3089 = vmatpush.xpose.msra.mxu0 0.0
        %3090 = vmatpush.xpose.msra.mxu0 %v3073
        %3091 = vmatmul.f32.gmra.mxu0 %v3071
        %v3092 = vpop.f32.mrf.mxu0
        %v3093 = vadd.f32 0.0, %v3092
        %3094 = vdwg.mxu0
        %3095 = vrot.lane.b32.xlu0 %v450, 112
        %v3096 = vpop.permute.xlu0 %3095
        %3097 = vrot.lane.b32.xlu0 %v450, 80
        %v3098 = vpop.permute.xlu0 %3097
        %v3099 = vsel %vm476, %v3096, 0
        %v3101 = vsel %vm476, %v3098, 0
        %3103 = vmatpush.xpose.msra.mxu0 0.0
        %3104 = vmatpush.xpose.msra.mxu0 0.0
        %3105 = vmatpush.xpose.msra.mxu0 0.0
        %3106 = vmatpush.xpose.msra.mxu0 0.0
        %3107 = vmatpush.xpose.msra.mxu0 0.0
        %3108 = vmatpush.xpose.msra.mxu0 0.0
        %3109 = vmatpush.xpose.msra.mxu0 0.0
        %3110 = vmatpush.xpose.msra.mxu0 0.0
        %3111 = vmatpush.xpose.msra.mxu0 0.0
        %3112 = vmatpush.xpose.msra.mxu0 0.0
        %3113 = vmatpush.xpose.msra.mxu0 0.0
        %3114 = vmatpush.xpose.msra.mxu0 0.0
        %3115 = vmatpush.xpose.msra.mxu0 0.0
        %3116 = vmatpush.xpose.msra.mxu0 0.0
        %3117 = vmatpush.xpose.msra.mxu0 0.0
        %3118 = vmatpush.xpose.msra.mxu0 %v3101
        %3119 = vmatmul.f32.gmra.mxu0 %v3099
        %v3120 = vpop.f32.mrf.mxu0
        %v3121 = vadd.f32 0.0, %v3120
        %3122 = vdwg.mxu0
        %3123 = vrot.lane.b32.xlu0 %v453, 112
        %v3124 = vpop.permute.xlu0 %3123
        %3125 = vrot.lane.b32.xlu0 %v453, 80
        %v3126 = vpop.permute.xlu0 %3125
        %v3127 = vsel %vm476, %v3124, 0
        %v3129 = vsel %vm476, %v3126, 0
        %3131 = vmatpush.xpose.msra.mxu0 0.0
        %3132 = vmatpush.xpose.msra.mxu0 0.0
        %3133 = vmatpush.xpose.msra.mxu0 0.0
        %3134 = vmatpush.xpose.msra.mxu0 0.0
        %3135 = vmatpush.xpose.msra.mxu0 0.0
        %3136 = vmatpush.xpose.msra.mxu0 0.0
        %3137 = vmatpush.xpose.msra.mxu0 0.0
        %3138 = vmatpush.xpose.msra.mxu0 0.0
        %3139 = vmatpush.xpose.msra.mxu0 0.0
        %3140 = vmatpush.xpose.msra.mxu0 0.0
        %3141 = vmatpush.xpose.msra.mxu0 0.0
        %3142 = vmatpush.xpose.msra.mxu0 0.0
        %3143 = vmatpush.xpose.msra.mxu0 0.0
        %3144 = vmatpush.xpose.msra.mxu0 0.0
        %3145 = vmatpush.xpose.msra.mxu0 0.0
        %3146 = vmatpush.xpose.msra.mxu0 %v3129
        %3147 = vmatmul.f32.gmra.mxu0 %v3127
        %v3148 = vpop.f32.mrf.mxu0
        %v3149 = vadd.f32 0.0, %v3148
        %3150 = vdwg.mxu0
        %3151 = vrot.lane.b32.xlu0 %v455, 112
        %v3152 = vpop.permute.xlu0 %3151
        %3153 = vrot.lane.b32.xlu0 %v455, 80
        %v3154 = vpop.permute.xlu0 %3153
        %v3155 = vsel %vm476, %v3152, 0
        %v3157 = vsel %vm476, %v3154, 0
        %3159 = vmatpush.xpose.msra.mxu0 0.0
        %3160 = vmatpush.xpose.msra.mxu0 0.0
        %3161 = vmatpush.xpose.msra.mxu0 0.0
        %3162 = vmatpush.xpose.msra.mxu0 0.0
        %3163 = vmatpush.xpose.msra.mxu0 0.0
        %3164 = vmatpush.xpose.msra.mxu0 0.0
        %3165 = vmatpush.xpose.msra.mxu0 0.0
        %3166 = vmatpush.xpose.msra.mxu0 0.0
        %3167 = vmatpush.xpose.msra.mxu0 0.0
        %3168 = vmatpush.xpose.msra.mxu0 0.0
        %3169 = vmatpush.xpose.msra.mxu0 0.0
        %3170 = vmatpush.xpose.msra.mxu0 0.0
        %3171 = vmatpush.xpose.msra.mxu0 0.0
        %3172 = vmatpush.xpose.msra.mxu0 0.0
        %3173 = vmatpush.xpose.msra.mxu0 0.0
        %3174 = vmatpush.xpose.msra.mxu0 %v3157
        %3175 = vmatmul.f32.gmra.mxu0 %v3155
        %v3176 = vpop.f32.mrf.mxu0
        %v3177 = vadd.f32 0.0, %v3176
        %3178 = vdwg.mxu0
        %v3179 = vmul.f32 %v2757, 0.35355338
        %v3180 = vmul.f32 %v2785, 0.35355338
        %v3181 = vmul.f32 %v2813, 0.35355338
        %v3182 = vmul.f32 %v2841, 0.35355338
        %v3183 = vmul.f32 %v2869, 0.35355338
        %v3184 = vmul.f32 %v2897, 0.35355338
        %v3185 = vmul.f32 %v2925, 0.35355338
        %v3186 = vmul.f32 %v2953, 0.35355338
        %v3187 = vmul.f32 %v2981, 0.35355338
        %v3188 = vmul.f32 %v3009, 0.35355338
        %v3189 = vmul.f32 %v3037, 0.35355338
        %v3190 = vmul.f32 %v3065, 0.35355338
        %v3191 = vmul.f32 %v3093, 0.35355338
        %v3192 = vmul.f32 %v3121, 0.35355338
        %v3193 = vmul.f32 %v3149, 0.35355338
        %v3194 = vmul.f32 %v3177, 0.35355338
        %v3195 = vadd.f32 %v3179, %v922
        %v3196 = vadd.f32 %v3180, %v923
        %v3197 = vadd.f32 %v3181, %v924
        %v3198 = vadd.f32 %v3182, %v925
        %v3199 = vadd.f32 %v3183, %v926
        %v3200 = vadd.f32 %v3184, %v927
        %v3201 = vadd.f32 %v3185, %v928
        %v3202 = vadd.f32 %v3186, %v929
        %v3203 = vadd.f32 %v3187, %v930
        %v3204 = vadd.f32 %v3188, %v931
        %v3205 = vadd.f32 %v3189, %v932
        %v3206 = vadd.f32 %v3190, %v933
        %v3207 = vadd.f32 %v3191, %v934
        %v3208 = vadd.f32 %v3192, %v935
        %v3209 = vadd.f32 %v3193, %v936
        %v3210 = vadd.f32 %v3194, %v937
        %v3211 = vsel %vm476, %v3195, -inf
        %3212 = vmax.xlane.f32.xlu0 %v3211
        %v3213 = vpop.xlane.xlu0 %3212
        %v3214 = vsel %vm476, %v3196, -inf
        %3215 = vmax.xlane.f32.xlu0 %v3214
        %v3216 = vpop.xlane.xlu0 %3215
        %v3217 = vsel %vm476, %v3197, -inf
        %3218 = vmax.xlane.f32.xlu0 %v3217
        %v3219 = vpop.xlane.xlu0 %3218
        %v3220 = vsel %vm476, %v3198, -inf
        %3221 = vmax.xlane.f32.xlu0 %v3220
        %v3222 = vpop.xlane.xlu0 %3221
        %v3223 = vsel %vm476, %v3199, -inf
        %3224 = vmax.xlane.f32.xlu0 %v3223
        %v3225 = vpop.xlane.xlu0 %3224
        %v3226 = vsel %vm476, %v3200, -inf
        %3227 = vmax.xlane.f32.xlu0 %v3226
        %v3228 = vpop.xlane.xlu0 %3227
        %v3229 = vsel %vm476, %v3201, -inf
        %3230 = vmax.xlane.f32.xlu0 %v3229
        %v3231 = vpop.xlane.xlu0 %3230
        %v3232 = vsel %vm476, %v3202, -inf
        %3233 = vmax.xlane.f32.xlu0 %v3232
        %v3234 = vpop.xlane.xlu0 %3233
        %v3235 = vsel %vm476, %v3203, -inf
        %3236 = vmax.xlane.f32.xlu0 %v3235
        %v3237 = vpop.xlane.xlu0 %3236
        %v3238 = vsel %vm476, %v3204, -inf
        %3239 = vmax.xlane.f32.xlu0 %v3238
        %v3240 = vpop.xlane.xlu0 %3239
        %v3241 = vsel %vm476, %v3205, -inf
        %3242 = vmax.xlane.f32.xlu0 %v3241
        %v3243 = vpop.xlane.xlu0 %3242
        %v3244 = vsel %vm476, %v3206, -inf
        %3245 = vmax.xlane.f32.xlu0 %v3244
        %v3246 = vpop.xlane.xlu0 %3245
        %v3247 = vsel %vm476, %v3207, -inf
        %3248 = vmax.xlane.f32.xlu0 %v3247
        %v3249 = vpop.xlane.xlu0 %3248
        %v3250 = vsel %vm476, %v3208, -inf
        %3251 = vmax.xlane.f32.xlu0 %v3250
        %v3252 = vpop.xlane.xlu0 %3251
        %v3253 = vsel %vm476, %v3209, -inf
        %3254 = vmax.xlane.f32.xlu0 %v3253
        %v3255 = vpop.xlane.xlu0 %3254
        %v3256 = vsel %vm476, %v3210, -inf
        %3257 = vmax.xlane.f32.xlu0 %v3256
        %v3258 = vpop.xlane.xlu0 %3257
        %v3259 = vsub.f32 %v3195, %v3213
        %v3260 = vsub.f32 %v3196, %v3216
        %v3261 = vsub.f32 %v3197, %v3219
        %v3262 = vsub.f32 %v3198, %v3222
        %v3263 = vsub.f32 %v3199, %v3225
        %v3264 = vsub.f32 %v3200, %v3228
        %v3265 = vsub.f32 %v3201, %v3231
        %v3266 = vsub.f32 %v3202, %v3234
        %v3267 = vsub.f32 %v3203, %v3237
        %v3268 = vsub.f32 %v3204, %v3240
        %v3269 = vsub.f32 %v3205, %v3243
        %v3270 = vsub.f32 %v3206, %v3246
        %v3271 = vsub.f32 %v3207, %v3249
        %v3272 = vsub.f32 %v3208, %v3252
        %v3273 = vsub.f32 %v3209, %v3255
        %v3274 = vsub.f32 %v3210, %v3258
        %v3275 = vmul.f32 %v3259, 1.442695
        %v3276 = vpow.pop %v3275
        %v3277 = vmul.f32 %v3260, 1.442695
        %v3278 = vpow.pop %v3277
        %v3279 = vmul.f32 %v3261, 1.442695
        %v3280 = vpow.pop %v3279
        %v3281 = vmul.f32 %v3262, 1.442695
        %v3282 = vpow.pop %v3281
        %v3283 = vmul.f32 %v3263, 1.442695
        %v3284 = vpow.pop %v3283
        %v3285 = vmul.f32 %v3264, 1.442695
        %v3286 = vpow.pop %v3285
        %v3287 = vmul.f32 %v3265, 1.442695
        %v3288 = vpow.pop %v3287
        %v3289 = vmul.f32 %v3266, 1.442695
        %v3290 = vpow.pop %v3289
        %v3291 = vmul.f32 %v3267, 1.442695
        %v3292 = vpow.pop %v3291
        %v3293 = vmul.f32 %v3268, 1.442695
        %v3294 = vpow.pop %v3293
        %v3295 = vmul.f32 %v3269, 1.442695
        %v3296 = vpow.pop %v3295
        %v3297 = vmul.f32 %v3270, 1.442695
        %v3298 = vpow.pop %v3297
        %v3299 = vmul.f32 %v3271, 1.442695
        %v3300 = vpow.pop %v3299
        %v3301 = vmul.f32 %v3272, 1.442695
        %v3302 = vpow.pop %v3301
        %v3303 = vmul.f32 %v3273, 1.442695
        %v3304 = vpow.pop %v3303
        %v3305 = vmul.f32 %v3274, 1.442695
        %v3306 = vpow.pop %v3305
        %v3307 = vsel %vm476, %v3276, 0.0
        %3308 = vadd.xlane.f32.xlu0 %v3307
        %v3309 = vpop.xlane.xlu0 %3308
        %v3310 = vsel %vm476, %v3278, 0.0
        %3311 = vadd.xlane.f32.xlu0 %v3310
        %v3312 = vpop.xlane.xlu0 %3311
        %v3313 = vsel %vm476, %v3280, 0.0
        %3314 = vadd.xlane.f32.xlu0 %v3313
        %v3315 = vpop.xlane.xlu0 %3314
        %v3316 = vsel %vm476, %v3282, 0.0
        %3317 = vadd.xlane.f32.xlu0 %v3316
        %v3318 = vpop.xlane.xlu0 %3317
        %v3319 = vsel %vm476, %v3284, 0.0
        %3320 = vadd.xlane.f32.xlu0 %v3319
        %v3321 = vpop.xlane.xlu0 %3320
        %v3322 = vsel %vm476, %v3286, 0.0
        %3323 = vadd.xlane.f32.xlu0 %v3322
        %v3324 = vpop.xlane.xlu0 %3323
        %v3325 = vsel %vm476, %v3288, 0.0
        %3326 = vadd.xlane.f32.xlu0 %v3325
        %v3327 = vpop.xlane.xlu0 %3326
        %v3328 = vsel %vm476, %v3290, 0.0
        %3329 = vadd.xlane.f32.xlu0 %v3328
        %v3330 = vpop.xlane.xlu0 %3329
        %v3331 = vsel %vm476, %v3292, 0.0
        %3332 = vadd.xlane.f32.xlu0 %v3331
        %v3333 = vpop.xlane.xlu0 %3332
        %v3334 = vsel %vm476, %v3294, 0.0
        %3335 = vadd.xlane.f32.xlu0 %v3334
        %v3336 = vpop.xlane.xlu0 %3335
        %v3337 = vsel %vm476, %v3296, 0.0
        %3338 = vadd.xlane.f32.xlu0 %v3337
        %v3339 = vpop.xlane.xlu0 %3338
        %v3340 = vsel %vm476, %v3298, 0.0
        %3341 = vadd.xlane.f32.xlu0 %v3340
        %v3342 = vpop.xlane.xlu0 %3341
        %v3343 = vsel %vm476, %v3300, 0.0
        %3344 = vadd.xlane.f32.xlu0 %v3343
        %v3345 = vpop.xlane.xlu0 %3344
        %v3346 = vsel %vm476, %v3302, 0.0
        %3347 = vadd.xlane.f32.xlu0 %v3346
        %v3348 = vpop.xlane.xlu0 %3347
        %v3349 = vsel %vm476, %v3304, 0.0
        %3350 = vadd.xlane.f32.xlu0 %v3349
        %v3351 = vpop.xlane.xlu0 %3350
        %v3352 = vsel %vm476, %v3306, 0.0
        %3353 = vadd.xlane.f32.xlu0 %v3352
        %v3354 = vpop.xlane.xlu0 %3353
        %v3355 = vrcp.pop %v3309
        %v3356 = vrcp.pop %v3312
        %v3357 = vrcp.pop %v3315
        %v3358 = vrcp.pop %v3318
        %v3359 = vrcp.pop %v3321
        %v3360 = vrcp.pop %v3324
        %v3361 = vrcp.pop %v3327
        %v3362 = vrcp.pop %v3330
        %v3363 = vrcp.pop %v3333
        %v3364 = vrcp.pop %v3336
        %v3365 = vrcp.pop %v3339
        %v3366 = vrcp.pop %v3342
        %v3367 = vrcp.pop %v3345
        %v3368 = vrcp.pop %v3348
        %v3369 = vrcp.pop %v3351
        %v3370 = vrcp.pop %v3354
        %v3371 = vmul.f32 %v3276, %v3355
        %v3372 = vmul.f32 %v3278, %v3356
        %v3373 = vmul.f32 %v3280, %v3357
        %v3374 = vmul.f32 %v3282, %v3358
        %v3375 = vmul.f32 %v3284, %v3359
        %v3376 = vmul.f32 %v3286, %v3360
        %v3377 = vmul.f32 %v3288, %v3361
        %v3378 = vmul.f32 %v3290, %v3362
        %v3379 = vmul.f32 %v3292, %v3363
        %v3380 = vmul.f32 %v3294, %v3364
        %v3381 = vmul.f32 %v3296, %v3365
        %v3382 = vmul.f32 %v3298, %v3366
        %v3383 = vmul.f32 %v3300, %v3367
        %v3384 = vmul.f32 %v3302, %v3368
        %v3385 = vmul.f32 %v3304, %v3369
        %v3386 = vmul.f32 %v3306, %v3370
        %3387 = vrot.lane.b32.xlu0 %v418, 48
        %v3388 = vpop.permute.xlu0 %3387
        %v3391 = vsel %vm476, %v3371, 0
        %3393 = vmatpush.msra.mxu0 0.0
        %3394 = vmatpush.msra.mxu0 0.0
        %3395 = vmatpush.msra.mxu0 0.0
        %3396 = vmatpush.msra.mxu0 0.0
        %3397 = vmatpush.msra.mxu0 0.0
        %3398 = vmatpush.msra.mxu0 0.0
        %3399 = vmatpush.msra.mxu0 0.0
        %3400 = vmatpush.msra.mxu0 0.0
        %3401 = vmatpush.msra.mxu0 0.0
        %3402 = vmatpush.msra.mxu0 0.0
        %3403 = vmatpush.msra.mxu0 0.0
        %3404 = vmatpush.msra.mxu0 0.0
        %3405 = vmatpush.msra.mxu0 0.0
        %3406 = vmatpush.msra.mxu0 0.0
        %3407 = vmatpush.msra.mxu0 0.0
        %3408 = vmatpush.msra.mxu0 %v3388
        %3409 = vmatmul.f32.gmra.mxu0 %v3391
        %v3410 = vpop.f32.mrf.mxu0
        %v3411 = vadd.f32 0.0, %v3410
        %3412 = vdwg.mxu0
        %3413 = vrot.lane.b32.xlu0 %v420, 48
        %v3414 = vpop.permute.xlu0 %3413
        %v3417 = vsel %vm476, %v3372, 0
        %3419 = vmatpush.msra.mxu0 0.0
        %3420 = vmatpush.msra.mxu0 0.0
        %3421 = vmatpush.msra.mxu0 0.0
        %3422 = vmatpush.msra.mxu0 0.0
        %3423 = vmatpush.msra.mxu0 0.0
        %3424 = vmatpush.msra.mxu0 0.0
        %3425 = vmatpush.msra.mxu0 0.0
        %3426 = vmatpush.msra.mxu0 0.0
        %3427 = vmatpush.msra.mxu0 0.0
        %3428 = vmatpush.msra.mxu0 0.0
        %3429 = vmatpush.msra.mxu0 0.0
        %3430 = vmatpush.msra.mxu0 0.0
        %3431 = vmatpush.msra.mxu0 0.0
        %3432 = vmatpush.msra.mxu0 0.0
        %3433 = vmatpush.msra.mxu0 0.0
        %3434 = vmatpush.msra.mxu0 %v3414
        %3435 = vmatmul.f32.gmra.mxu0 %v3417
        %v3436 = vpop.f32.mrf.mxu0
        %v3437 = vadd.f32 0.0, %v3436
        %3438 = vdwg.mxu0
        %3439 = vrot.lane.b32.xlu0 %v423, 48
        %v3440 = vpop.permute.xlu0 %3439
        %v3443 = vsel %vm476, %v3373, 0
        %3445 = vmatpush.msra.mxu0 0.0
        %3446 = vmatpush.msra.mxu0 0.0
        %3447 = vmatpush.msra.mxu0 0.0
        %3448 = vmatpush.msra.mxu0 0.0
        %3449 = vmatpush.msra.mxu0 0.0
        %3450 = vmatpush.msra.mxu0 0.0
        %3451 = vmatpush.msra.mxu0 0.0
        %3452 = vmatpush.msra.mxu0 0.0
        %3453 = vmatpush.msra.mxu0 0.0
        %3454 = vmatpush.msra.mxu0 0.0
        %3455 = vmatpush.msra.mxu0 0.0
        %3456 = vmatpush.msra.mxu0 0.0
        %3457 = vmatpush.msra.mxu0 0.0
        %3458 = vmatpush.msra.mxu0 0.0
        %3459 = vmatpush.msra.mxu0 0.0
        %3460 = vmatpush.msra.mxu0 %v3440
        %3461 = vmatmul.f32.gmra.mxu0 %v3443
        %v3462 = vpop.f32.mrf.mxu0
        %v3463 = vadd.f32 0.0, %v3462
        %3464 = vdwg.mxu0
        %3465 = vrot.lane.b32.xlu0 %v425, 48
        %v3466 = vpop.permute.xlu0 %3465
        %v3469 = vsel %vm476, %v3374, 0
        %3471 = vmatpush.msra.mxu0 0.0
        %3472 = vmatpush.msra.mxu0 0.0
        %3473 = vmatpush.msra.mxu0 0.0
        %3474 = vmatpush.msra.mxu0 0.0
        %3475 = vmatpush.msra.mxu0 0.0
        %3476 = vmatpush.msra.mxu0 0.0
        %3477 = vmatpush.msra.mxu0 0.0
        %3478 = vmatpush.msra.mxu0 0.0
        %3479 = vmatpush.msra.mxu0 0.0
        %3480 = vmatpush.msra.mxu0 0.0
        %3481 = vmatpush.msra.mxu0 0.0
        %3482 = vmatpush.msra.mxu0 0.0
        %3483 = vmatpush.msra.mxu0 0.0
        %3484 = vmatpush.msra.mxu0 0.0
        %3485 = vmatpush.msra.mxu0 0.0
        %3486 = vmatpush.msra.mxu0 %v3466
        %3487 = vmatmul.f32.gmra.mxu0 %v3469
        %v3488 = vpop.f32.mrf.mxu0
        %v3489 = vadd.f32 0.0, %v3488
        %3490 = vdwg.mxu0
        %3491 = vrot.lane.b32.xlu0 %v428, 48
        %v3492 = vpop.permute.xlu0 %3491
        %v3495 = vsel %vm476, %v3375, 0
        %3497 = vmatpush.msra.mxu0 0.0
        %3498 = vmatpush.msra.mxu0 0.0
        %3499 = vmatpush.msra.mxu0 0.0
        %3500 = vmatpush.msra.mxu0 0.0
        %3501 = vmatpush.msra.mxu0 0.0
        %3502 = vmatpush.msra.mxu0 0.0
        %3503 = vmatpush.msra.mxu0 0.0
        %3504 = vmatpush.msra.mxu0 0.0
        %3505 = vmatpush.msra.mxu0 0.0
        %3506 = vmatpush.msra.mxu0 0.0
        %3507 = vmatpush.msra.mxu0 0.0
        %3508 = vmatpush.msra.mxu0 0.0
        %3509 = vmatpush.msra.mxu0 0.0
        %3510 = vmatpush.msra.mxu0 0.0
        %3511 = vmatpush.msra.mxu0 0.0
        %3512 = vmatpush.msra.mxu0 %v3492
        %3513 = vmatmul.f32.gmra.mxu0 %v3495
        %v3514 = vpop.f32.mrf.mxu0
        %v3515 = vadd.f32 0.0, %v3514
        %3516 = vdwg.mxu0
        %3517 = vrot.lane.b32.xlu0 %v430, 48
        %v3518 = vpop.permute.xlu0 %3517
        %v3521 = vsel %vm476, %v3376, 0
        %3523 = vmatpush.msra.mxu0 0.0
        %3524 = vmatpush.msra.mxu0 0.0
        %3525 = vmatpush.msra.mxu0 0.0
        %3526 = vmatpush.msra.mxu0 0.0
        %3527 = vmatpush.msra.mxu0 0.0
        %3528 = vmatpush.msra.mxu0 0.0
        %3529 = vmatpush.msra.mxu0 0.0
        %3530 = vmatpush.msra.mxu0 0.0
        %3531 = vmatpush.msra.mxu0 0.0
        %3532 = vmatpush.msra.mxu0 0.0
        %3533 = vmatpush.msra.mxu0 0.0
        %3534 = vmatpush.msra.mxu0 0.0
        %3535 = vmatpush.msra.mxu0 0.0
        %3536 = vmatpush.msra.mxu0 0.0
        %3537 = vmatpush.msra.mxu0 0.0
        %3538 = vmatpush.msra.mxu0 %v3518
        %3539 = vmatmul.f32.gmra.mxu0 %v3521
        %v3540 = vpop.f32.mrf.mxu0
        %v3541 = vadd.f32 0.0, %v3540
        %3542 = vdwg.mxu0
        %3543 = vrot.lane.b32.xlu0 %v433, 48
        %v3544 = vpop.permute.xlu0 %3543
        %v3547 = vsel %vm476, %v3377, 0
        %3549 = vmatpush.msra.mxu0 0.0
        %3550 = vmatpush.msra.mxu0 0.0
        %3551 = vmatpush.msra.mxu0 0.0
        %3552 = vmatpush.msra.mxu0 0.0
        %3553 = vmatpush.msra.mxu0 0.0
        %3554 = vmatpush.msra.mxu0 0.0
        %3555 = vmatpush.msra.mxu0 0.0
        %3556 = vmatpush.msra.mxu0 0.0
        %3557 = vmatpush.msra.mxu0 0.0
        %3558 = vmatpush.msra.mxu0 0.0
        %3559 = vmatpush.msra.mxu0 0.0
        %3560 = vmatpush.msra.mxu0 0.0
        %3561 = vmatpush.msra.mxu0 0.0
        %3562 = vmatpush.msra.mxu0 0.0
        %3563 = vmatpush.msra.mxu0 0.0
        %3564 = vmatpush.msra.mxu0 %v3544
        %3565 = vmatmul.f32.gmra.mxu0 %v3547
        %v3566 = vpop.f32.mrf.mxu0
        %v3567 = vadd.f32 0.0, %v3566
        %3568 = vdwg.mxu0
        %3569 = vrot.lane.b32.xlu0 %v435, 48
        %v3570 = vpop.permute.xlu0 %3569
        %v3573 = vsel %vm476, %v3378, 0
        %3575 = vmatpush.msra.mxu0 0.0
        %3576 = vmatpush.msra.mxu0 0.0
        %3577 = vmatpush.msra.mxu0 0.0
        %3578 = vmatpush.msra.mxu0 0.0
        %3579 = vmatpush.msra.mxu0 0.0
        %3580 = vmatpush.msra.mxu0 0.0
        %3581 = vmatpush.msra.mxu0 0.0
        %3582 = vmatpush.msra.mxu0 0.0
        %3583 = vmatpush.msra.mxu0 0.0
        %3584 = vmatpush.msra.mxu0 0.0
        %3585 = vmatpush.msra.mxu0 0.0
        %3586 = vmatpush.msra.mxu0 0.0
        %3587 = vmatpush.msra.mxu0 0.0
        %3588 = vmatpush.msra.mxu0 0.0
        %3589 = vmatpush.msra.mxu0 0.0
        %3590 = vmatpush.msra.mxu0 %v3570
        %3591 = vmatmul.f32.gmra.mxu0 %v3573
        %v3592 = vpop.f32.mrf.mxu0
        %v3593 = vadd.f32 0.0, %v3592
        %3594 = vdwg.mxu0
        %3595 = vrot.lane.b32.xlu0 %v438, 48
        %v3596 = vpop.permute.xlu0 %3595
        %v3599 = vsel %vm476, %v3379, 0
        %3601 = vmatpush.msra.mxu0 0.0
        %3602 = vmatpush.msra.mxu0 0.0
        %3603 = vmatpush.msra.mxu0 0.0
        %3604 = vmatpush.msra.mxu0 0.0
        %3605 = vmatpush.msra.mxu0 0.0
        %3606 = vmatpush.msra.mxu0 0.0
        %3607 = vmatpush.msra.mxu0 0.0
        %3608 = vmatpush.msra.mxu0 0.0
        %3609 = vmatpush.msra.mxu0 0.0
        %3610 = vmatpush.msra.mxu0 0.0
        %3611 = vmatpush.msra.mxu0 0.0
        %3612 = vmatpush.msra.mxu0 0.0
        %3613 = vmatpush.msra.mxu0 0.0
        %3614 = vmatpush.msra.mxu0 0.0
        %3615 = vmatpush.msra.mxu0 0.0
        %3616 = vmatpush.msra.mxu0 %v3596
        %3617 = vmatmul.f32.gmra.mxu0 %v3599
        %v3618 = vpop.f32.mrf.mxu0
        %v3619 = vadd.f32 0.0, %v3618
        %3620 = vdwg.mxu0
        %3621 = vrot.lane.b32.xlu0 %v440, 48
        %v3622 = vpop.permute.xlu0 %3621
        %v3625 = vsel %vm476, %v3380, 0
        %3627 = vmatpush.msra.mxu0 0.0
        %3628 = vmatpush.msra.mxu0 0.0
        %3629 = vmatpush.msra.mxu0 0.0
        %3630 = vmatpush.msra.mxu0 0.0
        %3631 = vmatpush.msra.mxu0 0.0
        %3632 = vmatpush.msra.mxu0 0.0
        %3633 = vmatpush.msra.mxu0 0.0
        %3634 = vmatpush.msra.mxu0 0.0
        %3635 = vmatpush.msra.mxu0 0.0
        %3636 = vmatpush.msra.mxu0 0.0
        %3637 = vmatpush.msra.mxu0 0.0
        %3638 = vmatpush.msra.mxu0 0.0
        %3639 = vmatpush.msra.mxu0 0.0
        %3640 = vmatpush.msra.mxu0 0.0
        %3641 = vmatpush.msra.mxu0 0.0
        %3642 = vmatpush.msra.mxu0 %v3622
        %3643 = vmatmul.f32.gmra.mxu0 %v3625
        %v3644 = vpop.f32.mrf.mxu0
        %v3645 = vadd.f32 0.0, %v3644
        %3646 = vdwg.mxu0
        %3647 = vrot.lane.b32.xlu0 %v443, 48
        %v3648 = vpop.permute.xlu0 %3647
        %v3651 = vsel %vm476, %v3381, 0
        %3653 = vmatpush.msra.mxu0 0.0
        %3654 = vmatpush.msra.mxu0 0.0
        %3655 = vmatpush.msra.mxu0 0.0
        %3656 = vmatpush.msra.mxu0 0.0
        %3657 = vmatpush.msra.mxu0 0.0
        %3658 = vmatpush.msra.mxu0 0.0
        %3659 = vmatpush.msra.mxu0 0.0
        %3660 = vmatpush.msra.mxu0 0.0
        %3661 = vmatpush.msra.mxu0 0.0
        %3662 = vmatpush.msra.mxu0 0.0
        %3663 = vmatpush.msra.mxu0 0.0
        %3664 = vmatpush.msra.mxu0 0.0
        %3665 = vmatpush.msra.mxu0 0.0
        %3666 = vmatpush.msra.mxu0 0.0
        %3667 = vmatpush.msra.mxu0 0.0
        %3668 = vmatpush.msra.mxu0 %v3648
        %3669 = vmatmul.f32.gmra.mxu0 %v3651
        %v3670 = vpop.f32.mrf.mxu0
        %v3671 = vadd.f32 0.0, %v3670
        %3672 = vdwg.mxu0
        %3673 = vrot.lane.b32.xlu0 %v445, 48
        %v3674 = vpop.permute.xlu0 %3673
        %v3677 = vsel %vm476, %v3382, 0
        %3679 = vmatpush.msra.mxu0 0.0
        %3680 = vmatpush.msra.mxu0 0.0
        %3681 = vmatpush.msra.mxu0 0.0
        %3682 = vmatpush.msra.mxu0 0.0
        %3683 = vmatpush.msra.mxu0 0.0
        %3684 = vmatpush.msra.mxu0 0.0
        %3685 = vmatpush.msra.mxu0 0.0
        %3686 = vmatpush.msra.mxu0 0.0
        %3687 = vmatpush.msra.mxu0 0.0
        %3688 = vmatpush.msra.mxu0 0.0
        %3689 = vmatpush.msra.mxu0 0.0
        %3690 = vmatpush.msra.mxu0 0.0
        %3691 = vmatpush.msra.mxu0 0.0
        %3692 = vmatpush.msra.mxu0 0.0
        %3693 = vmatpush.msra.mxu0 0.0
        %3694 = vmatpush.msra.mxu0 %v3674
        %3695 = vmatmul.f32.gmra.mxu0 %v3677
        %v3696 = vpop.f32.mrf.mxu0
        %v3697 = vadd.f32 0.0, %v3696
        %3698 = vdwg.mxu0
        %3699 = vrot.lane.b32.xlu0 %v448, 48
        %v3700 = vpop.permute.xlu0 %3699
        %v3703 = vsel %vm476, %v3383, 0
        %3705 = vmatpush.msra.mxu0 0.0
        %3706 = vmatpush.msra.mxu0 0.0
        %3707 = vmatpush.msra.mxu0 0.0
        %3708 = vmatpush.msra.mxu0 0.0
        %3709 = vmatpush.msra.mxu0 0.0
        %3710 = vmatpush.msra.mxu0 0.0
        %3711 = vmatpush.msra.mxu0 0.0
        %3712 = vmatpush.msra.mxu0 0.0
        %3713 = vmatpush.msra.mxu0 0.0
        %3714 = vmatpush.msra.mxu0 0.0
        %3715 = vmatpush.msra.mxu0 0.0
        %3716 = vmatpush.msra.mxu0 0.0
        %3717 = vmatpush.msra.mxu0 0.0
        %3718 = vmatpush.msra.mxu0 0.0
        %3719 = vmatpush.msra.mxu0 0.0
        %3720 = vmatpush.msra.mxu0 %v3700
        %3721 = vmatmul.f32.gmra.mxu0 %v3703
        %v3722 = vpop.f32.mrf.mxu0
        %v3723 = vadd.f32 0.0, %v3722
        %3724 = vdwg.mxu0
        %3725 = vrot.lane.b32.xlu0 %v450, 48
        %v3726 = vpop.permute.xlu0 %3725
        %v3729 = vsel %vm476, %v3384, 0
        %3731 = vmatpush.msra.mxu0 0.0
        %3732 = vmatpush.msra.mxu0 0.0
        %3733 = vmatpush.msra.mxu0 0.0
        %3734 = vmatpush.msra.mxu0 0.0
        %3735 = vmatpush.msra.mxu0 0.0
        %3736 = vmatpush.msra.mxu0 0.0
        %3737 = vmatpush.msra.mxu0 0.0
        %3738 = vmatpush.msra.mxu0 0.0
        %3739 = vmatpush.msra.mxu0 0.0
        %3740 = vmatpush.msra.mxu0 0.0
        %3741 = vmatpush.msra.mxu0 0.0
        %3742 = vmatpush.msra.mxu0 0.0
        %3743 = vmatpush.msra.mxu0 0.0
        %3744 = vmatpush.msra.mxu0 0.0
        %3745 = vmatpush.msra.mxu0 0.0
        %3746 = vmatpush.msra.mxu0 %v3726
        %3747 = vmatmul.f32.gmra.mxu0 %v3729
        %v3748 = vpop.f32.mrf.mxu0
        %v3749 = vadd.f32 0.0, %v3748
        %3750 = vdwg.mxu0
        %3751 = vrot.lane.b32.xlu0 %v453, 48
        %v3752 = vpop.permute.xlu0 %3751
        %v3755 = vsel %vm476, %v3385, 0
        %3757 = vmatpush.msra.mxu0 0.0
        %3758 = vmatpush.msra.mxu0 0.0
        %3759 = vmatpush.msra.mxu0 0.0
        %3760 = vmatpush.msra.mxu0 0.0
        %3761 = vmatpush.msra.mxu0 0.0
        %3762 = vmatpush.msra.mxu0 0.0
        %3763 = vmatpush.msra.mxu0 0.0
        %3764 = vmatpush.msra.mxu0 0.0
        %3765 = vmatpush.msra.mxu0 0.0
        %3766 = vmatpush.msra.mxu0 0.0
        %3767 = vmatpush.msra.mxu0 0.0
        %3768 = vmatpush.msra.mxu0 0.0
        %3769 = vmatpush.msra.mxu0 0.0
        %3770 = vmatpush.msra.mxu0 0.0
        %3771 = vmatpush.msra.mxu0 0.0
        %3772 = vmatpush.msra.mxu0 %v3752
        %3773 = vmatmul.f32.gmra.mxu0 %v3755
        %v3774 = vpop.f32.mrf.mxu0
        %v3775 = vadd.f32 0.0, %v3774
        %3776 = vdwg.mxu0
        %3777 = vrot.lane.b32.xlu0 %v455, 48
        %v3778 = vpop.permute.xlu0 %3777
        %v3781 = vsel %vm476, %v3386, 0
        %3783 = vmatpush.msra.mxu0 0.0
        %3784 = vmatpush.msra.mxu0 0.0
        %3785 = vmatpush.msra.mxu0 0.0
        %3786 = vmatpush.msra.mxu0 0.0
        %3787 = vmatpush.msra.mxu0 0.0
        %3788 = vmatpush.msra.mxu0 0.0
        %3789 = vmatpush.msra.mxu0 0.0
        %3790 = vmatpush.msra.mxu0 0.0
        %3791 = vmatpush.msra.mxu0 0.0
        %3792 = vmatpush.msra.mxu0 0.0
        %3793 = vmatpush.msra.mxu0 0.0
        %3794 = vmatpush.msra.mxu0 0.0
        %3795 = vmatpush.msra.mxu0 0.0
        %3796 = vmatpush.msra.mxu0 0.0
        %3797 = vmatpush.msra.mxu0 0.0
        %3798 = vmatpush.msra.mxu0 %v3778
        %3799 = vmatmul.f32.gmra.mxu0 %v3781
        %v3800 = vpop.f32.mrf.mxu0
        %v3801 = vadd.f32 0.0, %v3800
        %3802 = vdwg.mxu0
        %3819 = vrot.lane.b32.xlu0 %v3411, 16
        %v3820 = vpop.permute.xlu0 %3819
        %3821 = vrot.lane.b32.xlu0 %v3437, 16
        %v3822 = vpop.permute.xlu0 %3821
        %3823 = vrot.lane.b32.xlu0 %v3463, 16
        %v3824 = vpop.permute.xlu0 %3823
        %3825 = vrot.lane.b32.xlu0 %v3489, 16
        %v3826 = vpop.permute.xlu0 %3825
        %3827 = vrot.lane.b32.xlu0 %v3515, 16
        %v3828 = vpop.permute.xlu0 %3827
        %3829 = vrot.lane.b32.xlu0 %v3541, 16
        %v3830 = vpop.permute.xlu0 %3829
        %3831 = vrot.lane.b32.xlu0 %v3567, 16
        %v3832 = vpop.permute.xlu0 %3831
        %3833 = vrot.lane.b32.xlu0 %v3593, 16
        %v3834 = vpop.permute.xlu0 %3833
        %3835 = vrot.lane.b32.xlu0 %v3619, 16
        %v3836 = vpop.permute.xlu0 %3835
        %3837 = vrot.lane.b32.xlu0 %v3645, 16
        %v3838 = vpop.permute.xlu0 %3837
        %3839 = vrot.lane.b32.xlu0 %v3671, 16
        %v3840 = vpop.permute.xlu0 %3839
        %3841 = vrot.lane.b32.xlu0 %v3697, 16
        %v3842 = vpop.permute.xlu0 %3841
        %3843 = vrot.lane.b32.xlu0 %v3723, 16
        %v3844 = vpop.permute.xlu0 %3843
        %3845 = vrot.lane.b32.xlu0 %v3749, 16
        %v3846 = vpop.permute.xlu0 %3845
        %3847 = vrot.lane.b32.xlu0 %v3775, 16
        %v3848 = vpop.permute.xlu0 %3847
        %3849 = vrot.lane.b32.xlu0 %v3801, 16
        %v3850 = vpop.permute.xlu0 %3849
        %vm3867 = vcmask 195712
        %3868 = vst.msk [vmem:[#allocation2] sm:$0xff] %vm3867, %v3820
        %3869 = vst.msk [vmem:[#allocation2 + $0x8] sm:$0xff] %vm3867, %v3822
        %3870 = vst.msk [vmem:[#allocation2 + $0x10] sm:$0xff] %vm3867, %v3824
        %3871 = vst.msk [vmem:[#allocation2 + $0x18] sm:$0xff] %vm3867, %v3826
        %3872 = vst.msk [vmem:[#allocation2 + $0x20] sm:$0xff] %vm3867, %v3828
        %3873 = vst.msk [vmem:[#allocation2 + $0x28] sm:$0xff] %vm3867, %v3830
        %3874 = vst.msk [vmem:[#allocation2 + $0x30] sm:$0xff] %vm3867, %v3832
        %3875 = vst.msk [vmem:[#allocation2 + $0x38] sm:$0xff] %vm3867, %v3834
        %3876 = vst.msk [vmem:[#allocation2 + $0x40] sm:$0xff] %vm3867, %v3836
        %3877 = vst.msk [vmem:[#allocation2 + $0x48] sm:$0xff] %vm3867, %v3838
        %3878 = vst.msk [vmem:[#allocation2 + $0x50] sm:$0xff] %vm3867, %v3840
        %3879 = vst.msk [vmem:[#allocation2 + $0x58] sm:$0xff] %vm3867, %v3842
        %3880 = vst.msk [vmem:[#allocation2 + $0x60] sm:$0xff] %vm3867, %v3844
        %3881 = vst.msk [vmem:[#allocation2 + $0x68] sm:$0xff] %vm3867, %v3846
        %3882 = vst.msk [vmem:[#allocation2 + $0x70] sm:$0xff] %vm3867, %v3848
        %3883 = vst.msk [vmem:[#allocation2 + $0x78] sm:$0xff] %vm3867, %v3850
        %3884 = vrot.lane.b32.xlu0 %v418, 104
        %v3885 = vpop.permute.xlu0 %3884
        %3886 = vrot.lane.b32.xlu0 %v418, 72
        %v3887 = vpop.permute.xlu0 %3886
        %v3888 = vsel %vm476, %v3885, 0
        %v3890 = vsel %vm476, %v3887, 0
        %3892 = vmatpush.xpose.msra.mxu0 0.0
        %3893 = vmatpush.xpose.msra.mxu0 0.0
        %3894 = vmatpush.xpose.msra.mxu0 0.0
        %3895 = vmatpush.xpose.msra.mxu0 0.0
        %3896 = vmatpush.xpose.msra.mxu0 0.0
        %3897 = vmatpush.xpose.msra.mxu0 0.0
        %3898 = vmatpush.xpose.msra.mxu0 0.0
        %3899 = vmatpush.xpose.msra.mxu0 0.0
        %3900 = vmatpush.xpose.msra.mxu0 0.0
        %3901 = vmatpush.xpose.msra.mxu0 0.0
        %3902 = vmatpush.xpose.msra.mxu0 0.0
        %3903 = vmatpush.xpose.msra.mxu0 0.0
        %3904 = vmatpush.xpose.msra.mxu0 0.0
        %3905 = vmatpush.xpose.msra.mxu0 0.0
        %3906 = vmatpush.xpose.msra.mxu0 0.0
        %3907 = vmatpush.xpose.msra.mxu0 %v3890
        %3908 = vmatmul.f32.gmra.mxu0 %v3888
        %v3909 = vpop.f32.mrf.mxu0
        %v3910 = vadd.f32 0.0, %v3909
        %3911 = vdwg.mxu0
        %3912 = vrot.lane.b32.xlu0 %v420, 104
        %v3913 = vpop.permute.xlu0 %3912
        %3914 = vrot.lane.b32.xlu0 %v420, 72
        %v3915 = vpop.permute.xlu0 %3914
        %v3916 = vsel %vm476, %v3913, 0
        %v3918 = vsel %vm476, %v3915, 0
        %3920 = vmatpush.xpose.msra.mxu0 0.0
        %3921 = vmatpush.xpose.msra.mxu0 0.0
        %3922 = vmatpush.xpose.msra.mxu0 0.0
        %3923 = vmatpush.xpose.msra.mxu0 0.0
        %3924 = vmatpush.xpose.msra.mxu0 0.0
        %3925 = vmatpush.xpose.msra.mxu0 0.0
        %3926 = vmatpush.xpose.msra.mxu0 0.0
        %3927 = vmatpush.xpose.msra.mxu0 0.0
        %3928 = vmatpush.xpose.msra.mxu0 0.0
        %3929 = vmatpush.xpose.msra.mxu0 0.0
        %3930 = vmatpush.xpose.msra.mxu0 0.0
        %3931 = vmatpush.xpose.msra.mxu0 0.0
        %3932 = vmatpush.xpose.msra.mxu0 0.0
        %3933 = vmatpush.xpose.msra.mxu0 0.0
        %3934 = vmatpush.xpose.msra.mxu0 0.0
        %3935 = vmatpush.xpose.msra.mxu0 %v3918
        %3936 = vmatmul.f32.gmra.mxu0 %v3916
        %v3937 = vpop.f32.mrf.mxu0
        %v3938 = vadd.f32 0.0, %v3937
        %3939 = vdwg.mxu0
        %3940 = vrot.lane.b32.xlu0 %v423, 104
        %v3941 = vpop.permute.xlu0 %3940
        %3942 = vrot.lane.b32.xlu0 %v423, 72
        %v3943 = vpop.permute.xlu0 %3942
        %v3944 = vsel %vm476, %v3941, 0
        %v3946 = vsel %vm476, %v3943, 0
        %3948 = vmatpush.xpose.msra.mxu0 0.0
        %3949 = vmatpush.xpose.msra.mxu0 0.0
        %3950 = vmatpush.xpose.msra.mxu0 0.0
        %3951 = vmatpush.xpose.msra.mxu0 0.0
        %3952 = vmatpush.xpose.msra.mxu0 0.0
        %3953 = vmatpush.xpose.msra.mxu0 0.0
        %3954 = vmatpush.xpose.msra.mxu0 0.0
        %3955 = vmatpush.xpose.msra.mxu0 0.0
        %3956 = vmatpush.xpose.msra.mxu0 0.0
        %3957 = vmatpush.xpose.msra.mxu0 0.0
        %3958 = vmatpush.xpose.msra.mxu0 0.0
        %3959 = vmatpush.xpose.msra.mxu0 0.0
        %3960 = vmatpush.xpose.msra.mxu0 0.0
        %3961 = vmatpush.xpose.msra.mxu0 0.0
        %3962 = vmatpush.xpose.msra.mxu0 0.0
        %3963 = vmatpush.xpose.msra.mxu0 %v3946
        %3964 = vmatmul.f32.gmra.mxu0 %v3944
        %v3965 = vpop.f32.mrf.mxu0
        %v3966 = vadd.f32 0.0, %v3965
        %3967 = vdwg.mxu0
        %3968 = vrot.lane.b32.xlu0 %v425, 104
        %v3969 = vpop.permute.xlu0 %3968
        %3970 = vrot.lane.b32.xlu0 %v425, 72
        %v3971 = vpop.permute.xlu0 %3970
        %v3972 = vsel %vm476, %v3969, 0
        %v3974 = vsel %vm476, %v3971, 0
        %3976 = vmatpush.xpose.msra.mxu0 0.0
        %3977 = vmatpush.xpose.msra.mxu0 0.0
        %3978 = vmatpush.xpose.msra.mxu0 0.0
        %3979 = vmatpush.xpose.msra.mxu0 0.0
        %3980 = vmatpush.xpose.msra.mxu0 0.0
        %3981 = vmatpush.xpose.msra.mxu0 0.0
        %3982 = vmatpush.xpose.msra.mxu0 0.0
        %3983 = vmatpush.xpose.msra.mxu0 0.0
        %3984 = vmatpush.xpose.msra.mxu0 0.0
        %3985 = vmatpush.xpose.msra.mxu0 0.0
        %3986 = vmatpush.xpose.msra.mxu0 0.0
        %3987 = vmatpush.xpose.msra.mxu0 0.0
        %3988 = vmatpush.xpose.msra.mxu0 0.0
        %3989 = vmatpush.xpose.msra.mxu0 0.0
        %3990 = vmatpush.xpose.msra.mxu0 0.0
        %3991 = vmatpush.xpose.msra.mxu0 %v3974
        %3992 = vmatmul.f32.gmra.mxu0 %v3972
        %v3993 = vpop.f32.mrf.mxu0
        %v3994 = vadd.f32 0.0, %v3993
        %3995 = vdwg.mxu0
        %3996 = vrot.lane.b32.xlu0 %v428, 104
        %v3997 = vpop.permute.xlu0 %3996
        %3998 = vrot.lane.b32.xlu0 %v428, 72
        %v3999 = vpop.permute.xlu0 %3998
        %v4000 = vsel %vm476, %v3997, 0
        %v4002 = vsel %vm476, %v3999, 0
        %4004 = vmatpush.xpose.msra.mxu0 0.0
        %4005 = vmatpush.xpose.msra.mxu0 0.0
        %4006 = vmatpush.xpose.msra.mxu0 0.0
        %4007 = vmatpush.xpose.msra.mxu0 0.0
        %4008 = vmatpush.xpose.msra.mxu0 0.0
        %4009 = vmatpush.xpose.msra.mxu0 0.0
        %4010 = vmatpush.xpose.msra.mxu0 0.0
        %4011 = vmatpush.xpose.msra.mxu0 0.0
        %4012 = vmatpush.xpose.msra.mxu0 0.0
        %4013 = vmatpush.xpose.msra.mxu0 0.0
        %4014 = vmatpush.xpose.msra.mxu0 0.0
        %4015 = vmatpush.xpose.msra.mxu0 0.0
        %4016 = vmatpush.xpose.msra.mxu0 0.0
        %4017 = vmatpush.xpose.msra.mxu0 0.0
        %4018 = vmatpush.xpose.msra.mxu0 0.0
        %4019 = vmatpush.xpose.msra.mxu0 %v4002
        %4020 = vmatmul.f32.gmra.mxu0 %v4000
        %v4021 = vpop.f32.mrf.mxu0
        %v4022 = vadd.f32 0.0, %v4021
        %4023 = vdwg.mxu0
        %4024 = vrot.lane.b32.xlu0 %v430, 104
        %v4025 = vpop.permute.xlu0 %4024
        %4026 = vrot.lane.b32.xlu0 %v430, 72
        %v4027 = vpop.permute.xlu0 %4026
        %v4028 = vsel %vm476, %v4025, 0
        %v4030 = vsel %vm476, %v4027, 0
        %4032 = vmatpush.xpose.msra.mxu0 0.0
        %4033 = vmatpush.xpose.msra.mxu0 0.0
        %4034 = vmatpush.xpose.msra.mxu0 0.0
        %4035 = vmatpush.xpose.msra.mxu0 0.0
        %4036 = vmatpush.xpose.msra.mxu0 0.0
        %4037 = vmatpush.xpose.msra.mxu0 0.0
        %4038 = vmatpush.xpose.msra.mxu0 0.0
        %4039 = vmatpush.xpose.msra.mxu0 0.0
        %4040 = vmatpush.xpose.msra.mxu0 0.0
        %4041 = vmatpush.xpose.msra.mxu0 0.0
        %4042 = vmatpush.xpose.msra.mxu0 0.0
        %4043 = vmatpush.xpose.msra.mxu0 0.0
        %4044 = vmatpush.xpose.msra.mxu0 0.0
        %4045 = vmatpush.xpose.msra.mxu0 0.0
        %4046 = vmatpush.xpose.msra.mxu0 0.0
        %4047 = vmatpush.xpose.msra.mxu0 %v4030
        %4048 = vmatmul.f32.gmra.mxu0 %v4028
        %v4049 = vpop.f32.mrf.mxu0
        %v4050 = vadd.f32 0.0, %v4049
        %4051 = vdwg.mxu0
        %4052 = vrot.lane.b32.xlu0 %v433, 104
        %v4053 = vpop.permute.xlu0 %4052
        %4054 = vrot.lane.b32.xlu0 %v433, 72
        %v4055 = vpop.permute.xlu0 %4054
        %v4056 = vsel %vm476, %v4053, 0
        %v4058 = vsel %vm476, %v4055, 0
        %4060 = vmatpush.xpose.msra.mxu0 0.0
        %4061 = vmatpush.xpose.msra.mxu0 0.0
        %4062 = vmatpush.xpose.msra.mxu0 0.0
        %4063 = vmatpush.xpose.msra.mxu0 0.0
        %4064 = vmatpush.xpose.msra.mxu0 0.0
        %4065 = vmatpush.xpose.msra.mxu0 0.0
        %4066 = vmatpush.xpose.msra.mxu0 0.0
        %4067 = vmatpush.xpose.msra.mxu0 0.0
        %4068 = vmatpush.xpose.msra.mxu0 0.0
        %4069 = vmatpush.xpose.msra.mxu0 0.0
        %4070 = vmatpush.xpose.msra.mxu0 0.0
        %4071 = vmatpush.xpose.msra.mxu0 0.0
        %4072 = vmatpush.xpose.msra.mxu0 0.0
        %4073 = vmatpush.xpose.msra.mxu0 0.0
        %4074 = vmatpush.xpose.msra.mxu0 0.0
        %4075 = vmatpush.xpose.msra.mxu0 %v4058
        %4076 = vmatmul.f32.gmra.mxu0 %v4056
        %v4077 = vpop.f32.mrf.mxu0
        %v4078 = vadd.f32 0.0, %v4077
        %4079 = vdwg.mxu0
        %4080 = vrot.lane.b32.xlu0 %v435, 104
        %v4081 = vpop.permute.xlu0 %4080
        %4082 = vrot.lane.b32.xlu0 %v435, 72
        %v4083 = vpop.permute.xlu0 %4082
        %v4084 = vsel %vm476, %v4081, 0
        %v4086 = vsel %vm476, %v4083, 0
        %4088 = vmatpush.xpose.msra.mxu0 0.0
        %4089 = vmatpush.xpose.msra.mxu0 0.0
        %4090 = vmatpush.xpose.msra.mxu0 0.0
        %4091 = vmatpush.xpose.msra.mxu0 0.0
        %4092 = vmatpush.xpose.msra.mxu0 0.0
        %4093 = vmatpush.xpose.msra.mxu0 0.0
        %4094 = vmatpush.xpose.msra.mxu0 0.0
        %4095 = vmatpush.xpose.msra.mxu0 0.0
        %4096 = vmatpush.xpose.msra.mxu0 0.0
        %4097 = vmatpush.xpose.msra.mxu0 0.0
        %4098 = vmatpush.xpose.msra.mxu0 0.0
        %4099 = vmatpush.xpose.msra.mxu0 0.0
        %4100 = vmatpush.xpose.msra.mxu0 0.0
        %4101 = vmatpush.xpose.msra.mxu0 0.0
        %4102 = vmatpush.xpose.msra.mxu0 0.0
        %4103 = vmatpush.xpose.msra.mxu0 %v4086
        %4104 = vmatmul.f32.gmra.mxu0 %v4084
        %v4105 = vpop.f32.mrf.mxu0
        %v4106 = vadd.f32 0.0, %v4105
        %4107 = vdwg.mxu0
        %4108 = vrot.lane.b32.xlu0 %v438, 104
        %v4109 = vpop.permute.xlu0 %4108
        %4110 = vrot.lane.b32.xlu0 %v438, 72
        %v4111 = vpop.permute.xlu0 %4110
        %v4112 = vsel %vm476, %v4109, 0
        %v4114 = vsel %vm476, %v4111, 0
        %4116 = vmatpush.xpose.msra.mxu0 0.0
        %4117 = vmatpush.xpose.msra.mxu0 0.0
        %4118 = vmatpush.xpose.msra.mxu0 0.0
        %4119 = vmatpush.xpose.msra.mxu0 0.0
        %4120 = vmatpush.xpose.msra.mxu0 0.0
        %4121 = vmatpush.xpose.msra.mxu0 0.0
        %4122 = vmatpush.xpose.msra.mxu0 0.0
        %4123 = vmatpush.xpose.msra.mxu0 0.0
        %4124 = vmatpush.xpose.msra.mxu0 0.0
        %4125 = vmatpush.xpose.msra.mxu0 0.0
        %4126 = vmatpush.xpose.msra.mxu0 0.0
        %4127 = vmatpush.xpose.msra.mxu0 0.0
        %4128 = vmatpush.xpose.msra.mxu0 0.0
        %4129 = vmatpush.xpose.msra.mxu0 0.0
        %4130 = vmatpush.xpose.msra.mxu0 0.0
        %4131 = vmatpush.xpose.msra.mxu0 %v4114
        %4132 = vmatmul.f32.gmra.mxu0 %v4112
        %v4133 = vpop.f32.mrf.mxu0
        %v4134 = vadd.f32 0.0, %v4133
        %4135 = vdwg.mxu0
        %4136 = vrot.lane.b32.xlu0 %v440, 104
        %v4137 = vpop.permute.xlu0 %4136
        %4138 = vrot.lane.b32.xlu0 %v440, 72
        %v4139 = vpop.permute.xlu0 %4138
        %v4140 = vsel %vm476, %v4137, 0
        %v4142 = vsel %vm476, %v4139, 0
        %4144 = vmatpush.xpose.msra.mxu0 0.0
        %4145 = vmatpush.xpose.msra.mxu0 0.0
        %4146 = vmatpush.xpose.msra.mxu0 0.0
        %4147 = vmatpush.xpose.msra.mxu0 0.0
        %4148 = vmatpush.xpose.msra.mxu0 0.0
        %4149 = vmatpush.xpose.msra.mxu0 0.0
        %4150 = vmatpush.xpose.msra.mxu0 0.0
        %4151 = vmatpush.xpose.msra.mxu0 0.0
        %4152 = vmatpush.xpose.msra.mxu0 0.0
        %4153 = vmatpush.xpose.msra.mxu0 0.0
        %4154 = vmatpush.xpose.msra.mxu0 0.0
        %4155 = vmatpush.xpose.msra.mxu0 0.0
        %4156 = vmatpush.xpose.msra.mxu0 0.0
        %4157 = vmatpush.xpose.msra.mxu0 0.0
        %4158 = vmatpush.xpose.msra.mxu0 0.0
        %4159 = vmatpush.xpose.msra.mxu0 %v4142
        %4160 = vmatmul.f32.gmra.mxu0 %v4140
        %v4161 = vpop.f32.mrf.mxu0
        %v4162 = vadd.f32 0.0, %v4161
        %4163 = vdwg.mxu0
        %4164 = vrot.lane.b32.xlu0 %v443, 104
        %v4165 = vpop.permute.xlu0 %4164
        %4166 = vrot.lane.b32.xlu0 %v443, 72
        %v4167 = vpop.permute.xlu0 %4166
        %v4168 = vsel %vm476, %v4165, 0
        %v4170 = vsel %vm476, %v4167, 0
        %4172 = vmatpush.xpose.msra.mxu0 0.0
        %4173 = vmatpush.xpose.msra.mxu0 0.0
        %4174 = vmatpush.xpose.msra.mxu0 0.0
        %4175 = vmatpush.xpose.msra.mxu0 0.0
        %4176 = vmatpush.xpose.msra.mxu0 0.0
        %4177 = vmatpush.xpose.msra.mxu0 0.0
        %4178 = vmatpush.xpose.msra.mxu0 0.0
        %4179 = vmatpush.xpose.msra.mxu0 0.0
        %4180 = vmatpush.xpose.msra.mxu0 0.0
        %4181 = vmatpush.xpose.msra.mxu0 0.0
        %4182 = vmatpush.xpose.msra.mxu0 0.0
        %4183 = vmatpush.xpose.msra.mxu0 0.0
        %4184 = vmatpush.xpose.msra.mxu0 0.0
        %4185 = vmatpush.xpose.msra.mxu0 0.0
        %4186 = vmatpush.xpose.msra.mxu0 0.0
        %4187 = vmatpush.xpose.msra.mxu0 %v4170
        %4188 = vmatmul.f32.gmra.mxu0 %v4168
        %v4189 = vpop.f32.mrf.mxu0
        %v4190 = vadd.f32 0.0, %v4189
        %4191 = vdwg.mxu0
        %4192 = vrot.lane.b32.xlu0 %v445, 104
        %v4193 = vpop.permute.xlu0 %4192
        %4194 = vrot.lane.b32.xlu0 %v445, 72
        %v4195 = vpop.permute.xlu0 %4194
        %v4196 = vsel %vm476, %v4193, 0
        %v4198 = vsel %vm476, %v4195, 0
        %4200 = vmatpush.xpose.msra.mxu0 0.0
        %4201 = vmatpush.xpose.msra.mxu0 0.0
        %4202 = vmatpush.xpose.msra.mxu0 0.0
        %4203 = vmatpush.xpose.msra.mxu0 0.0
        %4204 = vmatpush.xpose.msra.mxu0 0.0
        %4205 = vmatpush.xpose.msra.mxu0 0.0
        %4206 = vmatpush.xpose.msra.mxu0 0.0
        %4207 = vmatpush.xpose.msra.mxu0 0.0
        %4208 = vmatpush.xpose.msra.mxu0 0.0
        %4209 = vmatpush.xpose.msra.mxu0 0.0
        %4210 = vmatpush.xpose.msra.mxu0 0.0
        %4211 = vmatpush.xpose.msra.mxu0 0.0
        %4212 = vmatpush.xpose.msra.mxu0 0.0
        %4213 = vmatpush.xpose.msra.mxu0 0.0
        %4214 = vmatpush.xpose.msra.mxu0 0.0
        %4215 = vmatpush.xpose.msra.mxu0 %v4198
        %4216 = vmatmul.f32.gmra.mxu0 %v4196
        %v4217 = vpop.f32.mrf.mxu0
        %v4218 = vadd.f32 0.0, %v4217
        %4219 = vdwg.mxu0
        %4220 = vrot.lane.b32.xlu0 %v448, 104
        %v4221 = vpop.permute.xlu0 %4220
        %4222 = vrot.lane.b32.xlu0 %v448, 72
        %v4223 = vpop.permute.xlu0 %4222
        %v4224 = vsel %vm476, %v4221, 0
        %v4226 = vsel %vm476, %v4223, 0
        %4228 = vmatpush.xpose.msra.mxu0 0.0
        %4229 = vmatpush.xpose.msra.mxu0 0.0
        %4230 = vmatpush.xpose.msra.mxu0 0.0
        %4231 = vmatpush.xpose.msra.mxu0 0.0
        %4232 = vmatpush.xpose.msra.mxu0 0.0
        %4233 = vmatpush.xpose.msra.mxu0 0.0
        %4234 = vmatpush.xpose.msra.mxu0 0.0
        %4235 = vmatpush.xpose.msra.mxu0 0.0
        %4236 = vmatpush.xpose.msra.mxu0 0.0
        %4237 = vmatpush.xpose.msra.mxu0 0.0
        %4238 = vmatpush.xpose.msra.mxu0 0.0
        %4239 = vmatpush.xpose.msra.mxu0 0.0
        %4240 = vmatpush.xpose.msra.mxu0 0.0
        %4241 = vmatpush.xpose.msra.mxu0 0.0
        %4242 = vmatpush.xpose.msra.mxu0 0.0
        %4243 = vmatpush.xpose.msra.mxu0 %v4226
        %4244 = vmatmul.f32.gmra.mxu0 %v4224
        %v4245 = vpop.f32.mrf.mxu0
        %v4246 = vadd.f32 0.0, %v4245
        %4247 = vdwg.mxu0
        %4248 = vrot.lane.b32.xlu0 %v450, 104
        %v4249 = vpop.permute.xlu0 %4248
        %4250 = vrot.lane.b32.xlu0 %v450, 72
        %v4251 = vpop.permute.xlu0 %4250
        %v4252 = vsel %vm476, %v4249, 0
        %v4254 = vsel %vm476, %v4251, 0
        %4256 = vmatpush.xpose.msra.mxu0 0.0
        %4257 = vmatpush.xpose.msra.mxu0 0.0
        %4258 = vmatpush.xpose.msra.mxu0 0.0
        %4259 = vmatpush.xpose.msra.mxu0 0.0
        %4260 = vmatpush.xpose.msra.mxu0 0.0
        %4261 = vmatpush.xpose.msra.mxu0 0.0
        %4262 = vmatpush.xpose.msra.mxu0 0.0
        %4263 = vmatpush.xpose.msra.mxu0 0.0
        %4264 = vmatpush.xpose.msra.mxu0 0.0
        %4265 = vmatpush.xpose.msra.mxu0 0.0
        %4266 = vmatpush.xpose.msra.mxu0 0.0
        %4267 = vmatpush.xpose.msra.mxu0 0.0
        %4268 = vmatpush.xpose.msra.mxu0 0.0
        %4269 = vmatpush.xpose.msra.mxu0 0.0
        %4270 = vmatpush.xpose.msra.mxu0 0.0
        %4271 = vmatpush.xpose.msra.mxu0 %v4254
        %4272 = vmatmul.f32.gmra.mxu0 %v4252
        %v4273 = vpop.f32.mrf.mxu0
        %v4274 = vadd.f32 0.0, %v4273
        %4275 = vdwg.mxu0
        %4276 = vrot.lane.b32.xlu0 %v453, 104
        %v4277 = vpop.permute.xlu0 %4276
        %4278 = vrot.lane.b32.xlu0 %v453, 72
        %v4279 = vpop.permute.xlu0 %4278
        %v4280 = vsel %vm476, %v4277, 0
        %v4282 = vsel %vm476, %v4279, 0
        %4284 = vmatpush.xpose.msra.mxu0 0.0
        %4285 = vmatpush.xpose.msra.mxu0 0.0
        %4286 = vmatpush.xpose.msra.mxu0 0.0
        %4287 = vmatpush.xpose.msra.mxu0 0.0
        %4288 = vmatpush.xpose.msra.mxu0 0.0
        %4289 = vmatpush.xpose.msra.mxu0 0.0
        %4290 = vmatpush.xpose.msra.mxu0 0.0
        %4291 = vmatpush.xpose.msra.mxu0 0.0
        %4292 = vmatpush.xpose.msra.mxu0 0.0
        %4293 = vmatpush.xpose.msra.mxu0 0.0
        %4294 = vmatpush.xpose.msra.mxu0 0.0
        %4295 = vmatpush.xpose.msra.mxu0 0.0
        %4296 = vmatpush.xpose.msra.mxu0 0.0
        %4297 = vmatpush.xpose.msra.mxu0 0.0
        %4298 = vmatpush.xpose.msra.mxu0 0.0
        %4299 = vmatpush.xpose.msra.mxu0 %v4282
        %4300 = vmatmul.f32.gmra.mxu0 %v4280
        %v4301 = vpop.f32.mrf.mxu0
        %v4302 = vadd.f32 0.0, %v4301
        %4303 = vdwg.mxu0
        %4304 = vrot.lane.b32.xlu0 %v455, 104
        %v4305 = vpop.permute.xlu0 %4304
        %4306 = vrot.lane.b32.xlu0 %v455, 72
        %v4307 = vpop.permute.xlu0 %4306
        %v4308 = vsel %vm476, %v4305, 0
        %v4310 = vsel %vm476, %v4307, 0
        %4312 = vmatpush.xpose.msra.mxu0 0.0
        %4313 = vmatpush.xpose.msra.mxu0 0.0
        %4314 = vmatpush.xpose.msra.mxu0 0.0
        %4315 = vmatpush.xpose.msra.mxu0 0.0
        %4316 = vmatpush.xpose.msra.mxu0 0.0
        %4317 = vmatpush.xpose.msra.mxu0 0.0
        %4318 = vmatpush.xpose.msra.mxu0 0.0
        %4319 = vmatpush.xpose.msra.mxu0 0.0
        %4320 = vmatpush.xpose.msra.mxu0 0.0
        %4321 = vmatpush.xpose.msra.mxu0 0.0
        %4322 = vmatpush.xpose.msra.mxu0 0.0
        %4323 = vmatpush.xpose.msra.mxu0 0.0
        %4324 = vmatpush.xpose.msra.mxu0 0.0
        %4325 = vmatpush.xpose.msra.mxu0 0.0
        %4326 = vmatpush.xpose.msra.mxu0 0.0
        %4327 = vmatpush.xpose.msra.mxu0 %v4310
        %4328 = vmatmul.f32.gmra.mxu0 %v4308
        %v4329 = vpop.f32.mrf.mxu0
        %v4330 = vadd.f32 0.0, %v4329
        %4331 = vdwg.mxu0
        %v4332 = vmul.f32 %v3910, 0.35355338
        %v4333 = vmul.f32 %v3938, 0.35355338
        %v4334 = vmul.f32 %v3966, 0.35355338
        %v4335 = vmul.f32 %v3994, 0.35355338
        %v4336 = vmul.f32 %v4022, 0.35355338
        %v4337 = vmul.f32 %v4050, 0.35355338
        %v4338 = vmul.f32 %v4078, 0.35355338
        %v4339 = vmul.f32 %v4106, 0.35355338
        %v4340 = vmul.f32 %v4134, 0.35355338
        %v4341 = vmul.f32 %v4162, 0.35355338
        %v4342 = vmul.f32 %v4190, 0.35355338
        %v4343 = vmul.f32 %v4218, 0.35355338
        %v4344 = vmul.f32 %v4246, 0.35355338
        %v4345 = vmul.f32 %v4274, 0.35355338
        %v4346 = vmul.f32 %v4302, 0.35355338
        %v4347 = vmul.f32 %v4330, 0.35355338
        %v4348 = vadd.f32 %v4332, %v922
        %v4349 = vadd.f32 %v4333, %v923
        %v4350 = vadd.f32 %v4334, %v924
        %v4351 = vadd.f32 %v4335, %v925
        %v4352 = vadd.f32 %v4336, %v926
        %v4353 = vadd.f32 %v4337, %v927
        %v4354 = vadd.f32 %v4338, %v928
        %v4355 = vadd.f32 %v4339, %v929
        %v4356 = vadd.f32 %v4340, %v930
        %v4357 = vadd.f32 %v4341, %v931
        %v4358 = vadd.f32 %v4342, %v932
        %v4359 = vadd.f32 %v4343, %v933
        %v4360 = vadd.f32 %v4344, %v934
        %v4361 = vadd.f32 %v4345, %v935
        %v4362 = vadd.f32 %v4346, %v936
        %v4363 = vadd.f32 %v4347, %v937
        %v4364 = vsel %vm476, %v4348, -inf
        %4365 = vmax.xlane.f32.xlu0 %v4364
        %v4366 = vpop.xlane.xlu0 %4365
        %v4367 = vsel %vm476, %v4349, -inf
        %4368 = vmax.xlane.f32.xlu0 %v4367
        %v4369 = vpop.xlane.xlu0 %4368
        %v4370 = vsel %vm476, %v4350, -inf
        %4371 = vmax.xlane.f32.xlu0 %v4370
        %v4372 = vpop.xlane.xlu0 %4371
        %v4373 = vsel %vm476, %v4351, -inf
        %4374 = vmax.xlane.f32.xlu0 %v4373
        %v4375 = vpop.xlane.xlu0 %4374
        %v4376 = vsel %vm476, %v4352, -inf
        %4377 = vmax.xlane.f32.xlu0 %v4376
        %v4378 = vpop.xlane.xlu0 %4377
        %v4379 = vsel %vm476, %v4353, -inf
        %4380 = vmax.xlane.f32.xlu0 %v4379
        %v4381 = vpop.xlane.xlu0 %4380
        %v4382 = vsel %vm476, %v4354, -inf
        %4383 = vmax.xlane.f32.xlu0 %v4382
        %v4384 = vpop.xlane.xlu0 %4383
        %v4385 = vsel %vm476, %v4355, -inf
        %4386 = vmax.xlane.f32.xlu0 %v4385
        %v4387 = vpop.xlane.xlu0 %4386
        %v4388 = vsel %vm476, %v4356, -inf
        %4389 = vmax.xlane.f32.xlu0 %v4388
        %v4390 = vpop.xlane.xlu0 %4389
        %v4391 = vsel %vm476, %v4357, -inf
        %4392 = vmax.xlane.f32.xlu0 %v4391
        %v4393 = vpop.xlane.xlu0 %4392
        %v4394 = vsel %vm476, %v4358, -inf
        %4395 = vmax.xlane.f32.xlu0 %v4394
        %v4396 = vpop.xlane.xlu0 %4395
        %v4397 = vsel %vm476, %v4359, -inf
        %4398 = vmax.xlane.f32.xlu0 %v4397
        %v4399 = vpop.xlane.xlu0 %4398
        %v4400 = vsel %vm476, %v4360, -inf
        %4401 = vmax.xlane.f32.xlu0 %v4400
        %v4402 = vpop.xlane.xlu0 %4401
        %v4403 = vsel %vm476, %v4361, -inf
        %4404 = vmax.xlane.f32.xlu0 %v4403
        %v4405 = vpop.xlane.xlu0 %4404
        %v4406 = vsel %vm476, %v4362, -inf
        %4407 = vmax.xlane.f32.xlu0 %v4406
        %v4408 = vpop.xlane.xlu0 %4407
        %v4409 = vsel %vm476, %v4363, -inf
        %4410 = vmax.xlane.f32.xlu0 %v4409
        %v4411 = vpop.xlane.xlu0 %4410
        %v4412 = vsub.f32 %v4348, %v4366
        %v4413 = vsub.f32 %v4349, %v4369
        %v4414 = vsub.f32 %v4350, %v4372
        %v4415 = vsub.f32 %v4351, %v4375
        %v4416 = vsub.f32 %v4352, %v4378
        %v4417 = vsub.f32 %v4353, %v4381
        %v4418 = vsub.f32 %v4354, %v4384
        %v4419 = vsub.f32 %v4355, %v4387
        %v4420 = vsub.f32 %v4356, %v4390
        %v4421 = vsub.f32 %v4357, %v4393
        %v4422 = vsub.f32 %v4358, %v4396
        %v4423 = vsub.f32 %v4359, %v4399
        %v4424 = vsub.f32 %v4360, %v4402
        %v4425 = vsub.f32 %v4361, %v4405
        %v4426 = vsub.f32 %v4362, %v4408
        %v4427 = vsub.f32 %v4363, %v4411
        %v4428 = vmul.f32 %v4412, 1.442695
        %v4429 = vpow.pop %v4428
        %v4430 = vmul.f32 %v4413, 1.442695
        %v4431 = vpow.pop %v4430
        %v4432 = vmul.f32 %v4414, 1.442695
        %v4433 = vpow.pop %v4432
        %v4434 = vmul.f32 %v4415, 1.442695
        %v4435 = vpow.pop %v4434
        %v4436 = vmul.f32 %v4416, 1.442695
        %v4437 = vpow.pop %v4436
        %v4438 = vmul.f32 %v4417, 1.442695
        %v4439 = vpow.pop %v4438
        %v4440 = vmul.f32 %v4418, 1.442695
        %v4441 = vpow.pop %v4440
        %v4442 = vmul.f32 %v4419, 1.442695
        %v4443 = vpow.pop %v4442
        %v4444 = vmul.f32 %v4420, 1.442695
        %v4445 = vpow.pop %v4444
        %v4446 = vmul.f32 %v4421, 1.442695
        %v4447 = vpow.pop %v4446
        %v4448 = vmul.f32 %v4422, 1.442695
        %v4449 = vpow.pop %v4448
        %v4450 = vmul.f32 %v4423, 1.442695
        %v4451 = vpow.pop %v4450
        %v4452 = vmul.f32 %v4424, 1.442695
        %v4453 = vpow.pop %v4452
        %v4454 = vmul.f32 %v4425, 1.442695
        %v4455 = vpow.pop %v4454
        %v4456 = vmul.f32 %v4426, 1.442695
        %v4457 = vpow.pop %v4456
        %v4458 = vmul.f32 %v4427, 1.442695
        %v4459 = vpow.pop %v4458
        %v4460 = vsel %vm476, %v4429, 0.0
        %4461 = vadd.xlane.f32.xlu0 %v4460
        %v4462 = vpop.xlane.xlu0 %4461
        %v4463 = vsel %vm476, %v4431, 0.0
        %4464 = vadd.xlane.f32.xlu0 %v4463
        %v4465 = vpop.xlane.xlu0 %4464
        %v4466 = vsel %vm476, %v4433, 0.0
        %4467 = vadd.xlane.f32.xlu0 %v4466
        %v4468 = vpop.xlane.xlu0 %4467
        %v4469 = vsel %vm476, %v4435, 0.0
        %4470 = vadd.xlane.f32.xlu0 %v4469
        %v4471 = vpop.xlane.xlu0 %4470
        %v4472 = vsel %vm476, %v4437, 0.0
        %4473 = vadd.xlane.f32.xlu0 %v4472
        %v4474 = vpop.xlane.xlu0 %4473
        %v4475 = vsel %vm476, %v4439, 0.0
        %4476 = vadd.xlane.f32.xlu0 %v4475
        %v4477 = vpop.xlane.xlu0 %4476
        %v4478 = vsel %vm476, %v4441, 0.0
        %4479 = vadd.xlane.f32.xlu0 %v4478
        %v4480 = vpop.xlane.xlu0 %4479
        %v4481 = vsel %vm476, %v4443, 0.0
        %4482 = vadd.xlane.f32.xlu0 %v4481
        %v4483 = vpop.xlane.xlu0 %4482
        %v4484 = vsel %vm476, %v4445, 0.0
        %4485 = vadd.xlane.f32.xlu0 %v4484
        %v4486 = vpop.xlane.xlu0 %4485
        %v4487 = vsel %vm476, %v4447, 0.0
        %4488 = vadd.xlane.f32.xlu0 %v4487
        %v4489 = vpop.xlane.xlu0 %4488
        %v4490 = vsel %vm476, %v4449, 0.0
        %4491 = vadd.xlane.f32.xlu0 %v4490
        %v4492 = vpop.xlane.xlu0 %4491
        %v4493 = vsel %vm476, %v4451, 0.0
        %4494 = vadd.xlane.f32.xlu0 %v4493
        %v4495 = vpop.xlane.xlu0 %4494
        %v4496 = vsel %vm476, %v4453, 0.0
        %4497 = vadd.xlane.f32.xlu0 %v4496
        %v4498 = vpop.xlane.xlu0 %4497
        %v4499 = vsel %vm476, %v4455, 0.0
        %4500 = vadd.xlane.f32.xlu0 %v4499
        %v4501 = vpop.xlane.xlu0 %4500
        %v4502 = vsel %vm476, %v4457, 0.0
        %4503 = vadd.xlane.f32.xlu0 %v4502
        %v4504 = vpop.xlane.xlu0 %4503
        %v4505 = vsel %vm476, %v4459, 0.0
        %4506 = vadd.xlane.f32.xlu0 %v4505
        %v4507 = vpop.xlane.xlu0 %4506
        %v4508 = vrcp.pop %v4462
        %v4509 = vrcp.pop %v4465
        %v4510 = vrcp.pop %v4468
        %v4511 = vrcp.pop %v4471
        %v4512 = vrcp.pop %v4474
        %v4513 = vrcp.pop %v4477
        %v4514 = vrcp.pop %v4480
        %v4515 = vrcp.pop %v4483
        %v4516 = vrcp.pop %v4486
        %v4517 = vrcp.pop %v4489
        %v4518 = vrcp.pop %v4492
        %v4519 = vrcp.pop %v4495
        %v4520 = vrcp.pop %v4498
        %v4521 = vrcp.pop %v4501
        %v4522 = vrcp.pop %v4504
        %v4523 = vrcp.pop %v4507
        %v4524 = vmul.f32 %v4429, %v4508
        %v4525 = vmul.f32 %v4431, %v4509
        %v4526 = vmul.f32 %v4433, %v4510
        %v4527 = vmul.f32 %v4435, %v4511
        %v4528 = vmul.f32 %v4437, %v4512
        %v4529 = vmul.f32 %v4439, %v4513
        %v4530 = vmul.f32 %v4441, %v4514
        %v4531 = vmul.f32 %v4443, %v4515
        %v4532 = vmul.f32 %v4445, %v4516
        %v4533 = vmul.f32 %v4447, %v4517
        %v4534 = vmul.f32 %v4449, %v4518
        %v4535 = vmul.f32 %v4451, %v4519
        %v4536 = vmul.f32 %v4453, %v4520
        %v4537 = vmul.f32 %v4455, %v4521
        %v4538 = vmul.f32 %v4457, %v4522
        %v4539 = vmul.f32 %v4459, %v4523
        %4540 = vrot.lane.b32.xlu0 %v418, 40
        %v4541 = vpop.permute.xlu0 %4540
        %v4544 = vsel %vm476, %v4524, 0
        %4546 = vmatpush.msra.mxu0 0.0
        %4547 = vmatpush.msra.mxu0 0.0
        %4548 = vmatpush.msra.mxu0 0.0
        %4549 = vmatpush.msra.mxu0 0.0
        %4550 = vmatpush.msra.mxu0 0.0
        %4551 = vmatpush.msra.mxu0 0.0
        %4552 = vmatpush.msra.mxu0 0.0
        %4553 = vmatpush.msra.mxu0 0.0
        %4554 = vmatpush.msra.mxu0 0.0
        %4555 = vmatpush.msra.mxu0 0.0
        %4556 = vmatpush.msra.mxu0 0.0
        %4557 = vmatpush.msra.mxu0 0.0
        %4558 = vmatpush.msra.mxu0 0.0
        %4559 = vmatpush.msra.mxu0 0.0
        %4560 = vmatpush.msra.mxu0 0.0
        %4561 = vmatpush.msra.mxu0 %v4541
        %4562 = vmatmul.f32.gmra.mxu0 %v4544
        %v4563 = vpop.f32.mrf.mxu0
        %v4564 = vadd.f32 0.0, %v4563
        %4565 = vdwg.mxu0
        %4566 = vrot.lane.b32.xlu0 %v420, 40
        %v4567 = vpop.permute.xlu0 %4566
        %v4570 = vsel %vm476, %v4525, 0
        %4572 = vmatpush.msra.mxu0 0.0
        %4573 = vmatpush.msra.mxu0 0.0
        %4574 = vmatpush.msra.mxu0 0.0
        %4575 = vmatpush.msra.mxu0 0.0
        %4576 = vmatpush.msra.mxu0 0.0
        %4577 = vmatpush.msra.mxu0 0.0
        %4578 = vmatpush.msra.mxu0 0.0
        %4579 = vmatpush.msra.mxu0 0.0
        %4580 = vmatpush.msra.mxu0 0.0
        %4581 = vmatpush.msra.mxu0 0.0
        %4582 = vmatpush.msra.mxu0 0.0
        %4583 = vmatpush.msra.mxu0 0.0
        %4584 = vmatpush.msra.mxu0 0.0
        %4585 = vmatpush.msra.mxu0 0.0
        %4586 = vmatpush.msra.mxu0 0.0
        %4587 = vmatpush.msra.mxu0 %v4567
        %4588 = vmatmul.f32.gmra.mxu0 %v4570
        %v4589 = vpop.f32.mrf.mxu0
        %v4590 = vadd.f32 0.0, %v4589
        %4591 = vdwg.mxu0
        %4592 = vrot.lane.b32.xlu0 %v423, 40
        %v4593 = vpop.permute.xlu0 %4592
        %v4596 = vsel %vm476, %v4526, 0
        %4598 = vmatpush.msra.mxu0 0.0
        %4599 = vmatpush.msra.mxu0 0.0
        %4600 = vmatpush.msra.mxu0 0.0
        %4601 = vmatpush.msra.mxu0 0.0
        %4602 = vmatpush.msra.mxu0 0.0
        %4603 = vmatpush.msra.mxu0 0.0
        %4604 = vmatpush.msra.mxu0 0.0
        %4605 = vmatpush.msra.mxu0 0.0
        %4606 = vmatpush.msra.mxu0 0.0
        %4607 = vmatpush.msra.mxu0 0.0
        %4608 = vmatpush.msra.mxu0 0.0
        %4609 = vmatpush.msra.mxu0 0.0
        %4610 = vmatpush.msra.mxu0 0.0
        %4611 = vmatpush.msra.mxu0 0.0
        %4612 = vmatpush.msra.mxu0 0.0
        %4613 = vmatpush.msra.mxu0 %v4593
        %4614 = vmatmul.f32.gmra.mxu0 %v4596
        %v4615 = vpop.f32.mrf.mxu0
        %v4616 = vadd.f32 0.0, %v4615
        %4617 = vdwg.mxu0
        %4618 = vrot.lane.b32.xlu0 %v425, 40
        %v4619 = vpop.permute.xlu0 %4618
        %v4622 = vsel %vm476, %v4527, 0
        %4624 = vmatpush.msra.mxu0 0.0
        %4625 = vmatpush.msra.mxu0 0.0
        %4626 = vmatpush.msra.mxu0 0.0
        %4627 = vmatpush.msra.mxu0 0.0
        %4628 = vmatpush.msra.mxu0 0.0
        %4629 = vmatpush.msra.mxu0 0.0
        %4630 = vmatpush.msra.mxu0 0.0
        %4631 = vmatpush.msra.mxu0 0.0
        %4632 = vmatpush.msra.mxu0 0.0
        %4633 = vmatpush.msra.mxu0 0.0
        %4634 = vmatpush.msra.mxu0 0.0
        %4635 = vmatpush.msra.mxu0 0.0
        %4636 = vmatpush.msra.mxu0 0.0
        %4637 = vmatpush.msra.mxu0 0.0
        %4638 = vmatpush.msra.mxu0 0.0
        %4639 = vmatpush.msra.mxu0 %v4619
        %4640 = vmatmul.f32.gmra.mxu0 %v4622
        %v4641 = vpop.f32.mrf.mxu0
        %v4642 = vadd.f32 0.0, %v4641
        %4643 = vdwg.mxu0
        %4644 = vrot.lane.b32.xlu0 %v428, 40
        %v4645 = vpop.permute.xlu0 %4644
        %v4648 = vsel %vm476, %v4528, 0
        %4650 = vmatpush.msra.mxu0 0.0
        %4651 = vmatpush.msra.mxu0 0.0
        %4652 = vmatpush.msra.mxu0 0.0
        %4653 = vmatpush.msra.mxu0 0.0
        %4654 = vmatpush.msra.mxu0 0.0
        %4655 = vmatpush.msra.mxu0 0.0
        %4656 = vmatpush.msra.mxu0 0.0
        %4657 = vmatpush.msra.mxu0 0.0
        %4658 = vmatpush.msra.mxu0 0.0
        %4659 = vmatpush.msra.mxu0 0.0
        %4660 = vmatpush.msra.mxu0 0.0
        %4661 = vmatpush.msra.mxu0 0.0
        %4662 = vmatpush.msra.mxu0 0.0
        %4663 = vmatpush.msra.mxu0 0.0
        %4664 = vmatpush.msra.mxu0 0.0
        %4665 = vmatpush.msra.mxu0 %v4645
        %4666 = vmatmul.f32.gmra.mxu0 %v4648
        %v4667 = vpop.f32.mrf.mxu0
        %v4668 = vadd.f32 0.0, %v4667
        %4669 = vdwg.mxu0
        %4670 = vrot.lane.b32.xlu0 %v430, 40
        %v4671 = vpop.permute.xlu0 %4670
        %v4674 = vsel %vm476, %v4529, 0
        %4676 = vmatpush.msra.mxu0 0.0
        %4677 = vmatpush.msra.mxu0 0.0
        %4678 = vmatpush.msra.mxu0 0.0
        %4679 = vmatpush.msra.mxu0 0.0
        %4680 = vmatpush.msra.mxu0 0.0
        %4681 = vmatpush.msra.mxu0 0.0
        %4682 = vmatpush.msra.mxu0 0.0
        %4683 = vmatpush.msra.mxu0 0.0
        %4684 = vmatpush.msra.mxu0 0.0
        %4685 = vmatpush.msra.mxu0 0.0
        %4686 = vmatpush.msra.mxu0 0.0
        %4687 = vmatpush.msra.mxu0 0.0
        %4688 = vmatpush.msra.mxu0 0.0
        %4689 = vmatpush.msra.mxu0 0.0
        %4690 = vmatpush.msra.mxu0 0.0
        %4691 = vmatpush.msra.mxu0 %v4671
        %4692 = vmatmul.f32.gmra.mxu0 %v4674
        %v4693 = vpop.f32.mrf.mxu0
        %v4694 = vadd.f32 0.0, %v4693
        %4695 = vdwg.mxu0
        %4696 = vrot.lane.b32.xlu0 %v433, 40
        %v4697 = vpop.permute.xlu0 %4696
        %v4700 = vsel %vm476, %v4530, 0
        %4702 = vmatpush.msra.mxu0 0.0
        %4703 = vmatpush.msra.mxu0 0.0
        %4704 = vmatpush.msra.mxu0 0.0
        %4705 = vmatpush.msra.mxu0 0.0
        %4706 = vmatpush.msra.mxu0 0.0
        %4707 = vmatpush.msra.mxu0 0.0
        %4708 = vmatpush.msra.mxu0 0.0
        %4709 = vmatpush.msra.mxu0 0.0
        %4710 = vmatpush.msra.mxu0 0.0
        %4711 = vmatpush.msra.mxu0 0.0
        %4712 = vmatpush.msra.mxu0 0.0
        %4713 = vmatpush.msra.mxu0 0.0
        %4714 = vmatpush.msra.mxu0 0.0
        %4715 = vmatpush.msra.mxu0 0.0
        %4716 = vmatpush.msra.mxu0 0.0
        %4717 = vmatpush.msra.mxu0 %v4697
        %4718 = vmatmul.f32.gmra.mxu0 %v4700
        %v4719 = vpop.f32.mrf.mxu0
        %v4720 = vadd.f32 0.0, %v4719
        %4721 = vdwg.mxu0
        %4722 = vrot.lane.b32.xlu0 %v435, 40
        %v4723 = vpop.permute.xlu0 %4722
        %v4726 = vsel %vm476, %v4531, 0
        %4728 = vmatpush.msra.mxu0 0.0
        %4729 = vmatpush.msra.mxu0 0.0
        %4730 = vmatpush.msra.mxu0 0.0
        %4731 = vmatpush.msra.mxu0 0.0
        %4732 = vmatpush.msra.mxu0 0.0
        %4733 = vmatpush.msra.mxu0 0.0
        %4734 = vmatpush.msra.mxu0 0.0
        %4735 = vmatpush.msra.mxu0 0.0
        %4736 = vmatpush.msra.mxu0 0.0
        %4737 = vmatpush.msra.mxu0 0.0
        %4738 = vmatpush.msra.mxu0 0.0
        %4739 = vmatpush.msra.mxu0 0.0
        %4740 = vmatpush.msra.mxu0 0.0
        %4741 = vmatpush.msra.mxu0 0.0
        %4742 = vmatpush.msra.mxu0 0.0
        %4743 = vmatpush.msra.mxu0 %v4723
        %4744 = vmatmul.f32.gmra.mxu0 %v4726
        %v4745 = vpop.f32.mrf.mxu0
        %v4746 = vadd.f32 0.0, %v4745
        %4747 = vdwg.mxu0
        %4748 = vrot.lane.b32.xlu0 %v438, 40
        %v4749 = vpop.permute.xlu0 %4748
        %v4752 = vsel %vm476, %v4532, 0
        %4754 = vmatpush.msra.mxu0 0.0
        %4755 = vmatpush.msra.mxu0 0.0
        %4756 = vmatpush.msra.mxu0 0.0
        %4757 = vmatpush.msra.mxu0 0.0
        %4758 = vmatpush.msra.mxu0 0.0
        %4759 = vmatpush.msra.mxu0 0.0
        %4760 = vmatpush.msra.mxu0 0.0
        %4761 = vmatpush.msra.mxu0 0.0
        %4762 = vmatpush.msra.mxu0 0.0
        %4763 = vmatpush.msra.mxu0 0.0
        %4764 = vmatpush.msra.mxu0 0.0
        %4765 = vmatpush.msra.mxu0 0.0
        %4766 = vmatpush.msra.mxu0 0.0
        %4767 = vmatpush.msra.mxu0 0.0
        %4768 = vmatpush.msra.mxu0 0.0
        %4769 = vmatpush.msra.mxu0 %v4749
        %4770 = vmatmul.f32.gmra.mxu0 %v4752
        %v4771 = vpop.f32.mrf.mxu0
        %v4772 = vadd.f32 0.0, %v4771
        %4773 = vdwg.mxu0
        %4774 = vrot.lane.b32.xlu0 %v440, 40
        %v4775 = vpop.permute.xlu0 %4774
        %v4778 = vsel %vm476, %v4533, 0
        %4780 = vmatpush.msra.mxu0 0.0
        %4781 = vmatpush.msra.mxu0 0.0
        %4782 = vmatpush.msra.mxu0 0.0
        %4783 = vmatpush.msra.mxu0 0.0
        %4784 = vmatpush.msra.mxu0 0.0
        %4785 = vmatpush.msra.mxu0 0.0
        %4786 = vmatpush.msra.mxu0 0.0
        %4787 = vmatpush.msra.mxu0 0.0
        %4788 = vmatpush.msra.mxu0 0.0
        %4789 = vmatpush.msra.mxu0 0.0
        %4790 = vmatpush.msra.mxu0 0.0
        %4791 = vmatpush.msra.mxu0 0.0
        %4792 = vmatpush.msra.mxu0 0.0
        %4793 = vmatpush.msra.mxu0 0.0
        %4794 = vmatpush.msra.mxu0 0.0
        %4795 = vmatpush.msra.mxu0 %v4775
        %4796 = vmatmul.f32.gmra.mxu0 %v4778
        %v4797 = vpop.f32.mrf.mxu0
        %v4798 = vadd.f32 0.0, %v4797
        %4799 = vdwg.mxu0
        %4800 = vrot.lane.b32.xlu0 %v443, 40
        %v4801 = vpop.permute.xlu0 %4800
        %v4804 = vsel %vm476, %v4534, 0
        %4806 = vmatpush.msra.mxu0 0.0
        %4807 = vmatpush.msra.mxu0 0.0
        %4808 = vmatpush.msra.mxu0 0.0
        %4809 = vmatpush.msra.mxu0 0.0
        %4810 = vmatpush.msra.mxu0 0.0
        %4811 = vmatpush.msra.mxu0 0.0
        %4812 = vmatpush.msra.mxu0 0.0
        %4813 = vmatpush.msra.mxu0 0.0
        %4814 = vmatpush.msra.mxu0 0.0
        %4815 = vmatpush.msra.mxu0 0.0
        %4816 = vmatpush.msra.mxu0 0.0
        %4817 = vmatpush.msra.mxu0 0.0
        %4818 = vmatpush.msra.mxu0 0.0
        %4819 = vmatpush.msra.mxu0 0.0
        %4820 = vmatpush.msra.mxu0 0.0
        %4821 = vmatpush.msra.mxu0 %v4801
        %4822 = vmatmul.f32.gmra.mxu0 %v4804
        %v4823 = vpop.f32.mrf.mxu0
        %v4824 = vadd.f32 0.0, %v4823
        %4825 = vdwg.mxu0
        %4826 = vrot.lane.b32.xlu0 %v445, 40
        %v4827 = vpop.permute.xlu0 %4826
        %v4830 = vsel %vm476, %v4535, 0
        %4832 = vmatpush.msra.mxu0 0.0
        %4833 = vmatpush.msra.mxu0 0.0
        %4834 = vmatpush.msra.mxu0 0.0
        %4835 = vmatpush.msra.mxu0 0.0
        %4836 = vmatpush.msra.mxu0 0.0
        %4837 = vmatpush.msra.mxu0 0.0
        %4838 = vmatpush.msra.mxu0 0.0
        %4839 = vmatpush.msra.mxu0 0.0
        %4840 = vmatpush.msra.mxu0 0.0
        %4841 = vmatpush.msra.mxu0 0.0
        %4842 = vmatpush.msra.mxu0 0.0
        %4843 = vmatpush.msra.mxu0 0.0
        %4844 = vmatpush.msra.mxu0 0.0
        %4845 = vmatpush.msra.mxu0 0.0
        %4846 = vmatpush.msra.mxu0 0.0
        %4847 = vmatpush.msra.mxu0 %v4827
        %4848 = vmatmul.f32.gmra.mxu0 %v4830
        %v4849 = vpop.f32.mrf.mxu0
        %v4850 = vadd.f32 0.0, %v4849
        %4851 = vdwg.mxu0
        %4852 = vrot.lane.b32.xlu0 %v448, 40
        %v4853 = vpop.permute.xlu0 %4852
        %v4856 = vsel %vm476, %v4536, 0
        %4858 = vmatpush.msra.mxu0 0.0
        %4859 = vmatpush.msra.mxu0 0.0
        %4860 = vmatpush.msra.mxu0 0.0
        %4861 = vmatpush.msra.mxu0 0.0
        %4862 = vmatpush.msra.mxu0 0.0
        %4863 = vmatpush.msra.mxu0 0.0
        %4864 = vmatpush.msra.mxu0 0.0
        %4865 = vmatpush.msra.mxu0 0.0
        %4866 = vmatpush.msra.mxu0 0.0
        %4867 = vmatpush.msra.mxu0 0.0
        %4868 = vmatpush.msra.mxu0 0.0
        %4869 = vmatpush.msra.mxu0 0.0
        %4870 = vmatpush.msra.mxu0 0.0
        %4871 = vmatpush.msra.mxu0 0.0
        %4872 = vmatpush.msra.mxu0 0.0
        %4873 = vmatpush.msra.mxu0 %v4853
        %4874 = vmatmul.f32.gmra.mxu0 %v4856
        %v4875 = vpop.f32.mrf.mxu0
        %v4876 = vadd.f32 0.0, %v4875
        %4877 = vdwg.mxu0
        %4878 = vrot.lane.b32.xlu0 %v450, 40
        %v4879 = vpop.permute.xlu0 %4878
        %v4882 = vsel %vm476, %v4537, 0
        %4884 = vmatpush.msra.mxu0 0.0
        %4885 = vmatpush.msra.mxu0 0.0
        %4886 = vmatpush.msra.mxu0 0.0
        %4887 = vmatpush.msra.mxu0 0.0
        %4888 = vmatpush.msra.mxu0 0.0
        %4889 = vmatpush.msra.mxu0 0.0
        %4890 = vmatpush.msra.mxu0 0.0
        %4891 = vmatpush.msra.mxu0 0.0
        %4892 = vmatpush.msra.mxu0 0.0
        %4893 = vmatpush.msra.mxu0 0.0
        %4894 = vmatpush.msra.mxu0 0.0
        %4895 = vmatpush.msra.mxu0 0.0
        %4896 = vmatpush.msra.mxu0 0.0
        %4897 = vmatpush.msra.mxu0 0.0
        %4898 = vmatpush.msra.mxu0 0.0
        %4899 = vmatpush.msra.mxu0 %v4879
        %4900 = vmatmul.f32.gmra.mxu0 %v4882
        %v4901 = vpop.f32.mrf.mxu0
        %v4902 = vadd.f32 0.0, %v4901
        %4903 = vdwg.mxu0
        %4904 = vrot.lane.b32.xlu0 %v453, 40
        %v4905 = vpop.permute.xlu0 %4904
        %v4908 = vsel %vm476, %v4538, 0
        %4910 = vmatpush.msra.mxu0 0.0
        %4911 = vmatpush.msra.mxu0 0.0
        %4912 = vmatpush.msra.mxu0 0.0
        %4913 = vmatpush.msra.mxu0 0.0
        %4914 = vmatpush.msra.mxu0 0.0
        %4915 = vmatpush.msra.mxu0 0.0
        %4916 = vmatpush.msra.mxu0 0.0
        %4917 = vmatpush.msra.mxu0 0.0
        %4918 = vmatpush.msra.mxu0 0.0
        %4919 = vmatpush.msra.mxu0 0.0
        %4920 = vmatpush.msra.mxu0 0.0
        %4921 = vmatpush.msra.mxu0 0.0
        %4922 = vmatpush.msra.mxu0 0.0
        %4923 = vmatpush.msra.mxu0 0.0
        %4924 = vmatpush.msra.mxu0 0.0
        %4925 = vmatpush.msra.mxu0 %v4905
        %4926 = vmatmul.f32.gmra.mxu0 %v4908
        %v4927 = vpop.f32.mrf.mxu0
        %v4928 = vadd.f32 0.0, %v4927
        %4929 = vdwg.mxu0
        %4930 = vrot.lane.b32.xlu0 %v455, 40
        %v4931 = vpop.permute.xlu0 %4930
        %v4934 = vsel %vm476, %v4539, 0
        %4936 = vmatpush.msra.mxu0 0.0
        %4937 = vmatpush.msra.mxu0 0.0
        %4938 = vmatpush.msra.mxu0 0.0
        %4939 = vmatpush.msra.mxu0 0.0
        %4940 = vmatpush.msra.mxu0 0.0
        %4941 = vmatpush.msra.mxu0 0.0
        %4942 = vmatpush.msra.mxu0 0.0
        %4943 = vmatpush.msra.mxu0 0.0
        %4944 = vmatpush.msra.mxu0 0.0
        %4945 = vmatpush.msra.mxu0 0.0
        %4946 = vmatpush.msra.mxu0 0.0
        %4947 = vmatpush.msra.mxu0 0.0
        %4948 = vmatpush.msra.mxu0 0.0
        %4949 = vmatpush.msra.mxu0 0.0
        %4950 = vmatpush.msra.mxu0 0.0
        %4951 = vmatpush.msra.mxu0 %v4931
        %4952 = vmatmul.f32.gmra.mxu0 %v4934
        %v4953 = vpop.f32.mrf.mxu0
        %v4954 = vadd.f32 0.0, %v4953
        %4955 = vdwg.mxu0
        %4972 = vrot.lane.b32.xlu0 %v4564, 24
        %v4973 = vpop.permute.xlu0 %4972
        %4974 = vrot.lane.b32.xlu0 %v4590, 24
        %v4975 = vpop.permute.xlu0 %4974
        %4976 = vrot.lane.b32.xlu0 %v4616, 24
        %v4977 = vpop.permute.xlu0 %4976
        %4978 = vrot.lane.b32.xlu0 %v4642, 24
        %v4979 = vpop.permute.xlu0 %4978
        %4980 = vrot.lane.b32.xlu0 %v4668, 24
        %v4981 = vpop.permute.xlu0 %4980
        %4982 = vrot.lane.b32.xlu0 %v4694, 24
        %v4983 = vpop.permute.xlu0 %4982
        %4984 = vrot.lane.b32.xlu0 %v4720, 24
        %v4985 = vpop.permute.xlu0 %4984
        %4986 = vrot.lane.b32.xlu0 %v4746, 24
        %v4987 = vpop.permute.xlu0 %4986
        %4988 = vrot.lane.b32.xlu0 %v4772, 24
        %v4989 = vpop.permute.xlu0 %4988
        %4990 = vrot.lane.b32.xlu0 %v4798, 24
        %v4991 = vpop.permute.xlu0 %4990
        %4992 = vrot.lane.b32.xlu0 %v4824, 24
        %v4993 = vpop.permute.xlu0 %4992
        %4994 = vrot.lane.b32.xlu0 %v4850, 24
        %v4995 = vpop.permute.xlu0 %4994
        %4996 = vrot.lane.b32.xlu0 %v4876, 24
        %v4997 = vpop.permute.xlu0 %4996
        %4998 = vrot.lane.b32.xlu0 %v4902, 24
        %v4999 = vpop.permute.xlu0 %4998
        %5000 = vrot.lane.b32.xlu0 %v4928, 24
        %v5001 = vpop.permute.xlu0 %5000
        %5002 = vrot.lane.b32.xlu0 %v4954, 24
        %v5003 = vpop.permute.xlu0 %5002
        %vm5020 = vcmask 261312
        %5021 = vst.msk [vmem:[#allocation2] sm:$0xff] %vm5020, %v4973
        %5022 = vst.msk [vmem:[#allocation2 + $0x8] sm:$0xff] %vm5020, %v4975
        %5023 = vst.msk [vmem:[#allocation2 + $0x10] sm:$0xff] %vm5020, %v4977
        %5024 = vst.msk [vmem:[#allocation2 + $0x18] sm:$0xff] %vm5020, %v4979
        %5025 = vst.msk [vmem:[#allocation2 + $0x20] sm:$0xff] %vm5020, %v4981
        %5026 = vst.msk [vmem:[#allocation2 + $0x28] sm:$0xff] %vm5020, %v4983
        %5027 = vst.msk [vmem:[#allocation2 + $0x30] sm:$0xff] %vm5020, %v4985
        %5028 = vst.msk [vmem:[#allocation2 + $0x38] sm:$0xff] %vm5020, %v4987
        %5029 = vst.msk [vmem:[#allocation2 + $0x40] sm:$0xff] %vm5020, %v4989
        %5030 = vst.msk [vmem:[#allocation2 + $0x48] sm:$0xff] %vm5020, %v4991
        %5031 = vst.msk [vmem:[#allocation2 + $0x50] sm:$0xff] %vm5020, %v4993
        %5032 = vst.msk [vmem:[#allocation2 + $0x58] sm:$0xff] %vm5020, %v4995
        %5033 = vst.msk [vmem:[#allocation2 + $0x60] sm:$0xff] %vm5020, %v4997
        %5034 = vst.msk [vmem:[#allocation2 + $0x68] sm:$0xff] %vm5020, %v4999
        %5035 = vst.msk [vmem:[#allocation2 + $0x70] sm:$0xff] %vm5020, %v5001
        %5036 = vst.msk [vmem:[#allocation2 + $0x78] sm:$0xff] %vm5020, %v5003
        %v5037 = vld [vmem:[#allocation2] sm:$0xff]
        %v5038 = vld [vmem:[#allocation2 + $0x8] sm:$0xff]
        %v5039 = vld [vmem:[#allocation2 + $0x10] sm:$0xff]
        %v5040 = vld [vmem:[#allocation2 + $0x18] sm:$0xff]
        %v5041 = vld [vmem:[#allocation2 + $0x20] sm:$0xff]
        %v5042 = vld [vmem:[#allocation2 + $0x28] sm:$0xff]
        %v5043 = vld [vmem:[#allocation2 + $0x30] sm:$0xff]
        %v5044 = vld [vmem:[#allocation2 + $0x38] sm:$0xff]
        %v5045 = vld [vmem:[#allocation2 + $0x40] sm:$0xff]
        %v5046 = vld [vmem:[#allocation2 + $0x48] sm:$0xff]
        %v5047 = vld [vmem:[#allocation2 + $0x50] sm:$0xff]
        %v5048 = vld [vmem:[#allocation2 + $0x58] sm:$0xff]
        %v5049 = vld [vmem:[#allocation2 + $0x60] sm:$0xff]
        %v5050 = vld [vmem:[#allocation2 + $0x68] sm:$0xff]
        %v5051 = vld [vmem:[#allocation2 + $0x70] sm:$0xff]
        %v5052 = vld [vmem:[#allocation2 + $0x78] sm:$0xff]
        %v5053 = vpack.c.bf16 %v5038, %v5037
        %v5054 = vpack.c.bf16 %v5040, %v5039
        %v5055 = vpack.c.bf16 %v5042, %v5041
        %v5056 = vpack.c.bf16 %v5044, %v5043
        %v5057 = vpack.c.bf16 %v5046, %v5045
        %v5058 = vpack.c.bf16 %v5048, %v5047
        %v5059 = vpack.c.bf16 %v5050, %v5049
        %v5060 = vpack.c.bf16 %v5052, %v5051
        %v5061 = vld [vmem:[%s3] sm:$0xf]
        %v5062 = vld [vmem:[%s3 + $0x4] sm:$0xf]
        %v5063 = vld [vmem:[%s3 + $0x8] sm:$0xf]
        %v5064 = vld [vmem:[%s3 + $0xc] sm:$0xf]
        %v5065 = vld [vmem:[%s4] sm:$0x1]
        %v5067 = vperm.slane %v5065, 0
        %v5073 = vunpack.c.l.b16 %v5061
        %v5074 = vunpack.c.l.b16 %v5062
        %v5075 = vunpack.c.l.b16 %v5063
        %v5076 = vunpack.c.l.b16 %v5064
        %v5077 = vpack.c.b16 %v5074, %v5073
        %v5078 = vpack.c.b16 %v5076, %v5075
        %v5082 = vsel %vm383, %v5053, 0
        %v5085 = vsel %vm383, %v5054, 0
        %v5088 = vsel %vm383, %v5055, 0
        %v5091 = vsel %vm383, %v5056, 0
        %v5094 = vsel %vm383, %v5057, 0
        %v5097 = vsel %vm383, %v5058, 0
        %v5100 = vsel %vm383, %v5059, 0
        %v5103 = vsel %vm383, %v5060, 0
        %5105 = vmatpush.bf16.msra.mxu0 0
        %5106 = vmatpush.bf16.msra.mxu0 0
        %5107 = vmatpush.bf16.msra.mxu0 0
        %5108 = vmatpush.bf16.msra.mxu0 0
        %5109 = vmatpush.bf16.msra.mxu0 0
        %5110 = vmatpush.bf16.msra.mxu0 0
        %5111 = vmatpush.bf16.msra.mxu0 %v5078
        %5112 = vmatpush.bf16.msra.mxu0 %v5077
        %5113 = vmatmul.bf16.gmra.mxu0 %v5082
        %v5114 = vpop.f32.mrf.mxu0
        %v5115 = vadd.f32 %v5067, %v5114
        %v5116 = vpop.f32.mrf.mxu0
        %v5117 = vadd.f32 %v5067, %v5116
        %5118 = vmatmul.bf16.gmra.mxu0 %v5085
        %v5119 = vpop.f32.mrf.mxu0
        %v5120 = vadd.f32 %v5067, %v5119
        %v5121 = vpop.f32.mrf.mxu0
        %v5122 = vadd.f32 %v5067, %v5121
        %5123 = vmatmul.bf16.gmra.mxu0 %v5088
        %v5124 = vpop.f32.mrf.mxu0
        %v5125 = vadd.f32 %v5067, %v5124
        %v5126 = vpop.f32.mrf.mxu0
        %v5127 = vadd.f32 %v5067, %v5126
        %5128 = vmatmul.bf16.gmra.mxu0 %v5091
        %v5129 = vpop.f32.mrf.mxu0
        %v5130 = vadd.f32 %v5067, %v5129
        %v5131 = vpop.f32.mrf.mxu0
        %v5132 = vadd.f32 %v5067, %v5131
        %5133 = vmatmul.bf16.gmra.mxu0 %v5094
        %v5134 = vpop.f32.mrf.mxu0
        %v5135 = vadd.f32 %v5067, %v5134
        %v5136 = vpop.f32.mrf.mxu0
        %v5137 = vadd.f32 %v5067, %v5136
        %5138 = vmatmul.bf16.gmra.mxu0 %v5097
        %v5139 = vpop.f32.mrf.mxu0
        %v5140 = vadd.f32 %v5067, %v5139
        %v5141 = vpop.f32.mrf.mxu0
        %v5142 = vadd.f32 %v5067, %v5141
        %5143 = vmatmul.bf16.gmra.mxu0 %v5100
        %v5144 = vpop.f32.mrf.mxu0
        %v5145 = vadd.f32 %v5067, %v5144
        %v5146 = vpop.f32.mrf.mxu0
        %v5147 = vadd.f32 %v5067, %v5146
        %5148 = vmatmul.bf16.gmra.mxu0 %v5103
        %v5149 = vpop.f32.mrf.mxu0
        %v5150 = vadd.f32 %v5067, %v5149
        %v5151 = vpop.f32.mrf.mxu0
        %v5152 = vadd.f32 %v5067, %v5151
        %5153 = vdwg.mxu0
        %v5154 = vtanh.pop %v5115
        %v5155 = vtanh.pop %v5117
        %v5156 = vtanh.pop %v5120
        %v5157 = vtanh.pop %v5122
        %v5158 = vtanh.pop %v5125
        %v5159 = vtanh.pop %v5127
        %v5160 = vtanh.pop %v5130
        %v5161 = vtanh.pop %v5132
        %v5162 = vtanh.pop %v5135
        %v5163 = vtanh.pop %v5137
        %v5164 = vtanh.pop %v5140
        %v5165 = vtanh.pop %v5142
        %v5166 = vtanh.pop %v5145
        %v5167 = vtanh.pop %v5147
        %v5168 = vtanh.pop %v5150
        %v5169 = vtanh.pop %v5152
        %v5170 = vld [vmem:[%s5] sm:$0x1]
        %v5172 = vperm.slane %v5170, 0
        %v5174 = vmul.f32 %v5154, %v5172
        %v5175 = vmul.f32 %v5155, %v5172
        %v5176 = vmul.f32 %v5156, %v5172
        %v5177 = vmul.f32 %v5157, %v5172
        %v5178 = vmul.f32 %v5158, %v5172
        %v5179 = vmul.f32 %v5159, %v5172
        %v5180 = vmul.f32 %v5160, %v5172
        %v5181 = vmul.f32 %v5161, %v5172
        %v5182 = vmul.f32 %v5162, %v5172
        %v5183 = vmul.f32 %v5163, %v5172
        %v5184 = vmul.f32 %v5164, %v5172
        %v5185 = vmul.f32 %v5165, %v5172
        %v5186 = vmul.f32 %v5166, %v5172
        %v5187 = vmul.f32 %v5167, %v5172
        %v5188 = vmul.f32 %v5168, %v5172
        %v5189 = vmul.f32 %v5169, %v5172
        %vm5190 = vcmask 130048
        %v5191 = vsel %vm5190, %v5174, 0.0
        %5192 = vadd.xlane.f32.xlu0 %v5191
        %v5193 = vpop.xlane.xlu0 %5192
        %v5194 = vsel %vm5190, %v5175, 0.0
        %5195 = vadd.xlane.f32.xlu0 %v5194
        %v5196 = vpop.xlane.xlu0 %5195
        %v5197 = vsel %vm5190, %v5176, 0.0
        %5198 = vadd.xlane.f32.xlu0 %v5197
        %v5199 = vpop.xlane.xlu0 %5198
        %v5200 = vsel %vm5190, %v5177, 0.0
        %5201 = vadd.xlane.f32.xlu0 %v5200
        %v5202 = vpop.xlane.xlu0 %5201
        %v5203 = vsel %vm5190, %v5178, 0.0
        %5204 = vadd.xlane.f32.xlu0 %v5203
        %v5205 = vpop.xlane.xlu0 %5204
        %v5206 = vsel %vm5190, %v5179, 0.0
        %5207 = vadd.xlane.f32.xlu0 %v5206
        %v5208 = vpop.xlane.xlu0 %5207
        %v5209 = vsel %vm5190, %v5180, 0.0
        %5210 = vadd.xlane.f32.xlu0 %v5209
        %v5211 = vpop.xlane.xlu0 %5210
        %v5212 = vsel %vm5190, %v5181, 0.0
        %5213 = vadd.xlane.f32.xlu0 %v5212
        %v5214 = vpop.xlane.xlu0 %5213
        %v5215 = vsel %vm5190, %v5182, 0.0
        %5216 = vadd.xlane.f32.xlu0 %v5215
        %v5217 = vpop.xlane.xlu0 %5216
        %v5218 = vsel %vm5190, %v5183, 0.0
        %5219 = vadd.xlane.f32.xlu0 %v5218
        %v5220 = vpop.xlane.xlu0 %5219
        %v5221 = vsel %vm5190, %v5184, 0.0
        %5222 = vadd.xlane.f32.xlu0 %v5221
        %v5223 = vpop.xlane.xlu0 %5222
        %v5224 = vsel %vm5190, %v5185, 0.0
        %5225 = vadd.xlane.f32.xlu0 %v5224
        %v5226 = vpop.xlane.xlu0 %5225
        %v5227 = vsel %vm5190, %v5186, 0.0
        %5228 = vadd.xlane.f32.xlu0 %v5227
        %v5229 = vpop.xlane.xlu0 %5228
        %v5230 = vsel %vm5190, %v5187, 0.0
        %5231 = vadd.xlane.f32.xlu0 %v5230
        %v5232 = vpop.xlane.xlu0 %5231
        %v5233 = vsel %vm5190, %v5188, 0.0
        %5234 = vadd.xlane.f32.xlu0 %v5233
        %v5235 = vpop.xlane.xlu0 %5234
        %v5236 = vsel %vm5190, %v5189, 0.0
        %5237 = vadd.xlane.f32.xlu0 %v5236
        %v5238 = vpop.xlane.xlu0 %5237
        %v5239 = vld [vmem:[#allocation3] sm:$0x1]
        %v5241 = vperm.slane %v5239, 0
        %v5243 = vadd.f32 %v5193, %v5241
        %v5244 = vadd.f32 %v5196, %v5241
        %v5245 = vadd.f32 %v5199, %v5241
        %v5246 = vadd.f32 %v5202, %v5241
        %v5247 = vadd.f32 %v5205, %v5241
        %v5248 = vadd.f32 %v5208, %v5241
        %v5249 = vadd.f32 %v5211, %v5241
        %v5250 = vadd.f32 %v5214, %v5241
        %v5251 = vadd.f32 %v5217, %v5241
        %v5252 = vadd.f32 %v5220, %v5241
        %v5253 = vadd.f32 %v5223, %v5241
        %v5254 = vadd.f32 %v5226, %v5241
        %v5255 = vadd.f32 %v5229, %v5241
        %v5256 = vadd.f32 %v5232, %v5241
        %v5257 = vadd.f32 %v5235, %v5241
        %v5258 = vadd.f32 %v5238, %v5241
        %v5259 = vlaneseq
        %v5260 = vshrl.u32 %v5259, 7
        %5262 = vset.pattern.permute.xlu0 %v5260
        %5263 = vperm.xlu0 %5262, %v922
        %v5264 = vpop.permute.xlu0 %5263
        %v5265 = vperm.slane %v309, 1
        %v5266 = vlaneseq
        %v5267 = vshrl.u32 %v5266, 7
        %5269 = vset.pattern.permute.xlu0 %v5267
        %5270 = vperm.xlu0 %5269, %v5265
        %v5271 = vpop.permute.xlu0 %5270
        %v5272 = vperm.slane %v309, 2
        %v5273 = vlaneseq
        %v5274 = vshrl.u32 %v5273, 7
        %5276 = vset.pattern.permute.xlu0 %v5274
        %5277 = vperm.xlu0 %5276, %v5272
        %v5278 = vpop.permute.xlu0 %5277
        %v5279 = vperm.slane %v309, 3
        %v5280 = vlaneseq
        %v5281 = vshrl.u32 %v5280, 7
        %5283 = vset.pattern.permute.xlu0 %v5281
        %5284 = vperm.xlu0 %5283, %v5279
        %v5285 = vpop.permute.xlu0 %5284
        %v5286 = vperm.slane %v309, 4
        %v5287 = vlaneseq
        %v5288 = vshrl.u32 %v5287, 7
        %5290 = vset.pattern.permute.xlu0 %v5288
        %5291 = vperm.xlu0 %5290, %v5286
        %v5292 = vpop.permute.xlu0 %5291
        %v5293 = vperm.slane %v309, 5
        %v5294 = vlaneseq
        %v5295 = vshrl.u32 %v5294, 7
        %5297 = vset.pattern.permute.xlu0 %v5295
        %5298 = vperm.xlu0 %5297, %v5293
        %v5299 = vpop.permute.xlu0 %5298
        %v5300 = vperm.slane %v309, 6
        %v5301 = vlaneseq
        %v5302 = vshrl.u32 %v5301, 7
        %5304 = vset.pattern.permute.xlu0 %v5302
        %5305 = vperm.xlu0 %5304, %v5300
        %v5306 = vpop.permute.xlu0 %5305
        %v5307 = vperm.slane %v309, 7
        %v5308 = vlaneseq
        %v5309 = vshrl.u32 %v5308, 7
        %5311 = vset.pattern.permute.xlu0 %v5309
        %5312 = vperm.xlu0 %5311, %v5307
        %v5313 = vpop.permute.xlu0 %5312
        %v5314 = vlaneseq
        %v5315 = vshrl.u32 %v5314, 7
        %5317 = vset.pattern.permute.xlu0 %v5315
        %5318 = vperm.xlu0 %5317, %v930
        %v5319 = vpop.permute.xlu0 %5318
        %v5320 = vperm.slane %v310, 1
        %v5321 = vlaneseq
        %v5322 = vshrl.u32 %v5321, 7
        %5324 = vset.pattern.permute.xlu0 %v5322
        %5325 = vperm.xlu0 %5324, %v5320
        %v5326 = vpop.permute.xlu0 %5325
        %v5327 = vperm.slane %v310, 2
        %v5328 = vlaneseq
        %v5329 = vshrl.u32 %v5328, 7
        %5331 = vset.pattern.permute.xlu0 %v5329
        %5332 = vperm.xlu0 %5331, %v5327
        %v5333 = vpop.permute.xlu0 %5332
        %v5334 = vperm.slane %v310, 3
        %v5335 = vlaneseq
        %v5336 = vshrl.u32 %v5335, 7
        %5338 = vset.pattern.permute.xlu0 %v5336
        %5339 = vperm.xlu0 %5338, %v5334
        %v5340 = vpop.permute.xlu0 %5339
        %v5341 = vperm.slane %v310, 4
        %v5342 = vlaneseq
        %v5343 = vshrl.u32 %v5342, 7
        %5345 = vset.pattern.permute.xlu0 %v5343
        %5346 = vperm.xlu0 %5345, %v5341
        %v5347 = vpop.permute.xlu0 %5346
        %v5348 = vperm.slane %v310, 5
        %v5349 = vlaneseq
        %v5350 = vshrl.u32 %v5349, 7
        %5352 = vset.pattern.permute.xlu0 %v5350
        %5353 = vperm.xlu0 %5352, %v5348
        %v5354 = vpop.permute.xlu0 %5353
        %v5355 = vperm.slane %v310, 6
        %v5356 = vlaneseq
        %v5357 = vshrl.u32 %v5356, 7
        %5359 = vset.pattern.permute.xlu0 %v5357
        %5360 = vperm.xlu0 %5359, %v5355
        %v5361 = vpop.permute.xlu0 %5360
        %v5362 = vperm.slane %v310, 7
        %v5363 = vlaneseq
        %v5364 = vshrl.u32 %v5363, 7
        %5366 = vset.pattern.permute.xlu0 %v5364
        %5367 = vperm.xlu0 %5366, %v5362
        %v5368 = vpop.permute.xlu0 %5367
        %v5385 = vadd.f32 %v5243, %v5264
        %v5386 = vadd.f32 %v5244, %v5271
        %v5387 = vadd.f32 %v5245, %v5278
        %v5388 = vadd.f32 %v5246, %v5285
        %v5389 = vadd.f32 %v5247, %v5292
        %v5390 = vadd.f32 %v5248, %v5299
        %v5391 = vadd.f32 %v5249, %v5306
        %v5392 = vadd.f32 %v5250, %v5313
        %v5393 = vadd.f32 %v5251, %v5319
        %v5394 = vadd.f32 %v5252, %v5326
        %v5395 = vadd.f32 %v5253, %v5333
        %v5396 = vadd.f32 %v5254, %v5340
        %v5397 = vadd.f32 %v5255, %v5347
        %v5398 = vadd.f32 %v5256, %v5354
        %v5399 = vadd.f32 %v5257, %v5361
        %v5400 = vadd.f32 %v5258, %v5368
        %5417 = vset.pattern.permute.xlu0 0
        %5418 = vperm.xlu0 %5417, %v5385
        %v5419 = vpop.permute.xlu0 %5418
        %5420 = vset.pattern.permute.xlu0 0
        %5421 = vperm.xlu0 %5420, %v5386
        %v5422 = vpop.permute.xlu0 %5421
        %5423 = vset.pattern.permute.xlu0 0
        %5424 = vperm.xlu0 %5423, %v5387
        %v5425 = vpop.permute.xlu0 %5424
        %5426 = vset.pattern.permute.xlu0 0
        %5427 = vperm.xlu0 %5426, %v5388
        %v5428 = vpop.permute.xlu0 %5427
        %5429 = vset.pattern.permute.xlu0 0
        %5430 = vperm.xlu0 %5429, %v5389
        %v5431 = vpop.permute.xlu0 %5430
        %5432 = vset.pattern.permute.xlu0 0
        %5433 = vperm.xlu0 %5432, %v5390
        %v5434 = vpop.permute.xlu0 %5433
        %5435 = vset.pattern.permute.xlu0 0
        %5436 = vperm.xlu0 %5435, %v5391
        %v5437 = vpop.permute.xlu0 %5436
        %5438 = vset.pattern.permute.xlu0 0
        %5439 = vperm.xlu0 %5438, %v5392
        %v5440 = vpop.permute.xlu0 %5439
        %5441 = vset.pattern.permute.xlu0 0
        %5442 = vperm.xlu0 %5441, %v5393
        %v5443 = vpop.permute.xlu0 %5442
        %5444 = vset.pattern.permute.xlu0 0
        %5445 = vperm.xlu0 %5444, %v5394
        %v5446 = vpop.permute.xlu0 %5445
        %5447 = vset.pattern.permute.xlu0 0
        %5448 = vperm.xlu0 %5447, %v5395
        %v5449 = vpop.permute.xlu0 %5448
        %5450 = vset.pattern.permute.xlu0 0
        %5451 = vperm.xlu0 %5450, %v5396
        %v5452 = vpop.permute.xlu0 %5451
        %5453 = vset.pattern.permute.xlu0 0
        %5454 = vperm.xlu0 %5453, %v5397
        %v5455 = vpop.permute.xlu0 %5454
        %5456 = vset.pattern.permute.xlu0 0
        %5457 = vperm.xlu0 %5456, %v5398
        %v5458 = vpop.permute.xlu0 %5457
        %5459 = vset.pattern.permute.xlu0 0
        %5460 = vperm.xlu0 %5459, %v5399
        %v5461 = vpop.permute.xlu0 %5460
        %5462 = vset.pattern.permute.xlu0 0
        %5463 = vperm.xlu0 %5462, %v5400
        %v5464 = vpop.permute.xlu0 %5463
        %v5465 = vlaneseq
        %v5466 = vand.u32 %v5465, 127
        %v5467 = vperm.slane %v5419, %v5466
        %v5468 = vperm.slane %v5422, %v5466
        %v5469 = vperm.slane %v5425, %v5466
        %v5470 = vperm.slane %v5428, %v5466
        %v5471 = vperm.slane %v5431, %v5466
        %v5472 = vperm.slane %v5434, %v5466
        %v5473 = vperm.slane %v5437, %v5466
        %v5474 = vperm.slane %v5440, %v5466
        %v5475 = vperm.slane %v5443, %v5466
        %v5476 = vperm.slane %v5446, %v5466
        %v5477 = vperm.slane %v5449, %v5466
        %v5478 = vperm.slane %v5452, %v5466
        %v5479 = vperm.slane %v5455, %v5466
        %v5480 = vperm.slane %v5458, %v5466
        %v5481 = vperm.slane %v5461, %v5466
        %v5482 = vperm.slane %v5464, %v5466
        %vm5483 = vcmask 1041409
        %v5484 = vsel %vm5483, %v5468, %v5467
        %vm5485 = vcmask 1042434
        %v5486 = vsel %vm5485, %v5469, %v5484
        %vm5487 = vcmask 1043459
        %v5488 = vsel %vm5487, %v5470, %v5486
        %vm5489 = vcmask 1044484
        %v5490 = vsel %vm5489, %v5471, %v5488
        %vm5491 = vcmask 1045509
        %v5492 = vsel %vm5491, %v5472, %v5490
        %vm5493 = vcmask 1046534
        %v5494 = vsel %vm5493, %v5473, %v5492
        %vm5495 = vcmask 1047559
        %v5496 = vsel %vm5495, %v5474, %v5494
        %v5497 = vsel %vm5483, %v5476, %v5475
        %v5498 = vsel %vm5485, %v5477, %v5497
        %v5499 = vsel %vm5487, %v5478, %v5498
        %v5500 = vsel %vm5489, %v5479, %v5499
        %v5501 = vsel %vm5491, %v5480, %v5500
        %v5502 = vsel %vm5493, %v5481, %v5501
        %v5503 = vsel %vm5495, %v5482, %v5502
        %v5506 = vsel %vm476, %v5496, -inf
        %5507 = vmax.xlane.f32.xlu0 %v5506
        %v5508 = vpop.xlane.xlu0 %5507
        %v5509 = vsel %vm476, %v5503, -inf
        %5510 = vmax.xlane.f32.xlu0 %v5509
        %v5511 = vpop.xlane.xlu0 %5510
        %v5514 = vperm.slane %v5508, 0
        %v5515 = vperm.slane %v5508, 1
        %v5516 = vperm.slane %v5508, 2
        %v5517 = vperm.slane %v5508, 3
        %v5518 = vperm.slane %v5508, 4
        %v5519 = vperm.slane %v5508, 5
        %v5520 = vperm.slane %v5508, 6
        %v5521 = vperm.slane %v5508, 7
        %v5522 = vperm.slane %v5511, 0
        %v5523 = vperm.slane %v5511, 1
        %v5524 = vperm.slane %v5511, 2
        %v5525 = vperm.slane %v5511, 3
        %v5526 = vperm.slane %v5511, 4
        %v5527 = vperm.slane %v5511, 5
        %v5528 = vperm.slane %v5511, 6
        %v5529 = vperm.slane %v5511, 7
        %v5546 = vsub.f32 %v5385, %v5514
        %v5547 = vsub.f32 %v5386, %v5515
        %v5548 = vsub.f32 %v5387, %v5516
        %v5549 = vsub.f32 %v5388, %v5517
        %v5550 = vsub.f32 %v5389, %v5518
        %v5551 = vsub.f32 %v5390, %v5519
        %v5552 = vsub.f32 %v5391, %v5520
        %v5553 = vsub.f32 %v5392, %v5521
        %v5554 = vsub.f32 %v5393, %v5522
        %v5555 = vsub.f32 %v5394, %v5523
        %v5556 = vsub.f32 %v5395, %v5524
        %v5557 = vsub.f32 %v5396, %v5525
        %v5558 = vsub.f32 %v5397, %v5526
        %v5559 = vsub.f32 %v5398, %v5527
        %v5560 = vsub.f32 %v5399, %v5528
        %v5561 = vsub.f32 %v5400, %v5529
        %v5562 = vmul.f32 %v5546, 1.442695
        %v5563 = vpow.pop %v5562
        %v5564 = vmul.f32 %v5547, 1.442695
        %v5565 = vpow.pop %v5564
        %v5566 = vmul.f32 %v5548, 1.442695
        %v5567 = vpow.pop %v5566
        %v5568 = vmul.f32 %v5549, 1.442695
        %v5569 = vpow.pop %v5568
        %v5570 = vmul.f32 %v5550, 1.442695
        %v5571 = vpow.pop %v5570
        %v5572 = vmul.f32 %v5551, 1.442695
        %v5573 = vpow.pop %v5572
        %v5574 = vmul.f32 %v5552, 1.442695
        %v5575 = vpow.pop %v5574
        %v5576 = vmul.f32 %v5553, 1.442695
        %v5577 = vpow.pop %v5576
        %v5578 = vmul.f32 %v5554, 1.442695
        %v5579 = vpow.pop %v5578
        %v5580 = vmul.f32 %v5555, 1.442695
        %v5581 = vpow.pop %v5580
        %v5582 = vmul.f32 %v5556, 1.442695
        %v5583 = vpow.pop %v5582
        %v5584 = vmul.f32 %v5557, 1.442695
        %v5585 = vpow.pop %v5584
        %v5586 = vmul.f32 %v5558, 1.442695
        %v5587 = vpow.pop %v5586
        %v5588 = vmul.f32 %v5559, 1.442695
        %v5589 = vpow.pop %v5588
        %v5590 = vmul.f32 %v5560, 1.442695
        %v5591 = vpow.pop %v5590
        %v5592 = vmul.f32 %v5561, 1.442695
        %v5593 = vpow.pop %v5592
        %5610 = vset.pattern.permute.xlu0 0
        %5611 = vperm.xlu0 %5610, %v5563
        %v5612 = vpop.permute.xlu0 %5611
        %5613 = vset.pattern.permute.xlu0 0
        %5614 = vperm.xlu0 %5613, %v5565
        %v5615 = vpop.permute.xlu0 %5614
        %5616 = vset.pattern.permute.xlu0 0
        %5617 = vperm.xlu0 %5616, %v5567
        %v5618 = vpop.permute.xlu0 %5617
        %5619 = vset.pattern.permute.xlu0 0
        %5620 = vperm.xlu0 %5619, %v5569
        %v5621 = vpop.permute.xlu0 %5620
        %5622 = vset.pattern.permute.xlu0 0
        %5623 = vperm.xlu0 %5622, %v5571
        %v5624 = vpop.permute.xlu0 %5623
        %5625 = vset.pattern.permute.xlu0 0
        %5626 = vperm.xlu0 %5625, %v5573
        %v5627 = vpop.permute.xlu0 %5626
        %5628 = vset.pattern.permute.xlu0 0
        %5629 = vperm.xlu0 %5628, %v5575
        %v5630 = vpop.permute.xlu0 %5629
        %5631 = vset.pattern.permute.xlu0 0
        %5632 = vperm.xlu0 %5631, %v5577
        %v5633 = vpop.permute.xlu0 %5632
        %5634 = vset.pattern.permute.xlu0 0
        %5635 = vperm.xlu0 %5634, %v5579
        %v5636 = vpop.permute.xlu0 %5635
        %5637 = vset.pattern.permute.xlu0 0
        %5638 = vperm.xlu0 %5637, %v5581
        %v5639 = vpop.permute.xlu0 %5638
        %5640 = vset.pattern.permute.xlu0 0
        %5641 = vperm.xlu0 %5640, %v5583
        %v5642 = vpop.permute.xlu0 %5641
        %5643 = vset.pattern.permute.xlu0 0
        %5644 = vperm.xlu0 %5643, %v5585
        %v5645 = vpop.permute.xlu0 %5644
        %5646 = vset.pattern.permute.xlu0 0
        %5647 = vperm.xlu0 %5646, %v5587
        %v5648 = vpop.permute.xlu0 %5647
        %5649 = vset.pattern.permute.xlu0 0
        %5650 = vperm.xlu0 %5649, %v5589
        %v5651 = vpop.permute.xlu0 %5650
        %5652 = vset.pattern.permute.xlu0 0
        %5653 = vperm.xlu0 %5652, %v5591
        %v5654 = vpop.permute.xlu0 %5653
        %5655 = vset.pattern.permute.xlu0 0
        %5656 = vperm.xlu0 %5655, %v5593
        %v5657 = vpop.permute.xlu0 %5656
        %v5658 = vperm.slane %v5612, %v5466
        %v5659 = vperm.slane %v5615, %v5466
        %v5660 = vperm.slane %v5618, %v5466
        %v5661 = vperm.slane %v5621, %v5466
        %v5662 = vperm.slane %v5624, %v5466
        %v5663 = vperm.slane %v5627, %v5466
        %v5664 = vperm.slane %v5630, %v5466
        %v5665 = vperm.slane %v5633, %v5466
        %v5666 = vperm.slane %v5636, %v5466
        %v5667 = vperm.slane %v5639, %v5466
        %v5668 = vperm.slane %v5642, %v5466
        %v5669 = vperm.slane %v5645, %v5466
        %v5670 = vperm.slane %v5648, %v5466
        %v5671 = vperm.slane %v5651, %v5466
        %v5672 = vperm.slane %v5654, %v5466
        %v5673 = vperm.slane %v5657, %v5466
        %v5674 = vsel %vm5483, %v5659, %v5658
        %v5675 = vsel %vm5485, %v5660, %v5674
        %v5676 = vsel %vm5487, %v5661, %v5675
        %v5677 = vsel %vm5489, %v5662, %v5676
        %v5678 = vsel %vm5491, %v5663, %v5677
        %v5679 = vsel %vm5493, %v5664, %v5678
        %v5680 = vsel %vm5495, %v5665, %v5679
        %v5681 = vsel %vm5483, %v5667, %v5666
        %v5682 = vsel %vm5485, %v5668, %v5681
        %v5683 = vsel %vm5487, %v5669, %v5682
        %v5684 = vsel %vm5489, %v5670, %v5683
        %v5685 = vsel %vm5491, %v5671, %v5684
        %v5686 = vsel %vm5493, %v5672, %v5685
        %v5687 = vsel %vm5495, %v5673, %v5686
        %v5690 = vsel %vm476, %v5680, 0.0
        %5691 = vadd.xlane.f32.xlu0 %v5690
        %v5692 = vpop.xlane.xlu0 %5691
        %v5693 = vsel %vm476, %v5687, 0.0
        %5694 = vadd.xlane.f32.xlu0 %v5693
        %v5695 = vpop.xlane.xlu0 %5694
        %v5696 = vrcp.pop %v5692
        %v5697 = vrcp.pop %v5695
        %v5700 = vperm.slane %v5696, 0
        %v5701 = vperm.slane %v5696, 1
        %v5702 = vperm.slane %v5696, 2
        %v5703 = vperm.slane %v5696, 3
        %v5704 = vperm.slane %v5696, 4
        %v5705 = vperm.slane %v5696, 5
        %v5706 = vperm.slane %v5696, 6
        %v5707 = vperm.slane %v5696, 7
        %v5708 = vperm.slane %v5697, 0
        %v5709 = vperm.slane %v5697, 1
        %v5710 = vperm.slane %v5697, 2
        %v5711 = vperm.slane %v5697, 3
        %v5712 = vperm.slane %v5697, 4
        %v5713 = vperm.slane %v5697, 5
        %v5714 = vperm.slane %v5697, 6
        %v5715 = vperm.slane %v5697, 7
        %v5732 = vmul.f32 %v5563, %v5700
        %v5733 = vmul.f32 %v5565, %v5701
        %v5734 = vmul.f32 %v5567, %v5702
        %v5735 = vmul.f32 %v5569, %v5703
        %v5736 = vmul.f32 %v5571, %v5704
        %v5737 = vmul.f32 %v5573, %v5705
        %v5738 = vmul.f32 %v5575, %v5706
        %v5739 = vmul.f32 %v5577, %v5707
        %v5740 = vmul.f32 %v5579, %v5708
        %v5741 = vmul.f32 %v5581, %v5709
        %v5742 = vmul.f32 %v5583, %v5710
        %v5743 = vmul.f32 %v5585, %v5711
        %v5744 = vmul.f32 %v5587, %v5712
        %v5745 = vmul.f32 %v5589, %v5713
        %v5746 = vmul.f32 %v5591, %v5714
        %v5747 = vmul.f32 %v5593, %v5715
        %5749 = vset.pattern.permute.xlu0 0
        %5750 = vperm.xlu0 %5749, %v5732
        %v5751 = vpop.permute.xlu0 %5750
        %5754 = vset.pattern.permute.xlu0 0
        %5755 = vperm.xlu0 %5754, %v5733
        %v5756 = vpop.permute.xlu0 %5755
        %5759 = vset.pattern.permute.xlu0 0
        %5760 = vperm.xlu0 %5759, %v5734
        %v5761 = vpop.permute.xlu0 %5760
        %5764 = vset.pattern.permute.xlu0 0
        %5765 = vperm.xlu0 %5764, %v5735
        %v5766 = vpop.permute.xlu0 %5765
        %5769 = vset.pattern.permute.xlu0 0
        %5770 = vperm.xlu0 %5769, %v5736
        %v5771 = vpop.permute.xlu0 %5770
        %5774 = vset.pattern.permute.xlu0 0
        %5775 = vperm.xlu0 %5774, %v5737
        %v5776 = vpop.permute.xlu0 %5775
        %5779 = vset.pattern.permute.xlu0 0
        %5780 = vperm.xlu0 %5779, %v5738
        %v5781 = vpop.permute.xlu0 %5780
        %5784 = vset.pattern.permute.xlu0 0
        %5785 = vperm.xlu0 %5784, %v5739
        %v5786 = vpop.permute.xlu0 %5785
        %5789 = vset.pattern.permute.xlu0 0
        %5790 = vperm.xlu0 %5789, %v5740
        %v5791 = vpop.permute.xlu0 %5790
        %5794 = vset.pattern.permute.xlu0 0
        %5795 = vperm.xlu0 %5794, %v5741
        %v5796 = vpop.permute.xlu0 %5795
        %5799 = vset.pattern.permute.xlu0 0
        %5800 = vperm.xlu0 %5799, %v5742
        %v5801 = vpop.permute.xlu0 %5800
        %5804 = vset.pattern.permute.xlu0 0
        %5805 = vperm.xlu0 %5804, %v5743
        %v5806 = vpop.permute.xlu0 %5805
        %5809 = vset.pattern.permute.xlu0 0
        %5810 = vperm.xlu0 %5809, %v5744
        %v5811 = vpop.permute.xlu0 %5810
        %5814 = vset.pattern.permute.xlu0 0
        %5815 = vperm.xlu0 %5814, %v5745
        %v5816 = vpop.permute.xlu0 %5815
        %5819 = vset.pattern.permute.xlu0 0
        %5820 = vperm.xlu0 %5819, %v5746
        %v5821 = vpop.permute.xlu0 %5820
        %5824 = vset.pattern.permute.xlu0 0
        %5825 = vperm.xlu0 %5824, %v5747
        %v5826 = vpop.permute.xlu0 %5825
        %v5828 = vmul.f32 %v5751, %v5037
        %v5829 = vmul.f32 %v5756, %v5038
        %v5830 = vmul.f32 %v5761, %v5039
        %v5831 = vmul.f32 %v5766, %v5040
        %v5832 = vmul.f32 %v5771, %v5041
        %v5833 = vmul.f32 %v5776, %v5042
        %v5834 = vmul.f32 %v5781, %v5043
        %v5835 = vmul.f32 %v5786, %v5044
        %v5836 = vmul.f32 %v5791, %v5045
        %v5837 = vmul.f32 %v5796, %v5046
        %v5838 = vmul.f32 %v5801, %v5047
        %v5839 = vmul.f32 %v5806, %v5048
        %v5840 = vmul.f32 %v5811, %v5049
        %v5841 = vmul.f32 %v5816, %v5050
        %v5842 = vmul.f32 %v5821, %v5051
        %v5843 = vmul.f32 %v5826, %v5052
        %v5844 = vsel %vm383, %v5828, 0.0
        %v5845 = vrot.slane %v5844, 4
        %v5846 = vadd.f32 %v5844, %v5845
        %v5847 = vrot.slane %v5846, 2
        %v5848 = vadd.f32 %v5846, %v5847
        %v5849 = vrot.slane %v5848, 1
        %v5850 = vadd.f32 %v5848, %v5849
        %v5851 = vsel %vm383, %v5829, 0.0
        %v5852 = vrot.slane %v5851, 4
        %v5853 = vadd.f32 %v5851, %v5852
        %v5854 = vrot.slane %v5853, 2
        %v5855 = vadd.f32 %v5853, %v5854
        %v5856 = vrot.slane %v5855, 1
        %v5857 = vadd.f32 %v5855, %v5856
        %v5858 = vsel %vm383, %v5830, 0.0
        %v5859 = vrot.slane %v5858, 4
        %v5860 = vadd.f32 %v5858, %v5859
        %v5861 = vrot.slane %v5860, 2
        %v5862 = vadd.f32 %v5860, %v5861
        %v5863 = vrot.slane %v5862, 1
        %v5864 = vadd.f32 %v5862, %v5863
        %v5865 = vsel %vm383, %v5831, 0.0
        %v5866 = vrot.slane %v5865, 4
        %v5867 = vadd.f32 %v5865, %v5866
        %v5868 = vrot.slane %v5867, 2
        %v5869 = vadd.f32 %v5867, %v5868
        %v5870 = vrot.slane %v5869, 1
        %v5871 = vadd.f32 %v5869, %v5870
        %v5872 = vsel %vm383, %v5832, 0.0
        %v5873 = vrot.slane %v5872, 4
        %v5874 = vadd.f32 %v5872, %v5873
        %v5875 = vrot.slane %v5874, 2
        %v5876 = vadd.f32 %v5874, %v5875
        %v5877 = vrot.slane %v5876, 1
        %v5878 = vadd.f32 %v5876, %v5877
        %v5879 = vsel %vm383, %v5833, 0.0
        %v5880 = vrot.slane %v5879, 4
        %v5881 = vadd.f32 %v5879, %v5880
        %v5882 = vrot.slane %v5881, 2
        %v5883 = vadd.f32 %v5881, %v5882
        %v5884 = vrot.slane %v5883, 1
        %v5885 = vadd.f32 %v5883, %v5884
        %v5886 = vsel %vm383, %v5834, 0.0
        %v5887 = vrot.slane %v5886, 4
        %v5888 = vadd.f32 %v5886, %v5887
        %v5889 = vrot.slane %v5888, 2
        %v5890 = vadd.f32 %v5888, %v5889
        %v5891 = vrot.slane %v5890, 1
        %v5892 = vadd.f32 %v5890, %v5891
        %v5893 = vsel %vm383, %v5835, 0.0
        %v5894 = vrot.slane %v5893, 4
        %v5895 = vadd.f32 %v5893, %v5894
        %v5896 = vrot.slane %v5895, 2
        %v5897 = vadd.f32 %v5895, %v5896
        %v5898 = vrot.slane %v5897, 1
        %v5899 = vadd.f32 %v5897, %v5898
        %v5900 = vsel %vm383, %v5836, 0.0
        %v5901 = vrot.slane %v5900, 4
        %v5902 = vadd.f32 %v5900, %v5901
        %v5903 = vrot.slane %v5902, 2
        %v5904 = vadd.f32 %v5902, %v5903
        %v5905 = vrot.slane %v5904, 1
        %v5906 = vadd.f32 %v5904, %v5905
        %v5907 = vsel %vm383, %v5837, 0.0
        %v5908 = vrot.slane %v5907, 4
        %v5909 = vadd.f32 %v5907, %v5908
        %v5910 = vrot.slane %v5909, 2
        %v5911 = vadd.f32 %v5909, %v5910
        %v5912 = vrot.slane %v5911, 1
        %v5913 = vadd.f32 %v5911, %v5912
        %v5914 = vsel %vm383, %v5838, 0.0
        %v5915 = vrot.slane %v5914, 4
        %v5916 = vadd.f32 %v5914, %v5915
        %v5917 = vrot.slane %v5916, 2
        %v5918 = vadd.f32 %v5916, %v5917
        %v5919 = vrot.slane %v5918, 1
        %v5920 = vadd.f32 %v5918, %v5919
        %v5921 = vsel %vm383, %v5839, 0.0
        %v5922 = vrot.slane %v5921, 4
        %v5923 = vadd.f32 %v5921, %v5922
        %v5924 = vrot.slane %v5923, 2
        %v5925 = vadd.f32 %v5923, %v5924
        %v5926 = vrot.slane %v5925, 1
        %v5927 = vadd.f32 %v5925, %v5926
        %v5928 = vsel %vm383, %v5840, 0.0
        %v5929 = vrot.slane %v5928, 4
        %v5930 = vadd.f32 %v5928, %v5929
        %v5931 = vrot.slane %v5930, 2
        %v5932 = vadd.f32 %v5930, %v5931
        %v5933 = vrot.slane %v5932, 1
        %v5934 = vadd.f32 %v5932, %v5933
        %v5935 = vsel %vm383, %v5841, 0.0
        %v5936 = vrot.slane %v5935, 4
        %v5937 = vadd.f32 %v5935, %v5936
        %v5938 = vrot.slane %v5937, 2
        %v5939 = vadd.f32 %v5937, %v5938
        %v5940 = vrot.slane %v5939, 1
        %v5941 = vadd.f32 %v5939, %v5940
        %v5942 = vsel %vm383, %v5842, 0.0
        %v5943 = vrot.slane %v5942, 4
        %v5944 = vadd.f32 %v5942, %v5943
        %v5945 = vrot.slane %v5944, 2
        %v5946 = vadd.f32 %v5944, %v5945
        %v5947 = vrot.slane %v5946, 1
        %v5948 = vadd.f32 %v5946, %v5947
        %v5949 = vsel %vm383, %v5843, 0.0
        %v5950 = vrot.slane %v5949, 4
        %v5951 = vadd.f32 %v5949, %v5950
        %v5952 = vrot.slane %v5951, 2
        %v5953 = vadd.f32 %v5951, %v5952
        %v5954 = vrot.slane %v5953, 1
        %v5955 = vadd.f32 %v5953, %v5954
        %v5972 = vsel %vm5483, %v5857, %v5850
        %v5973 = vsel %vm5485, %v5864, %v5972
        %v5974 = vsel %vm5487, %v5871, %v5973
        %v5975 = vsel %vm5489, %v5878, %v5974
        %v5976 = vsel %vm5491, %v5885, %v5975
        %v5977 = vsel %vm5493, %v5892, %v5976
        %v5978 = vsel %vm5495, %v5899, %v5977
        %v5979 = vsel %vm5483, %v5913, %v5906
        %v5980 = vsel %vm5485, %v5920, %v5979
        %v5981 = vsel %vm5487, %v5927, %v5980
        %v5982 = vsel %vm5489, %v5934, %v5981
        %v5983 = vsel %vm5491, %v5941, %v5982
        %v5984 = vsel %vm5493, %v5948, %v5983
        %v5985 = vsel %vm5495, %v5955, %v5984
        %5988 = vst.msk [vmem:[%s290] sm:$0xff] %vm383, %v5978
        %5989 = vst.msk [vmem:[%s290 + $0x8] sm:$0xff] %vm383, %v5985
        %s5990 = sand.u32 %s188, 1
        %s5991 = scalar_lea.sflag [#allocation5], %s5990
        %s5992 = sand.u32 %s188, 1
        %s5993 = smul.addr %s5992, 16
        %s5994 = scalar_lea.vmem [#allocation4], %s5993
        // Predicated region
        $region49: #{tpu_custom_call.1} parent=47 // pred_check
          %p5995 = pneg %p198
        $region50: #{tpu_custom_call.1} parent=47 // pred_check_branch
          %5997 = sbr.rel (%p5995) target = $region52
        $region51: #{tpu_custom_call.1} parent=47 // pred_region
          %s5998 = smul.u32 2, %s23
          %6000 = vsyncadd %s5991, 0
          %s6001 = smul.addr %s5998, 8
          %s6002 = scalar_lea.hbm %s7, %s6001
          %s6003 = sshll.u32 %s5994, 4
          %s6004 = int_to_ptr.vmem [resolvable:$true] %s6003
          %s6005 = sshll.u32 %s6002, 4
          %s6006 = int_to_ptr.hbm [resolvable:$true] %s6005
          %6011 = dma.vmem_to_hbm [thread:$0]  %s6004, 256, %s6006, %s5991, 128, 128, 8
        $region52: #{tpu_custom_call.1} parent=47 // pred_fallthru
          _
      $region48: #{tpu_custom_call.1} parent=5 // pred_fallthru
        _
      %p6012 = scmp.le.s32.totalorder 2, %s18
      // Predicated region
      $region53: #{tpu_custom_call.1} parent=5 // pred_check
        %p6013 = pneg %p6012
      $region54: #{tpu_custom_call.1} parent=5 // pred_check_branch
        %6015 = sbr.rel (%p6013) target = $region56
      $region55: #{tpu_custom_call.1} parent=5 // pred_region
        %s6016 = ssub.s32 %s18, 2
        // Predicated region
        $region57: #{tpu_custom_call.1} parent=55 // pred_check
          %p6017 = pneg %p204
        $region58: #{tpu_custom_call.1} parent=55 // pred_check_branch
          %6019 = sbr.rel (%p6017) target = $region60
        $region59: #{tpu_custom_call.1} parent=55 // pred_region
          %s6020 = sand.u32 %s189, 1
          %s6021 = scalar_lea.sflag [#allocation5], %s6020
          %s6022 = sand.u32 %s189, 1
          %s6023 = smul.addr %s6022, 16
          %s6024 = scalar_lea.vmem [#allocation4], %s6023
          %6026 = dma.done %s6021, 256
        $region60: #{tpu_custom_call.1} parent=55 // pred_fallthru
          _
      $region56: #{tpu_custom_call.1} parent=5 // pred_fallthru
        _
    $region6: #{tpu_custom_call.1} parent=1 // loop_footer
      %s22 = sadd.s32 1, %s18
    $region7: #{tpu_custom_call.1} parent=1 // loop_footer_branch
      %17 = sbr.rel target = $region3
    $region8: #{tpu_custom_call.1} parent=1 // loop_exit
      _
    %6027 = vsyncpa [#allocation5], 1
    %s6028 = scalar_lea.sflag [#allocation5], 1
    %6029 = vsyncpa %s6028, 1

</llo_original>
